<compile_context>
chip_gen: v5e
topology: v5e:2x2
jax: 0.10.0
libtpu: 0.0.40
codegen_flags: <defaults>
</compile_context>

<pallas_src>
import functools

import jax
import jax.numpy as jnp
from jax import lax
from jax.experimental import pallas as pl
from jax.experimental.pallas import tpu as pltpu


def _bn(y, gamma, beta, relu, eps):
    # PyTorch training-mode BatchNorm1d: biased batch statistics, eps inside
    # the rsqrt.  y is the f32 MXU accumulator; all BN math in f32.
    mean = jnp.mean(y, axis=0, keepdims=True)
    var = jnp.mean((y - mean) ** 2, axis=0, keepdims=True)
    out = (y - mean) * lax.rsqrt(var + eps) * gamma + beta
    return jnp.maximum(out, 0.0) if relu else out


# --------------------------------------------------------------------------- #
# Fast path: no grid, everything resident in VMEM.
# --------------------------------------------------------------------------- #
def _fused_resident_kernel(x_ref, w1_ref, g1_ref, b1_ref,
                           w2_ref, g2_ref, b2_ref,
                           w3_ref, g3_ref, b3_ref,
                           o_ref, *, eps):
    h1 = _bn(jnp.dot(x_ref[...], w1_ref[...], preferred_element_type=jnp.float32),
             g1_ref[...], b1_ref[...], relu=True, eps=eps).astype(jnp.bfloat16)
    h2 = _bn(jnp.dot(h1, w2_ref[...], preferred_element_type=jnp.float32),
             g2_ref[...], b2_ref[...], relu=True, eps=eps).astype(jnp.bfloat16)
    y3 = jnp.dot(h2, w3_ref[...], preferred_element_type=jnp.float32)
    o_ref[...] = _bn(y3, g3_ref[...], b3_ref[...],
                     relu=False, eps=eps).astype(o_ref.dtype)


# --------------------------------------------------------------------------- #
# Streamed grid path: layer-1 N-tiles == layer-2 K-tiles, w2 pipelined.
# --------------------------------------------------------------------------- #
def _streamed_kernel(x_ref, w1_ref, g1_ref, b1_ref,
                     w2_ref, g2_ref, b2_ref,
                     w3_hbm, g3_ref, b3_ref,
                     o_ref,
                     y2_ref, w3_vmem, w3_sem, *, eps):
    j = pl.program_id(0)
    last = pl.num_programs(0) - 1

    @pl.when(j == 0)
    def _init():
        # Background layer-3 weight copy: hidden behind the layer-1/2 loop.
        pltpu.make_async_copy(w3_hbm, w3_vmem, w3_sem.at[0]).start()
        y2_ref[...] = jnp.zeros_like(y2_ref)

    # Layer 1, output-feature tile j (BN is per-feature -> tiles independent).
    y1 = jnp.dot(x_ref[...], w1_ref[...], preferred_element_type=jnp.float32)
    h1_tile = _bn(y1, g1_ref[...], b1_ref[...], relu=True, eps=eps)

    # Layer 2 partial: this hidden tile against the streamed w2 K-tile, so the
    # w2 DMA and layer-2 MXU work overlap layer 1 (w2 never fully resident).
    y2_ref[...] = y2_ref[...] + jnp.dot(
        h1_tile.astype(w2_ref.dtype), w2_ref[...],
        preferred_element_type=jnp.float32)

    @pl.when(j == last)
    def _tail():
        h2 = _bn(y2_ref[...], g2_ref[...], b2_ref[...], relu=True, eps=eps)
        # w3 is only needed now; waiting after layer-2 BN keeps the DMA hidden.
        pltpu.make_async_copy(w3_hbm, w3_vmem, w3_sem.at[0]).wait()
        y3 = jnp.dot(h2.astype(w3_vmem.dtype), w3_vmem[...],
                     preferred_element_type=jnp.float32)
        o_ref[...] = _bn(y3, g3_ref[...], b3_ref[...],
                         relu=False, eps=eps).astype(o_ref.dtype)


def projection_mlp_forward(x, params, *, tile_n=256, eps=1e-5, force_grid=False):
    """x: (B, input_dim) f32.  Returns (B, output_dim) f32 (training-mode BN)."""
    B, D_in = x.shape
    H = params["w1"].shape[1]
    O = params["w3"].shape[1]
    # The reference module applies BatchNorm1d(hidden_dim) after layer3's
    # Linear, so it only runs when output_dim == hidden_dim.
    assert O == H and params["g3"].shape[1] == H, "requires output_dim == hidden_dim"

    x_bf16 = x.astype(jnp.bfloat16)  # native MXU input dtype; halves x DMA bytes

    flops = 2 * B * (D_in * H + H * H + H * O)
    bytes_accessed = (B * D_in * 2 + (D_in * H + H * H + H * O) * 2
                      + 6 * H * 4 + B * O * 4)
    cost = pl.CostEstimate(flops=flops, transcendentals=3 * H,
                           bytes_accessed=bytes_accessed)

    args = (x_bf16, params["w1"], params["g1"], params["b1"],
            params["w2"], params["g2"], params["b2"],
            params["w3"], params["g3"], params["b3"])

    # ---- fast path: single step, everything resident in VMEM ----------------
    resident_bytes = ((D_in * H + H * H + H * O) * 2     # bf16 weights
                      + B * (D_in * 2 + O * 4)           # x + output
                      + 3 * B * H * 4                    # f32 activation temps
                      + 6 * H * 4)                       # BN affines
    if (not force_grid) and resident_bytes <= 24 * 1024 * 1024:
        return pl.pallas_call(
            functools.partial(_fused_resident_kernel, eps=eps),
            out_shape=jax.ShapeDtypeStruct((B, O), jnp.float32),
            compiler_params=pltpu.CompilerParams(
                vmem_limit_bytes=int(min(max(2 * resident_bytes, 32 << 20),
                                         56 << 20))),
            cost_estimate=cost,
        )(*args)

    # ---- streamed grid path --------------------------------------------------
    tile_n = min(tile_n, H)
    assert H % tile_n == 0, "hidden_dim must be a multiple of tile_n"
    num_tiles = H // tile_n

    grid_bytes = (B * D_in * 2                 # x (resident)
                  + 2 * D_in * tile_n * 2      # w1 N-tiles (double-buffered)
                  + 2 * tile_n * H * 2         # streamed w2 K-tiles (double-buffered)
                  + H * O * 2                  # w3 landing buffer
                  + B * H * 4                  # y2 accumulator
                  + 2 * B * O * 4              # output block
                  + 6 * H * 4)                 # BN affines

    grid_spec = pltpu.PrefetchScalarGridSpec(
        num_scalar_prefetch=0,
        grid=(num_tiles,),
        in_specs=[
            pl.BlockSpec((B, D_in), lambda j: (0, 0)),        # x (resident)
            pl.BlockSpec((D_in, tile_n), lambda j: (0, j)),   # w1 N-tile (pipelined)
            pl.BlockSpec((1, tile_n), lambda j: (0, j)),      # gamma1 tile
            pl.BlockSpec((1, tile_n), lambda j: (0, j)),      # beta1 tile
            pl.BlockSpec((tile_n, H), lambda j: (j, 0)),      # w2 K-tile (streamed)
            pl.BlockSpec((1, H), lambda j: (0, 0)),           # gamma2
            pl.BlockSpec((1, H), lambda j: (0, 0)),           # beta2
            pl.BlockSpec(memory_space=pl.ANY),                # w3 (manual DMA)
            pl.BlockSpec((1, H), lambda j: (0, 0)),           # gamma3
            pl.BlockSpec((1, H), lambda j: (0, 0)),           # beta3
        ],
        out_specs=pl.BlockSpec((B, O), lambda j: (0, 0)),     # lane-dense output
        scratch_shapes=[
            pltpu.VMEM((B, H), jnp.float32),                  # y2 accumulator
            pltpu.VMEM((H, O), jnp.bfloat16),                 # w3 landing buffer
            pltpu.SemaphoreType.DMA((1,)),                    # w3 copy semaphore
        ],
    )

    return pl.pallas_call(
        functools.partial(_streamed_kernel, eps=eps),
        out_shape=jax.ShapeDtypeStruct((B, O), jnp.float32),
        grid_spec=grid_spec,
        compiler_params=pltpu.CompilerParams(
            # Grid axis carries y2 scratch + in-flight w3 DMA -> arbitrary.
            dimension_semantics=("arbitrary",),
            vmem_limit_bytes=int(min(max(2 * grid_bytes, 32 << 20), 56 << 20)),
        ),
        cost_estimate=cost,
    )(*args)


def init_params(key, input_dim, hidden_dim, output_dim):
    """Deterministic synthetic parameters.

    Weights are stored PRE-TRANSPOSED as (in_features, out_features) and in
    bf16 so the kernel consumes them directly (no per-forward .T / re-cast).
    """
    k1, k2, k3, kg, kb = jax.random.split(key, 5)

    def linear_w(k, in_f, out_f):
        bound = 1.0 / (in_f ** 0.5)
        w = jax.random.uniform(k, (out_f, in_f), jnp.float32, -bound, bound)
        return jnp.asarray(w.T, jnp.bfloat16)                  # (in, out), bf16

    def affine(k, n, base):
        return base + 0.1 * jax.random.normal(k, (1, n), jnp.float32)

    kgs = jax.random.split(kg, 3)
    kbs = jax.random.split(kb, 3)
    return {
        "w1": linear_w(k1, input_dim, hidden_dim),
        "g1": affine(kgs[0], hidden_dim, 1.0), "b1": affine(kbs[0], hidden_dim, 0.0),
        "w2": linear_w(k2, hidden_dim, hidden_dim),
        "g2": affine(kgs[1], hidden_dim, 1.0), "b2": affine(kbs[1], hidden_dim, 0.0),
        "w3": linear_w(k3, hidden_dim, output_dim),
        "g3": affine(kgs[2], hidden_dim, 1.0), "b3": affine(kbs[2], hidden_dim, 0.0),
    }


def _reference_forward(x, params, eps=1e-5):
    """Pure-JAX reference with the same mixed-precision policy as the kernel."""
    def layer(h, w_t, g, b, relu):
        y = jnp.dot(h, w_t, preferred_element_type=jnp.float32)
        mean = jnp.mean(y, axis=0, keepdims=True)
        var = jnp.mean((y - mean) ** 2, axis=0, keepdims=True)
        y = (y - mean) * lax.rsqrt(var + eps) * g + b
        return jnp.maximum(y, 0.0) if relu else y

    h = x.astype(jnp.bfloat16)
    h = layer(h, params["w1"], params["g1"], params["b1"], True).astype(jnp.bfloat16)
    h = layer(h, params["w2"], params["g2"], params["b2"], True).astype(jnp.bfloat16)
    return layer(h, params["w3"], params["g3"], params["b3"], False)


if __name__ == "__main__":
    # Small but lane/MXU-friendly shapes (dims multiples of 128).
    B, input_dim, hidden_dim, output_dim = 64, 128, 512, 512

    key = jax.random.PRNGKey(0)
    kx, kp = jax.random.split(key)
    x = jax.random.normal(kx, (B, input_dim), jnp.float32)
    params = init_params(kp, input_dim, hidden_dim, output_dim)

    ref = jax.block_until_ready(_reference_forward(x, params))

    # Fast fully-resident path (auto-selected at these sizes).
    out_fast = jax.block_until_ready(projection_mlp_forward(x, params))
    # Streamed grid path (what runs at real SimSiam sizes, H=2048).
    out_grid = jax.block_until_ready(
        projection_mlp_forward(x, params, tile_n=128, force_grid=True))

    assert out_fast.shape == (B, output_dim)
    assert out_grid.shape == (B, output_dim)
    assert bool(jnp.allclose(out_fast, ref, atol=2e-2, rtol=2e-2)), "fast path mismatch"
    assert bool(jnp.allclose(out_grid, ref, atol=2e-2, rtol=2e-2)), "grid path mismatch"

    print("KERNEL_OK")
</pallas_src>

<mosaic_0001>
module attributes {stable_mosaic.version = 11 : i64} {
  func.func @_fused_resident_kernel(%arg0: memref<64x128xbf16, #tpu.memory_space<vmem>>, %arg1: memref<128x512xbf16, #tpu.memory_space<vmem>>, %arg2: memref<1x512xf32, #tpu.memory_space<vmem>>, %arg3: memref<1x512xf32, #tpu.memory_space<vmem>>, %arg4: memref<512x512xbf16, #tpu.memory_space<vmem>>, %arg5: memref<1x512xf32, #tpu.memory_space<vmem>>, %arg6: memref<1x512xf32, #tpu.memory_space<vmem>>, %arg7: memref<512x512xbf16, #tpu.memory_space<vmem>>, %arg8: memref<1x512xf32, #tpu.memory_space<vmem>>, %arg9: memref<1x512xf32, #tpu.memory_space<vmem>>, %arg10: memref<64x512xf32, #tpu.memory_space<vmem>>) attributes {dimension_semantics = [], scalar_prefetch = 0 : i64, scratch_operands = 0 : i64, tpu.core_type = #tpu.core_type<tc>} {
    %c0 = arith.constant 0 : index
    %c0_0 = arith.constant 0 : index
    %0 = vector.load %arg0[%c0, %c0_0] : memref<64x128xbf16, #tpu.memory_space<vmem>>, vector<64x128xbf16>
    %c0_1 = arith.constant 0 : index
    %c0_2 = arith.constant 0 : index
    %1 = vector.load %arg1[%c0_1, %c0_2] : memref<128x512xbf16, #tpu.memory_space<vmem>>, vector<128x512xbf16>
    %cst = arith.constant dense<0.000000e+00> : vector<64x512xf32>
    %2 = tpu.matmul %0, %1, %cst {dimension_numbers = #tpu.dot_dimension_numbers<[1], [0], [0], [1], [0, 0, 1, 1], [], []>} : vector<64x128xbf16>, vector<128x512xbf16>, vector<64x512xf32> -> vector<64x512xf32>
    %c0_3 = arith.constant 0 : index
    %c0_4 = arith.constant 0 : index
    %3 = vector.load %arg2[%c0_3, %c0_4] : memref<1x512xf32, #tpu.memory_space<vmem>>, vector<1x512xf32>
    %c0_5 = arith.constant 0 : index
    %c0_6 = arith.constant 0 : index
    %4 = vector.load %arg3[%c0_5, %c0_6] : memref<1x512xf32, #tpu.memory_space<vmem>>, vector<1x512xf32>
    %cst_7 = arith.constant dense<0.000000e+00> : vector<512xf32>
    %5 = vector.multi_reduction <add>, %2, %cst_7 [0] : vector<64x512xf32> to vector<512xf32>
    %6 = vector.shape_cast %5 : vector<512xf32> to vector<1x512xf32>
    %cst_8 = arith.constant 6.400000e+01 : f32
    %7 = vector.broadcast %cst_8 : f32 to vector<1x512xf32>
    %8 = arith.divf %6, %7 : vector<1x512xf32>
    %9 = vector.broadcast %8 : vector<1x512xf32> to vector<64x512xf32>
    %10 = arith.subf %2, %9 : vector<64x512xf32>
    %11 = arith.mulf %10, %10 : vector<64x512xf32>
    %cst_9 = arith.constant dense<0.000000e+00> : vector<512xf32>
    %12 = vector.multi_reduction <add>, %11, %cst_9 [0] : vector<64x512xf32> to vector<512xf32>
    %13 = vector.shape_cast %12 : vector<512xf32> to vector<1x512xf32>
    %cst_10 = arith.constant 6.400000e+01 : f32
    %14 = vector.broadcast %cst_10 : f32 to vector<1x512xf32>
    %15 = arith.divf %13, %14 : vector<1x512xf32>
    %16 = vector.broadcast %8 : vector<1x512xf32> to vector<64x512xf32>
    %17 = arith.subf %2, %16 : vector<64x512xf32>
    %cst_11 = arith.constant 9.99999974E-6 : f32
    %18 = vector.broadcast %cst_11 : f32 to vector<1x512xf32>
    %19 = arith.addf %15, %18 : vector<1x512xf32>
    %20 = math.rsqrt %19 : vector<1x512xf32>
    %21 = vector.broadcast %20 : vector<1x512xf32> to vector<64x512xf32>
    %22 = arith.mulf %17, %21 : vector<64x512xf32>
    %23 = vector.broadcast %3 : vector<1x512xf32> to vector<64x512xf32>
    %24 = arith.mulf %22, %23 : vector<64x512xf32>
    %25 = vector.broadcast %4 : vector<1x512xf32> to vector<64x512xf32>
    %26 = arith.addf %24, %25 : vector<64x512xf32>
    %cst_12 = arith.constant 0.000000e+00 : f32
    %27 = vector.broadcast %cst_12 : f32 to vector<64x512xf32>
    %28 = arith.maximumf %26, %27 : vector<64x512xf32>
    %29 = arith.truncf %28 : vector<64x512xf32> to vector<64x512xbf16>
    %c0_13 = arith.constant 0 : index
    %c0_14 = arith.constant 0 : index
    %30 = vector.load %arg4[%c0_13, %c0_14] : memref<512x512xbf16, #tpu.memory_space<vmem>>, vector<512x512xbf16>
    %cst_15 = arith.constant dense<0.000000e+00> : vector<64x512xf32>
    %31 = tpu.matmul %29, %30, %cst_15 {dimension_numbers = #tpu.dot_dimension_numbers<[1], [0], [0], [1], [0, 0, 1, 1], [], []>} : vector<64x512xbf16>, vector<512x512xbf16>, vector<64x512xf32> -> vector<64x512xf32>
    %c0_16 = arith.constant 0 : index
    %c0_17 = arith.constant 0 : index
    %32 = vector.load %arg5[%c0_16, %c0_17] : memref<1x512xf32, #tpu.memory_space<vmem>>, vector<1x512xf32>
    %c0_18 = arith.constant 0 : index
    %c0_19 = arith.constant 0 : index
    %33 = vector.load %arg6[%c0_18, %c0_19] : memref<1x512xf32, #tpu.memory_space<vmem>>, vector<1x512xf32>
    %cst_20 = arith.constant dense<0.000000e+00> : vector<512xf32>
    %34 = vector.multi_reduction <add>, %31, %cst_20 [0] : vector<64x512xf32> to vector<512xf32>
    %35 = vector.shape_cast %34 : vector<512xf32> to vector<1x512xf32>
    %cst_21 = arith.constant 6.400000e+01 : f32
    %36 = vector.broadcast %cst_21 : f32 to vector<1x512xf32>
    %37 = arith.divf %35, %36 : vector<1x512xf32>
    %38 = vector.broadcast %37 : vector<1x512xf32> to vector<64x512xf32>
    %39 = arith.subf %31, %38 : vector<64x512xf32>
    %40 = arith.mulf %39, %39 : vector<64x512xf32>
    %cst_22 = arith.constant dense<0.000000e+00> : vector<512xf32>
    %41 = vector.multi_reduction <add>, %40, %cst_22 [0] : vector<64x512xf32> to vector<512xf32>
    %42 = vector.shape_cast %41 : vector<512xf32> to vector<1x512xf32>
    %cst_23 = arith.constant 6.400000e+01 : f32
    %43 = vector.broadcast %cst_23 : f32 to vector<1x512xf32>
    %44 = arith.divf %42, %43 : vector<1x512xf32>
    %45 = vector.broadcast %37 : vector<1x512xf32> to vector<64x512xf32>
    %46 = arith.subf %31, %45 : vector<64x512xf32>
    %cst_24 = arith.constant 9.99999974E-6 : f32
    %47 = vector.broadcast %cst_24 : f32 to vector<1x512xf32>
    %48 = arith.addf %44, %47 : vector<1x512xf32>
    %49 = math.rsqrt %48 : vector<1x512xf32>
    %50 = vector.broadcast %49 : vector<1x512xf32> to vector<64x512xf32>
    %51 = arith.mulf %46, %50 : vector<64x512xf32>
    %52 = vector.broadcast %32 : vector<1x512xf32> to vector<64x512xf32>
    %53 = arith.mulf %51, %52 : vector<64x512xf32>
    %54 = vector.broadcast %33 : vector<1x512xf32> to vector<64x512xf32>
    %55 = arith.addf %53, %54 : vector<64x512xf32>
    %cst_25 = arith.constant 0.000000e+00 : f32
    %56 = vector.broadcast %cst_25 : f32 to vector<64x512xf32>
    %57 = arith.maximumf %55, %56 : vector<64x512xf32>
    %58 = arith.truncf %57 : vector<64x512xf32> to vector<64x512xbf16>
    %c0_26 = arith.constant 0 : index
    %c0_27 = arith.constant 0 : index
    %59 = vector.load %arg7[%c0_26, %c0_27] : memref<512x512xbf16, #tpu.memory_space<vmem>>, vector<512x512xbf16>
    %cst_28 = arith.constant dense<0.000000e+00> : vector<64x512xf32>
    %60 = tpu.matmul %58, %59, %cst_28 {dimension_numbers = #tpu.dot_dimension_numbers<[1], [0], [0], [1], [0, 0, 1, 1], [], []>} : vector<64x512xbf16>, vector<512x512xbf16>, vector<64x512xf32> -> vector<64x512xf32>
    %c0_29 = arith.constant 0 : index
    %c0_30 = arith.constant 0 : index
    %61 = vector.load %arg8[%c0_29, %c0_30] : memref<1x512xf32, #tpu.memory_space<vmem>>, vector<1x512xf32>
    %c0_31 = arith.constant 0 : index
    %c0_32 = arith.constant 0 : index
    %62 = vector.load %arg9[%c0_31, %c0_32] : memref<1x512xf32, #tpu.memory_space<vmem>>, vector<1x512xf32>
    %cst_33 = arith.constant dense<0.000000e+00> : vector<512xf32>
    %63 = vector.multi_reduction <add>, %60, %cst_33 [0] : vector<64x512xf32> to vector<512xf32>
    %64 = vector.shape_cast %63 : vector<512xf32> to vector<1x512xf32>
    %cst_34 = arith.constant 6.400000e+01 : f32
    %65 = vector.broadcast %cst_34 : f32 to vector<1x512xf32>
    %66 = arith.divf %64, %65 : vector<1x512xf32>
    %67 = vector.broadcast %66 : vector<1x512xf32> to vector<64x512xf32>
    %68 = arith.subf %60, %67 : vector<64x512xf32>
    %69 = arith.mulf %68, %68 : vector<64x512xf32>
    %cst_35 = arith.constant dense<0.000000e+00> : vector<512xf32>
    %70 = vector.multi_reduction <add>, %69, %cst_35 [0] : vector<64x512xf32> to vector<512xf32>
    %71 = vector.shape_cast %70 : vector<512xf32> to vector<1x512xf32>
    %cst_36 = arith.constant 6.400000e+01 : f32
    %72 = vector.broadcast %cst_36 : f32 to vector<1x512xf32>
    %73 = arith.divf %71, %72 : vector<1x512xf32>
    %74 = vector.broadcast %66 : vector<1x512xf32> to vector<64x512xf32>
    %75 = arith.subf %60, %74 : vector<64x512xf32>
    %cst_37 = arith.constant 9.99999974E-6 : f32
    %76 = vector.broadcast %cst_37 : f32 to vector<1x512xf32>
    %77 = arith.addf %73, %76 : vector<1x512xf32>
    %78 = math.rsqrt %77 : vector<1x512xf32>
    %79 = vector.broadcast %78 : vector<1x512xf32> to vector<64x512xf32>
    %80 = arith.mulf %75, %79 : vector<64x512xf32>
    %81 = vector.broadcast %61 : vector<1x512xf32> to vector<64x512xf32>
    %82 = arith.mulf %80, %81 : vector<64x512xf32>
    %83 = vector.broadcast %62 : vector<1x512xf32> to vector<64x512xf32>
    %84 = arith.addf %82, %83 : vector<64x512xf32>
    %c0_38 = arith.constant 0 : index
    %c0_39 = arith.constant 0 : index
    %85 = vector.load %arg10[%c0_38, %c0_39] : memref<64x512xf32, #tpu.memory_space<vmem>>, vector<64x512xf32>
    tpu.vector_store %arg10[%c0_38, %c0_39], %84 {strides = array<i32>} : memref<64x512xf32, #tpu.memory_space<vmem>>, vector<64x512xf32>,
    return
  }
}

</mosaic_0001>

<llo_original>
// kernel: tpu_custom_call.1
$region0: #{tpu_custom_call.1}
  #allocation0 [shape = 'u32[]', space=smem, size = 0x4, offset = 0x4, fixed_abs, tag = 'smem constant byte address 0x4 - core index']
  #allocation1 [shape = 'u32[72,128]{1,0:T(1,128)}', space=vmem, size = 0x9000, scoped, tag = 'internal scratch']
  %s0 = inlined_call_operand.hbm [shape: bf16[64,128], index: 0, kind: input, shape index: {}]
  %s1 = inlined_call_operand.hbm [shape: bf16[128,512], index: 1, kind: input, shape index: {}]
  %s2 = inlined_call_operand.hbm [shape: f32[1,512], index: 2, kind: input, shape index: {}]
  %s3 = inlined_call_operand.hbm [shape: f32[1,512], index: 3, kind: input, shape index: {}]
  %s4 = inlined_call_operand.hbm [shape: bf16[512,512], index: 4, kind: input, shape index: {}]
  %s5 = inlined_call_operand.vmem [shape: f32[1,512], index: 5, kind: input, shape index: {}]
  %s6 = inlined_call_operand.hbm [shape: f32[1,512], index: 6, kind: input, shape index: {}]
  %s7 = inlined_call_operand.hbm [shape: bf16[512,512], index: 7, kind: input, shape index: {}]
  %s8 = inlined_call_operand.hbm [shape: f32[1,512], index: 8, kind: input, shape index: {}]
  %s9 = inlined_call_operand.vmem [shape: f32[1,512], index: 9, kind: input, shape index: {}]
  %s10 = inlined_call_operand.hbm [shape: f32[64,512], index: 10, kind: output, shape index: {}]
  %s11 = sld [smem:[#allocation0]]
  $region82: #{tpu_custom_call.1} parent=0
    _
  %s13 = ssub.s32 1, %s11
  %s14 = scalar_select 0, %s13, %s11
  $region1: #{tpu_custom_call.1} parent=0
    #allocation2 [shape = 'u8[16384]{0}', space=vmem, size = 0x4000, scoped, tag = 'input window, operand 0, single buffered']
    #allocation3 [shape = 's32[1]{0}', space=sflag, size = 0x4, scoped, tag = 'scoped memory for tpu_custom_call.1']
    #allocation4 [shape = 's32[1]{0}', space=sflag, size = 0x4, scoped, tag = 'scoped memory for tpu_custom_call.1']
    #allocation5 [shape = 'u8[131072]{0}', space=vmem, size = 0x20000, scoped, tag = 'input window, operand 1, single buffered']
    #allocation6 [shape = 's32[1]{0}', space=sflag, size = 0x4, scoped, tag = 'scoped memory for tpu_custom_call.1']
    #allocation7 [shape = 'u8[2048]{0}', space=vmem, size = 0x800, scoped, tag = 'input window, operand 2, single buffered']
    #allocation8 [shape = 'u8[2048]{0}', space=vmem, size = 0x800, scoped, tag = 'input window, operand 3, single buffered']
    #allocation9 [shape = 's32[1]{0}', space=sflag, size = 0x4, scoped, tag = 'scoped memory for tpu_custom_call.1']
    #allocation10 [shape = 'u8[524288]{0}', space=vmem, size = 0x80000, scoped, tag = 'input window, operand 4, single buffered']
    #allocation11 [shape = 'u8[2048]{0}', space=vmem, size = 0x800, scoped, tag = 'input window, operand 6, single buffered']
    #allocation12 [shape = 's32[1]{0}', space=sflag, size = 0x4, scoped, tag = 'scoped memory for tpu_custom_call.1']
    #allocation13 [shape = 'u8[524288]{0}', space=vmem, size = 0x80000, scoped, tag = 'input window, operand 7, single buffered']
    #allocation14 [shape = 'u8[2048]{0}', space=vmem, size = 0x800, scoped, tag = 'input window, operand 8, single buffered']
    #allocation15 [shape = 's32[1]{0}', space=sflag, size = 0x4, scoped, tag = 'scoped memory for tpu_custom_call.1']
    #allocation16 [shape = 'u8[131072]{0}', space=vmem, size = 0x20000, scoped, tag = 'output window, operand 0, single buffered']
    %15 = vsyncpa [#allocation3], 0
    %16 = vsyncpa [#allocation6], 0
    %17 = vsyncpa [#allocation9], 0
    %18 = vsyncpa [#allocation12], 0
    %19 = vsyncpa [#allocation15], 0
    %20 = vsyncpa [#allocation4], 0
    // Predicated region
    $region2: #{tpu_custom_call.1} parent=1 // pred_check
      _
    $region3: #{tpu_custom_call.1} parent=1 // pred_check_branch
      %22 = sbr.rel (0) target = $region5
    $region4: #{tpu_custom_call.1} parent=1 // pred_region
      %24 = vsyncadd [#allocation3], 0
      %s25 = sshll.u32 %s0, 4
      %s26 = int_to_ptr.hbm [resolvable:$true] %s25
      %s27 = sshll.u32 [#allocation2], 4
      %s28 = int_to_ptr.vmem [resolvable:$true] %s27
      %33 = dma.hbm_to_vmem [thread:$0]  %s26, 512, %s28, [#allocation3], 64, 64, 4
    $region5: #{tpu_custom_call.1} parent=1 // pred_fallthru
      _
    // Predicated region
    $region6: #{tpu_custom_call.1} parent=1 // pred_check
      _
    $region7: #{tpu_custom_call.1} parent=1 // pred_check_branch
      %35 = sbr.rel (0) target = $region9
    $region8: #{tpu_custom_call.1} parent=1 // pred_region
      %37 = vsyncadd [#allocation6], 0
      %s38 = sshll.u32 %s1, 4
      %s39 = int_to_ptr.hbm [resolvable:$true] %s38
      %s40 = sshll.u32 [#allocation5], 4
      %s41 = int_to_ptr.vmem [resolvable:$true] %s40
      %46 = dma.hbm_to_vmem [thread:$0]  %s39, 4096, %s41, [#allocation6], 256, 256, 16
    $region9: #{tpu_custom_call.1} parent=1 // pred_fallthru
      _
    // Predicated region
    $region10: #{tpu_custom_call.1} parent=1 // pred_check
      _
    $region11: #{tpu_custom_call.1} parent=1 // pred_check_branch
      %48 = sbr.rel (0) target = $region13
    $region12: #{tpu_custom_call.1} parent=1 // pred_region
      %50 = vsyncadd [#allocation6], 0
      %s52 = sshll.u32 %s2, 4
      %s53 = int_to_ptr.hbm [resolvable:$true] %s52
      %s54 = sshll.u32 [#allocation7], 4
      %s55 = int_to_ptr.vmem [resolvable:$true] %s54
      %57 = dma.hbm_to_vmem [thread:$0]  %s53, 64, %s55, [#allocation6]
    $region13: #{tpu_custom_call.1} parent=1 // pred_fallthru
      _
    // Predicated region
    $region14: #{tpu_custom_call.1} parent=1 // pred_check
      _
    $region15: #{tpu_custom_call.1} parent=1 // pred_check_branch
      %59 = sbr.rel (0) target = $region17
    $region16: #{tpu_custom_call.1} parent=1 // pred_region
      %61 = vsyncadd [#allocation9], 0
      %s63 = sshll.u32 %s3, 4
      %s64 = int_to_ptr.hbm [resolvable:$true] %s63
      %s65 = sshll.u32 [#allocation8], 4
      %s66 = int_to_ptr.vmem [resolvable:$true] %s65
      %68 = dma.hbm_to_vmem [thread:$0]  %s64, 64, %s66, [#allocation9]
    $region17: #{tpu_custom_call.1} parent=1 // pred_fallthru
      _
    // Predicated region
    $region18: #{tpu_custom_call.1} parent=1 // pred_check
      _
    $region19: #{tpu_custom_call.1} parent=1 // pred_check_branch
      %70 = sbr.rel (0) target = $region21
    $region20: #{tpu_custom_call.1} parent=1 // pred_region
      %72 = vsyncadd [#allocation9], 0
      %s73 = sshll.u32 %s4, 4
      %s74 = int_to_ptr.hbm [resolvable:$true] %s73
      %s75 = sshll.u32 [#allocation10], 4
      %s76 = int_to_ptr.vmem [resolvable:$true] %s75
      %81 = dma.hbm_to_vmem [thread:$0]  %s74, 16384, %s76, [#allocation9], 256, 256, 16
    $region21: #{tpu_custom_call.1} parent=1 // pred_fallthru
      _
    // Predicated region
    $region22: #{tpu_custom_call.1} parent=1 // pred_check
      _
    $region23: #{tpu_custom_call.1} parent=1 // pred_check_branch
      %83 = sbr.rel (0) target = $region25
    $region24: #{tpu_custom_call.1} parent=1 // pred_region
      _
    $region25: #{tpu_custom_call.1} parent=1 // pred_fallthru
      _
    // Predicated region
    $region26: #{tpu_custom_call.1} parent=1 // pred_check
      _
    $region27: #{tpu_custom_call.1} parent=1 // pred_check_branch
      %85 = sbr.rel (0) target = $region29
    $region28: #{tpu_custom_call.1} parent=1 // pred_region
      %87 = vsyncadd [#allocation12], 0
      %s89 = sshll.u32 %s6, 4
      %s90 = int_to_ptr.hbm [resolvable:$true] %s89
      %s91 = sshll.u32 [#allocation11], 4
      %s92 = int_to_ptr.vmem [resolvable:$true] %s91
      %94 = dma.hbm_to_vmem [thread:$0]  %s90, 64, %s92, [#allocation12]
    $region29: #{tpu_custom_call.1} parent=1 // pred_fallthru
      _
    // Predicated region
    $region30: #{tpu_custom_call.1} parent=1 // pred_check
      _
    $region31: #{tpu_custom_call.1} parent=1 // pred_check_branch
      %96 = sbr.rel (0) target = $region33
    $region32: #{tpu_custom_call.1} parent=1 // pred_region
      %98 = vsyncadd [#allocation12], 0
      %s99 = sshll.u32 %s7, 4
      %s100 = int_to_ptr.hbm [resolvable:$true] %s99
      %s101 = sshll.u32 [#allocation13], 4
      %s102 = int_to_ptr.vmem [resolvable:$true] %s101
      %107 = dma.hbm_to_vmem [thread:$0]  %s100, 16384, %s102, [#allocation12], 256, 256, 16
    $region33: #{tpu_custom_call.1} parent=1 // pred_fallthru
      _
    // Predicated region
    $region34: #{tpu_custom_call.1} parent=1 // pred_check
      _
    $region35: #{tpu_custom_call.1} parent=1 // pred_check_branch
      %109 = sbr.rel (0) target = $region37
    $region36: #{tpu_custom_call.1} parent=1 // pred_region
      %111 = vsyncadd [#allocation15], 0
      %s113 = sshll.u32 %s8, 4
      %s114 = int_to_ptr.hbm [resolvable:$true] %s113
      %s115 = sshll.u32 [#allocation14], 4
      %s116 = int_to_ptr.vmem [resolvable:$true] %s115
      %118 = dma.hbm_to_vmem [thread:$0]  %s114, 64, %s116, [#allocation15]
    $region37: #{tpu_custom_call.1} parent=1 // pred_fallthru
      _
    // Predicated region
    $region38: #{tpu_custom_call.1} parent=1 // pred_check
      _
    $region39: #{tpu_custom_call.1} parent=1 // pred_check_branch
      %120 = sbr.rel (0) target = $region41
    $region40: #{tpu_custom_call.1} parent=1 // pred_region
      _
    $region41: #{tpu_custom_call.1} parent=1 // pred_fallthru
      _
    // Predicated region
    $region42: #{tpu_custom_call.1} parent=1 // pred_check
      _
    $region43: #{tpu_custom_call.1} parent=1 // pred_check_branch
      %122 = sbr.rel (0) target = $region45
    $region44: #{tpu_custom_call.1} parent=1 // pred_region
      %124 = dma.done [#allocation3], 512
    $region45: #{tpu_custom_call.1} parent=1 // pred_fallthru
      _
    // Predicated region
    $region46: #{tpu_custom_call.1} parent=1 // pred_check
      _
    $region47: #{tpu_custom_call.1} parent=1 // pred_check_branch
      %126 = sbr.rel (0) target = $region49
    $region48: #{tpu_custom_call.1} parent=1 // pred_region
      %128 = dma.done [#allocation6], 4096
    $region49: #{tpu_custom_call.1} parent=1 // pred_fallthru
      _
    // Predicated region
    $region50: #{tpu_custom_call.1} parent=1 // pred_check
      _
    $region51: #{tpu_custom_call.1} parent=1 // pred_check_branch
      %130 = sbr.rel (0) target = $region53
    $region52: #{tpu_custom_call.1} parent=1 // pred_region
      %132 = dma.done [#allocation6], 64
    $region53: #{tpu_custom_call.1} parent=1 // pred_fallthru
      _
    // Predicated region
    $region54: #{tpu_custom_call.1} parent=1 // pred_check
      _
    $region55: #{tpu_custom_call.1} parent=1 // pred_check_branch
      %134 = sbr.rel (0) target = $region57
    $region56: #{tpu_custom_call.1} parent=1 // pred_region
      %136 = dma.done [#allocation9], 64
    $region57: #{tpu_custom_call.1} parent=1 // pred_fallthru
      _
    // Predicated region
    $region58: #{tpu_custom_call.1} parent=1 // pred_check
      _
    $region59: #{tpu_custom_call.1} parent=1 // pred_check_branch
      %138 = sbr.rel (0) target = $region61
    $region60: #{tpu_custom_call.1} parent=1 // pred_region
      %140 = dma.done [#allocation9], 16384
    $region61: #{tpu_custom_call.1} parent=1 // pred_fallthru
      _
    // Predicated region
    $region62: #{tpu_custom_call.1} parent=1 // pred_check
      _
    $region63: #{tpu_custom_call.1} parent=1 // pred_check_branch
      %142 = sbr.rel (0) target = $region65
    $region64: #{tpu_custom_call.1} parent=1 // pred_region
      %144 = dma.done [#allocation12], 64
    $region65: #{tpu_custom_call.1} parent=1 // pred_fallthru
      _
    // Predicated region
    $region66: #{tpu_custom_call.1} parent=1 // pred_check
      _
    $region67: #{tpu_custom_call.1} parent=1 // pred_check_branch
      %146 = sbr.rel (0) target = $region69
    $region68: #{tpu_custom_call.1} parent=1 // pred_region
      %148 = dma.done [#allocation12], 16384
    $region69: #{tpu_custom_call.1} parent=1 // pred_fallthru
      _
    // Predicated region
    $region70: #{tpu_custom_call.1} parent=1 // pred_check
      _
    $region71: #{tpu_custom_call.1} parent=1 // pred_check_branch
      %150 = sbr.rel (0) target = $region73
    $region72: #{tpu_custom_call.1} parent=1 // pred_region
      %152 = dma.done [#allocation15], 64
    $region73: #{tpu_custom_call.1} parent=1 // pred_fallthru
      _
    %v153 = vld [vmem:[#allocation2] sm:$0xf]
    %v154 = vld [vmem:[#allocation2 + $0x4] sm:$0xf]
    %v155 = vld [vmem:[#allocation2 + $0x8] sm:$0xf]
    %v156 = vld [vmem:[#allocation2 + $0xc] sm:$0xf]
    %v157 = vld [vmem:[#allocation2 + $0x10] sm:$0xf]
    %v158 = vld [vmem:[#allocation2 + $0x14] sm:$0xf]
    %v159 = vld [vmem:[#allocation2 + $0x18] sm:$0xf]
    %v160 = vld [vmem:[#allocation2 + $0x1c] sm:$0xf]
    %v161 = vld [vmem:[#allocation5] sm:$0xff]
    %v162 = vld [vmem:[#allocation5 + $0x8] sm:$0xff]
    %v163 = vld [vmem:[#allocation5 + $0x10] sm:$0xff]
    %v164 = vld [vmem:[#allocation5 + $0x18] sm:$0xff]
    %v165 = vld [vmem:[#allocation5 + $0x20] sm:$0xff]
    %v166 = vld [vmem:[#allocation5 + $0x28] sm:$0xff]
    %v167 = vld [vmem:[#allocation5 + $0x30] sm:$0xff]
    %v168 = vld [vmem:[#allocation5 + $0x38] sm:$0xff]
    %v169 = vld [vmem:[#allocation5 + $0x40] sm:$0xff]
    %v170 = vld [vmem:[#allocation5 + $0x48] sm:$0xff]
    %v171 = vld [vmem:[#allocation5 + $0x50] sm:$0xff]
    %v172 = vld [vmem:[#allocation5 + $0x58] sm:$0xff]
    %v173 = vld [vmem:[#allocation5 + $0x60] sm:$0xff]
    %v174 = vld [vmem:[#allocation5 + $0x68] sm:$0xff]
    %v175 = vld [vmem:[#allocation5 + $0x70] sm:$0xff]
    %v176 = vld [vmem:[#allocation5 + $0x78] sm:$0xff]
    %v177 = vld [vmem:[#allocation5 + $0x80] sm:$0xff]
    %v178 = vld [vmem:[#allocation5 + $0x88] sm:$0xff]
    %v179 = vld [vmem:[#allocation5 + $0x90] sm:$0xff]
    %v180 = vld [vmem:[#allocation5 + $0x98] sm:$0xff]
    %v181 = vld [vmem:[#allocation5 + $0xa0] sm:$0xff]
    %v182 = vld [vmem:[#allocation5 + $0xa8] sm:$0xff]
    %v183 = vld [vmem:[#allocation5 + $0xb0] sm:$0xff]
    %v184 = vld [vmem:[#allocation5 + $0xb8] sm:$0xff]
    %v185 = vld [vmem:[#allocation5 + $0xc0] sm:$0xff]
    %v186 = vld [vmem:[#allocation5 + $0xc8] sm:$0xff]
    %v187 = vld [vmem:[#allocation5 + $0xd0] sm:$0xff]
    %v188 = vld [vmem:[#allocation5 + $0xd8] sm:$0xff]
    %v189 = vld [vmem:[#allocation5 + $0xe0] sm:$0xff]
    %v190 = vld [vmem:[#allocation5 + $0xe8] sm:$0xff]
    %v191 = vld [vmem:[#allocation5 + $0xf0] sm:$0xff]
    %v192 = vld [vmem:[#allocation5 + $0xf8] sm:$0xff]
    %v201 = vunpack.c.l.b16 %v153
    %v202 = vunpack.c.l.b16 %v154
    %v203 = vunpack.c.l.b16 %v155
    %v204 = vunpack.c.l.b16 %v156
    %v205 = vunpack.c.l.b16 %v157
    %v206 = vunpack.c.l.b16 %v158
    %v207 = vunpack.c.l.b16 %v159
    %v208 = vunpack.c.l.b16 %v160
    %v209 = vpack.c.b16 %v202, %v201
    %v210 = vpack.c.b16 %v204, %v203
    %v211 = vpack.c.b16 %v206, %v205
    %v212 = vpack.c.b16 %v208, %v207
    %v249 = vunpack.c.l.b16 %v161
    %v250 = vunpack.c.h.b16 %v161
    %v251 = vunpack.c.l.b16 %v162
    %v252 = vunpack.c.h.b16 %v162
    %v253 = vunpack.c.l.b16 %v163
    %v254 = vunpack.c.h.b16 %v163
    %v255 = vunpack.c.l.b16 %v164
    %v256 = vunpack.c.h.b16 %v164
    %v257 = vunpack.c.l.b16 %v165
    %v258 = vunpack.c.h.b16 %v165
    %v259 = vunpack.c.l.b16 %v166
    %v260 = vunpack.c.h.b16 %v166
    %v261 = vunpack.c.l.b16 %v167
    %v262 = vunpack.c.h.b16 %v167
    %v263 = vunpack.c.l.b16 %v168
    %v264 = vunpack.c.h.b16 %v168
    %v265 = vunpack.c.l.b16 %v169
    %v266 = vunpack.c.h.b16 %v169
    %v267 = vunpack.c.l.b16 %v170
    %v268 = vunpack.c.h.b16 %v170
    %v269 = vunpack.c.l.b16 %v171
    %v270 = vunpack.c.h.b16 %v171
    %v271 = vunpack.c.l.b16 %v172
    %v272 = vunpack.c.h.b16 %v172
    %v273 = vunpack.c.l.b16 %v173
    %v274 = vunpack.c.h.b16 %v173
    %v275 = vunpack.c.l.b16 %v174
    %v276 = vunpack.c.h.b16 %v174
    %v277 = vunpack.c.l.b16 %v175
    %v278 = vunpack.c.h.b16 %v175
    %v279 = vunpack.c.l.b16 %v176
    %v280 = vunpack.c.h.b16 %v176
    %v281 = vunpack.c.l.b16 %v177
    %v282 = vunpack.c.h.b16 %v177
    %v283 = vunpack.c.l.b16 %v178
    %v284 = vunpack.c.h.b16 %v178
    %v285 = vunpack.c.l.b16 %v179
    %v286 = vunpack.c.h.b16 %v179
    %v287 = vunpack.c.l.b16 %v180
    %v288 = vunpack.c.h.b16 %v180
    %v289 = vunpack.c.l.b16 %v181
    %v290 = vunpack.c.h.b16 %v181
    %v291 = vunpack.c.l.b16 %v182
    %v292 = vunpack.c.h.b16 %v182
    %v293 = vunpack.c.l.b16 %v183
    %v294 = vunpack.c.h.b16 %v183
    %v295 = vunpack.c.l.b16 %v184
    %v296 = vunpack.c.h.b16 %v184
    %v297 = vunpack.c.l.b16 %v185
    %v298 = vunpack.c.h.b16 %v185
    %v299 = vunpack.c.l.b16 %v186
    %v300 = vunpack.c.h.b16 %v186
    %v301 = vunpack.c.l.b16 %v187
    %v302 = vunpack.c.h.b16 %v187
    %v303 = vunpack.c.l.b16 %v188
    %v304 = vunpack.c.h.b16 %v188
    %v305 = vunpack.c.l.b16 %v189
    %v306 = vunpack.c.h.b16 %v189
    %v307 = vunpack.c.l.b16 %v190
    %v308 = vunpack.c.h.b16 %v190
    %v309 = vunpack.c.l.b16 %v191
    %v310 = vunpack.c.h.b16 %v191
    %v311 = vunpack.c.l.b16 %v192
    %v312 = vunpack.c.h.b16 %v192
    %v313 = vpack.c.b16 %v253, %v249
    %v314 = vpack.c.b16 %v254, %v250
    %v315 = vpack.c.b16 %v255, %v251
    %v316 = vpack.c.b16 %v256, %v252
    %v317 = vpack.c.b16 %v261, %v257
    %v318 = vpack.c.b16 %v262, %v258
    %v319 = vpack.c.b16 %v263, %v259
    %v320 = vpack.c.b16 %v264, %v260
    %v321 = vpack.c.b16 %v269, %v265
    %v322 = vpack.c.b16 %v270, %v266
    %v323 = vpack.c.b16 %v271, %v267
    %v324 = vpack.c.b16 %v272, %v268
    %v325 = vpack.c.b16 %v277, %v273
    %v326 = vpack.c.b16 %v278, %v274
    %v327 = vpack.c.b16 %v279, %v275
    %v328 = vpack.c.b16 %v280, %v276
    %v329 = vpack.c.b16 %v285, %v281
    %v330 = vpack.c.b16 %v286, %v282
    %v331 = vpack.c.b16 %v287, %v283
    %v332 = vpack.c.b16 %v288, %v284
    %v333 = vpack.c.b16 %v293, %v289
    %v334 = vpack.c.b16 %v294, %v290
    %v335 = vpack.c.b16 %v295, %v291
    %v336 = vpack.c.b16 %v296, %v292
    %v337 = vpack.c.b16 %v301, %v297
    %v338 = vpack.c.b16 %v302, %v298
    %v339 = vpack.c.b16 %v303, %v299
    %v340 = vpack.c.b16 %v304, %v300
    %v341 = vpack.c.b16 %v309, %v305
    %v342 = vpack.c.b16 %v310, %v306
    %v343 = vpack.c.b16 %v311, %v307
    %v344 = vpack.c.b16 %v312, %v308
    %377 = vmatpush.bf16.msra.mxu0 %v341
    %378 = vmatpush.bf16.msra.mxu0 %v337
    %379 = vmatpush.bf16.msra.mxu0 %v333
    %380 = vmatpush.bf16.msra.mxu0 %v329
    %381 = vmatpush.bf16.msra.mxu0 %v325
    %382 = vmatpush.bf16.msra.mxu0 %v321
    %383 = vmatpush.bf16.msra.mxu0 %v317
    %384 = vmatpush.bf16.msra.mxu0 %v313
    %385 = vmatmul.bf16.gmra.mxu0 %v209
    %v386 = vpop.f32.mrf.mxu0
    %v387 = vadd.f32 0.0, %v386
    %v388 = vpop.f32.mrf.mxu0
    %v389 = vadd.f32 0.0, %v388
    %390 = vmatmul.bf16.gmra.mxu0 %v210
    %v391 = vpop.f32.mrf.mxu0
    %v392 = vadd.f32 0.0, %v391
    %v393 = vpop.f32.mrf.mxu0
    %v394 = vadd.f32 0.0, %v393
    %395 = vmatmul.bf16.gmra.mxu0 %v211
    %v396 = vpop.f32.mrf.mxu0
    %v397 = vadd.f32 0.0, %v396
    %v398 = vpop.f32.mrf.mxu0
    %v399 = vadd.f32 0.0, %v398
    %400 = vmatmul.bf16.gmra.mxu0 %v212
    %v401 = vpop.f32.mrf.mxu0
    %v402 = vadd.f32 0.0, %v401
    %v403 = vpop.f32.mrf.mxu0
    %v404 = vadd.f32 0.0, %v403
    %405 = vdwg.mxu0
    %406 = vmatpush.bf16.msra.mxu0 %v342
    %407 = vmatpush.bf16.msra.mxu0 %v338
    %408 = vmatpush.bf16.msra.mxu0 %v334
    %409 = vmatpush.bf16.msra.mxu0 %v330
    %410 = vmatpush.bf16.msra.mxu0 %v326
    %411 = vmatpush.bf16.msra.mxu0 %v322
    %412 = vmatpush.bf16.msra.mxu0 %v318
    %413 = vmatpush.bf16.msra.mxu0 %v314
    %414 = vmatmul.bf16.gmra.mxu0 %v209
    %v415 = vpop.f32.mrf.mxu0
    %v416 = vadd.f32 0.0, %v415
    %v417 = vpop.f32.mrf.mxu0
    %v418 = vadd.f32 0.0, %v417
    %419 = vmatmul.bf16.gmra.mxu0 %v210
    %v420 = vpop.f32.mrf.mxu0
    %v421 = vadd.f32 0.0, %v420
    %v422 = vpop.f32.mrf.mxu0
    %v423 = vadd.f32 0.0, %v422
    %424 = vmatmul.bf16.gmra.mxu0 %v211
    %v425 = vpop.f32.mrf.mxu0
    %v426 = vadd.f32 0.0, %v425
    %v427 = vpop.f32.mrf.mxu0
    %v428 = vadd.f32 0.0, %v427
    %429 = vmatmul.bf16.gmra.mxu0 %v212
    %v430 = vpop.f32.mrf.mxu0
    %v431 = vadd.f32 0.0, %v430
    %v432 = vpop.f32.mrf.mxu0
    %v433 = vadd.f32 0.0, %v432
    %434 = vdwg.mxu0
    %435 = vmatpush.bf16.msra.mxu0 %v343
    %436 = vmatpush.bf16.msra.mxu0 %v339
    %437 = vmatpush.bf16.msra.mxu0 %v335
    %438 = vmatpush.bf16.msra.mxu0 %v331
    %439 = vmatpush.bf16.msra.mxu0 %v327
    %440 = vmatpush.bf16.msra.mxu0 %v323
    %441 = vmatpush.bf16.msra.mxu0 %v319
    %442 = vmatpush.bf16.msra.mxu0 %v315
    %443 = vmatmul.bf16.gmra.mxu0 %v209
    %v444 = vpop.f32.mrf.mxu0
    %v445 = vadd.f32 0.0, %v444
    %v446 = vpop.f32.mrf.mxu0
    %v447 = vadd.f32 0.0, %v446
    %448 = vmatmul.bf16.gmra.mxu0 %v210
    %v449 = vpop.f32.mrf.mxu0
    %v450 = vadd.f32 0.0, %v449
    %v451 = vpop.f32.mrf.mxu0
    %v452 = vadd.f32 0.0, %v451
    %453 = vmatmul.bf16.gmra.mxu0 %v211
    %v454 = vpop.f32.mrf.mxu0
    %v455 = vadd.f32 0.0, %v454
    %v456 = vpop.f32.mrf.mxu0
    %v457 = vadd.f32 0.0, %v456
    %458 = vmatmul.bf16.gmra.mxu0 %v212
    %v459 = vpop.f32.mrf.mxu0
    %v460 = vadd.f32 0.0, %v459
    %v461 = vpop.f32.mrf.mxu0
    %v462 = vadd.f32 0.0, %v461
    %463 = vdwg.mxu0
    %464 = vmatpush.bf16.msra.mxu0 %v344
    %465 = vmatpush.bf16.msra.mxu0 %v340
    %466 = vmatpush.bf16.msra.mxu0 %v336
    %467 = vmatpush.bf16.msra.mxu0 %v332
    %468 = vmatpush.bf16.msra.mxu0 %v328
    %469 = vmatpush.bf16.msra.mxu0 %v324
    %470 = vmatpush.bf16.msra.mxu0 %v320
    %471 = vmatpush.bf16.msra.mxu0 %v316
    %472 = vmatmul.bf16.gmra.mxu0 %v209
    %v473 = vpop.f32.mrf.mxu0
    %v474 = vadd.f32 0.0, %v473
    %v475 = vpop.f32.mrf.mxu0
    %v476 = vadd.f32 0.0, %v475
    %477 = vmatmul.bf16.gmra.mxu0 %v210
    %v478 = vpop.f32.mrf.mxu0
    %v479 = vadd.f32 0.0, %v478
    %v480 = vpop.f32.mrf.mxu0
    %v481 = vadd.f32 0.0, %v480
    %482 = vmatmul.bf16.gmra.mxu0 %v211
    %v483 = vpop.f32.mrf.mxu0
    %v484 = vadd.f32 0.0, %v483
    %v485 = vpop.f32.mrf.mxu0
    %v486 = vadd.f32 0.0, %v485
    %487 = vmatmul.bf16.gmra.mxu0 %v212
    %v488 = vpop.f32.mrf.mxu0
    %v489 = vadd.f32 0.0, %v488
    %v490 = vpop.f32.mrf.mxu0
    %v491 = vadd.f32 0.0, %v490
    %492 = vdwg.mxu0
    %v493 = vld [vmem:[#allocation7] sm:$0xf]
    %v494 = vld [vmem:[#allocation8] sm:$0xf]
    %v495 = vadd.f32 %v387, %v389
    %v496 = vadd.f32 %v495, %v392
    %v497 = vadd.f32 %v496, %v394
    %v498 = vadd.f32 %v497, %v397
    %v499 = vadd.f32 %v498, %v399
    %v500 = vadd.f32 %v499, %v402
    %v501 = vadd.f32 %v500, %v404
    %v502 = vrot.slane %v501, 4
    %v503 = vadd.f32 %v501, %v502
    %v504 = vrot.slane %v503, 2
    %v505 = vadd.f32 %v503, %v504
    %v506 = vrot.slane %v505, 1
    %v507 = vadd.f32 %v505, %v506
    %v508 = vadd.f32 %v416, %v418
    %v509 = vadd.f32 %v508, %v421
    %v510 = vadd.f32 %v509, %v423
    %v511 = vadd.f32 %v510, %v426
    %v512 = vadd.f32 %v511, %v428
    %v513 = vadd.f32 %v512, %v431
    %v514 = vadd.f32 %v513, %v433
    %v515 = vrot.slane %v514, 4
    %v516 = vadd.f32 %v514, %v515
    %v517 = vrot.slane %v516, 2
    %v518 = vadd.f32 %v516, %v517
    %v519 = vrot.slane %v518, 1
    %v520 = vadd.f32 %v518, %v519
    %v521 = vadd.f32 %v445, %v447
    %v522 = vadd.f32 %v521, %v450
    %v523 = vadd.f32 %v522, %v452
    %v524 = vadd.f32 %v523, %v455
    %v525 = vadd.f32 %v524, %v457
    %v526 = vadd.f32 %v525, %v460
    %v527 = vadd.f32 %v526, %v462
    %v528 = vrot.slane %v527, 4
    %v529 = vadd.f32 %v527, %v528
    %v530 = vrot.slane %v529, 2
    %v531 = vadd.f32 %v529, %v530
    %v532 = vrot.slane %v531, 1
    %v533 = vadd.f32 %v531, %v532
    %v534 = vadd.f32 %v474, %v476
    %v535 = vadd.f32 %v534, %v479
    %v536 = vadd.f32 %v535, %v481
    %v537 = vadd.f32 %v536, %v484
    %v538 = vadd.f32 %v537, %v486
    %v539 = vadd.f32 %v538, %v489
    %v540 = vadd.f32 %v539, %v491
    %v541 = vrot.slane %v540, 4
    %v542 = vadd.f32 %v540, %v541
    %v543 = vrot.slane %v542, 2
    %v544 = vadd.f32 %v542, %v543
    %v545 = vrot.slane %v544, 1
    %v546 = vadd.f32 %v544, %v545
    %v547 = vrcp.pop 64.0
    %v548 = vmul.f32 64.0, %v547
    %v549 = vsub.f32 1.0, %v548
    %v550 = vmul.f32 %v547, %v549
    %v551 = vadd.f32 %v547, %v550
    %vm552 = vweird.f32 %v547
    %v553 = vsel %vm552, %v547, %v551
    %v554 = vmul.f32 %v507, %v553
    %v555 = vmul.f32 %v520, %v553
    %v556 = vmul.f32 %v533, %v553
    %v557 = vmul.f32 %v546, %v553
    %v558 = vsub.f32 %v387, %v554
    %v559 = vsub.f32 %v416, %v555
    %v560 = vsub.f32 %v445, %v556
    %v561 = vsub.f32 %v474, %v557
    %v562 = vsub.f32 %v389, %v554
    %v563 = vsub.f32 %v418, %v555
    %v564 = vsub.f32 %v447, %v556
    %v565 = vsub.f32 %v476, %v557
    %v566 = vsub.f32 %v392, %v554
    %v567 = vsub.f32 %v421, %v555
    %v568 = vsub.f32 %v450, %v556
    %v569 = vsub.f32 %v479, %v557
    %v570 = vsub.f32 %v394, %v554
    %v571 = vsub.f32 %v423, %v555
    %v572 = vsub.f32 %v452, %v556
    %v573 = vsub.f32 %v481, %v557
    %v574 = vsub.f32 %v397, %v554
    %v575 = vsub.f32 %v426, %v555
    %v576 = vsub.f32 %v455, %v556
    %v577 = vsub.f32 %v484, %v557
    %v578 = vsub.f32 %v399, %v554
    %v579 = vsub.f32 %v428, %v555
    %v580 = vsub.f32 %v457, %v556
    %v581 = vsub.f32 %v486, %v557
    %v582 = vsub.f32 %v402, %v554
    %v583 = vsub.f32 %v431, %v555
    %v584 = vsub.f32 %v460, %v556
    %v585 = vsub.f32 %v489, %v557
    %v586 = vsub.f32 %v404, %v554
    %v587 = vsub.f32 %v433, %v555
    %v588 = vsub.f32 %v462, %v556
    %v589 = vsub.f32 %v491, %v557
    %v590 = vmul.f32 %v558, %v558
    %v591 = vmul.f32 %v559, %v559
    %v592 = vmul.f32 %v560, %v560
    %v593 = vmul.f32 %v561, %v561
    %v594 = vmul.f32 %v562, %v562
    %v595 = vmul.f32 %v563, %v563
    %v596 = vmul.f32 %v564, %v564
    %v597 = vmul.f32 %v565, %v565
    %v598 = vmul.f32 %v566, %v566
    %v599 = vmul.f32 %v567, %v567
    %v600 = vmul.f32 %v568, %v568
    %v601 = vmul.f32 %v569, %v569
    %v602 = vmul.f32 %v570, %v570
    %v603 = vmul.f32 %v571, %v571
    %v604 = vmul.f32 %v572, %v572
    %v605 = vmul.f32 %v573, %v573
    %v606 = vmul.f32 %v574, %v574
    %v607 = vmul.f32 %v575, %v575
    %v608 = vmul.f32 %v576, %v576
    %v609 = vmul.f32 %v577, %v577
    %v610 = vmul.f32 %v578, %v578
    %v611 = vmul.f32 %v579, %v579
    %v612 = vmul.f32 %v580, %v580
    %v613 = vmul.f32 %v581, %v581
    %v614 = vmul.f32 %v582, %v582
    %v615 = vmul.f32 %v583, %v583
    %v616 = vmul.f32 %v584, %v584
    %v617 = vmul.f32 %v585, %v585
    %v618 = vmul.f32 %v586, %v586
    %v619 = vmul.f32 %v587, %v587
    %v620 = vmul.f32 %v588, %v588
    %v621 = vmul.f32 %v589, %v589
    %v622 = vadd.f32 %v590, %v594
    %v623 = vadd.f32 %v622, %v598
    %v624 = vadd.f32 %v623, %v602
    %v625 = vadd.f32 %v624, %v606
    %v626 = vadd.f32 %v625, %v610
    %v627 = vadd.f32 %v626, %v614
    %v628 = vadd.f32 %v627, %v618
    %v629 = vrot.slane %v628, 4
    %v630 = vadd.f32 %v628, %v629
    %v631 = vrot.slane %v630, 2
    %v632 = vadd.f32 %v630, %v631
    %v633 = vrot.slane %v632, 1
    %v634 = vadd.f32 %v632, %v633
    %v635 = vadd.f32 %v591, %v595
    %v636 = vadd.f32 %v635, %v599
    %v637 = vadd.f32 %v636, %v603
    %v638 = vadd.f32 %v637, %v607
    %v639 = vadd.f32 %v638, %v611
    %v640 = vadd.f32 %v639, %v615
    %v641 = vadd.f32 %v640, %v619
    %v642 = vrot.slane %v641, 4
    %v643 = vadd.f32 %v641, %v642
    %v644 = vrot.slane %v643, 2
    %v645 = vadd.f32 %v643, %v644
    %v646 = vrot.slane %v645, 1
    %v647 = vadd.f32 %v645, %v646
    %v648 = vadd.f32 %v592, %v596
    %v649 = vadd.f32 %v648, %v600
    %v650 = vadd.f32 %v649, %v604
    %v651 = vadd.f32 %v650, %v608
    %v652 = vadd.f32 %v651, %v612
    %v653 = vadd.f32 %v652, %v616
    %v654 = vadd.f32 %v653, %v620
    %v655 = vrot.slane %v654, 4
    %v656 = vadd.f32 %v654, %v655
    %v657 = vrot.slane %v656, 2
    %v658 = vadd.f32 %v656, %v657
    %v659 = vrot.slane %v658, 1
    %v660 = vadd.f32 %v658, %v659
    %v661 = vadd.f32 %v593, %v597
    %v662 = vadd.f32 %v661, %v601
    %v663 = vadd.f32 %v662, %v605
    %v664 = vadd.f32 %v663, %v609
    %v665 = vadd.f32 %v664, %v613
    %v666 = vadd.f32 %v665, %v617
    %v667 = vadd.f32 %v666, %v621
    %v668 = vrot.slane %v667, 4
    %v669 = vadd.f32 %v667, %v668
    %v670 = vrot.slane %v669, 2
    %v671 = vadd.f32 %v669, %v670
    %v672 = vrot.slane %v671, 1
    %v673 = vadd.f32 %v671, %v672
    %v674 = vmul.f32 %v634, %v553
    %v675 = vmul.f32 %v647, %v553
    %v676 = vmul.f32 %v660, %v553
    %v677 = vmul.f32 %v673, %v553
    %v678 = vadd.f32 %v674, 1e-05
    %v679 = vadd.f32 %v675, 1e-05
    %v680 = vadd.f32 %v676, 1e-05
    %v681 = vadd.f32 %v677, 1e-05
    %v682 = vrsqrt.pop %v678
    %v683 = vmul.f32 %v682, %v678
    %v684 = vmul.f32 %v683, %v682
    %v685 = vmul.f32 0.5, %v684
    %v686 = vsub.f32 1.5, %v685
    %v687 = vmul.f32 %v682, %v686
    %vm688 = vweird.f32 %v678
    %vm689 = vweird.f32 %v682
    %vm690 = vmor %vm688, %vm689
    %v691 = vsel %vm690, %v682, %v687
    %v692 = vrsqrt.pop %v679
    %v693 = vmul.f32 %v692, %v679
    %v694 = vmul.f32 %v693, %v692
    %v695 = vmul.f32 0.5, %v694
    %v696 = vsub.f32 1.5, %v695
    %v697 = vmul.f32 %v692, %v696
    %vm698 = vweird.f32 %v679
    %vm699 = vweird.f32 %v692
    %vm700 = vmor %vm698, %vm699
    %v701 = vsel %vm700, %v692, %v697
    %v702 = vrsqrt.pop %v680
    %v703 = vmul.f32 %v702, %v680
    %v704 = vmul.f32 %v703, %v702
    %v705 = vmul.f32 0.5, %v704
    %v706 = vsub.f32 1.5, %v705
    %v707 = vmul.f32 %v702, %v706
    %vm708 = vweird.f32 %v680
    %vm709 = vweird.f32 %v702
    %vm710 = vmor %vm708, %vm709
    %v711 = vsel %vm710, %v702, %v707
    %v712 = vrsqrt.pop %v681
    %v713 = vmul.f32 %v712, %v681
    %v714 = vmul.f32 %v713, %v712
    %v715 = vmul.f32 0.5, %v714
    %v716 = vsub.f32 1.5, %v715
    %v717 = vmul.f32 %v712, %v716
    %vm718 = vweird.f32 %v681
    %vm719 = vweird.f32 %v712
    %vm720 = vmor %vm718, %vm719
    %v721 = vsel %vm720, %v712, %v717
    %v722 = vmul.f32 %v558, %v691
    %v723 = vmul.f32 %v559, %v701
    %v724 = vmul.f32 %v560, %v711
    %v725 = vmul.f32 %v561, %v721
    %v726 = vmul.f32 %v562, %v691
    %v727 = vmul.f32 %v563, %v701
    %v728 = vmul.f32 %v564, %v711
    %v729 = vmul.f32 %v565, %v721
    %v730 = vmul.f32 %v566, %v691
    %v731 = vmul.f32 %v567, %v701
    %v732 = vmul.f32 %v568, %v711
    %v733 = vmul.f32 %v569, %v721
    %v734 = vmul.f32 %v570, %v691
    %v735 = vmul.f32 %v571, %v701
    %v736 = vmul.f32 %v572, %v711
    %v737 = vmul.f32 %v573, %v721
    %v738 = vmul.f32 %v574, %v691
    %v739 = vmul.f32 %v575, %v701
    %v740 = vmul.f32 %v576, %v711
    %v741 = vmul.f32 %v577, %v721
    %v742 = vmul.f32 %v578, %v691
    %v743 = vmul.f32 %v579, %v701
    %v744 = vmul.f32 %v580, %v711
    %v745 = vmul.f32 %v581, %v721
    %v746 = vmul.f32 %v582, %v691
    %v747 = vmul.f32 %v583, %v701
    %v748 = vmul.f32 %v584, %v711
    %v749 = vmul.f32 %v585, %v721
    %v750 = vmul.f32 %v586, %v691
    %v751 = vmul.f32 %v587, %v701
    %v752 = vmul.f32 %v588, %v711
    %v753 = vmul.f32 %v589, %v721
    %v755 = vperm.slane %v493, 0
    %v756 = vperm.slane %v493, 1
    %v757 = vperm.slane %v493, 2
    %v758 = vperm.slane %v493, 3
    %v763 = vmul.f32 %v722, %v755
    %v764 = vmul.f32 %v723, %v756
    %v765 = vmul.f32 %v724, %v757
    %v766 = vmul.f32 %v725, %v758
    %v767 = vmul.f32 %v726, %v755
    %v768 = vmul.f32 %v727, %v756
    %v769 = vmul.f32 %v728, %v757
    %v770 = vmul.f32 %v729, %v758
    %v771 = vmul.f32 %v730, %v755
    %v772 = vmul.f32 %v731, %v756
    %v773 = vmul.f32 %v732, %v757
    %v774 = vmul.f32 %v733, %v758
    %v775 = vmul.f32 %v734, %v755
    %v776 = vmul.f32 %v735, %v756
    %v777 = vmul.f32 %v736, %v757
    %v778 = vmul.f32 %v737, %v758
    %v779 = vmul.f32 %v738, %v755
    %v780 = vmul.f32 %v739, %v756
    %v781 = vmul.f32 %v740, %v757
    %v782 = vmul.f32 %v741, %v758
    %v783 = vmul.f32 %v742, %v755
    %v784 = vmul.f32 %v743, %v756
    %v785 = vmul.f32 %v744, %v757
    %v786 = vmul.f32 %v745, %v758
    %v787 = vmul.f32 %v746, %v755
    %v788 = vmul.f32 %v747, %v756
    %v789 = vmul.f32 %v748, %v757
    %v790 = vmul.f32 %v749, %v758
    %v791 = vmul.f32 %v750, %v755
    %v792 = vmul.f32 %v751, %v756
    %v793 = vmul.f32 %v752, %v757
    %v794 = vmul.f32 %v753, %v758
    %v796 = vperm.slane %v494, 0
    %v797 = vperm.slane %v494, 1
    %v798 = vperm.slane %v494, 2
    %v799 = vperm.slane %v494, 3
    %v804 = vadd.f32 %v763, %v796
    %v805 = vadd.f32 %v764, %v797
    %v806 = vadd.f32 %v765, %v798
    %v807 = vadd.f32 %v766, %v799
    %v808 = vadd.f32 %v767, %v796
    %v809 = vadd.f32 %v768, %v797
    %v810 = vadd.f32 %v769, %v798
    %v811 = vadd.f32 %v770, %v799
    %v812 = vadd.f32 %v771, %v796
    %v813 = vadd.f32 %v772, %v797
    %v814 = vadd.f32 %v773, %v798
    %v815 = vadd.f32 %v774, %v799
    %v816 = vadd.f32 %v775, %v796
    %v817 = vadd.f32 %v776, %v797
    %v818 = vadd.f32 %v777, %v798
    %v819 = vadd.f32 %v778, %v799
    %v820 = vadd.f32 %v779, %v796
    %v821 = vadd.f32 %v780, %v797
    %v822 = vadd.f32 %v781, %v798
    %v823 = vadd.f32 %v782, %v799
    %v824 = vadd.f32 %v783, %v796
    %v825 = vadd.f32 %v784, %v797
    %v826 = vadd.f32 %v785, %v798
    %v827 = vadd.f32 %v786, %v799
    %v828 = vadd.f32 %v787, %v796
    %v829 = vadd.f32 %v788, %v797
    %v830 = vadd.f32 %v789, %v798
    %v831 = vadd.f32 %v790, %v799
    %v832 = vadd.f32 %v791, %v796
    %v833 = vadd.f32 %v792, %v797
    %v834 = vadd.f32 %v793, %v798
    %v835 = vadd.f32 %v794, %v799
    %v836 = vmax.f32 %v804, 0.0
    %v837 = vmax.f32 %v805, 0.0
    %v838 = vmax.f32 %v806, 0.0
    %v839 = vmax.f32 %v807, 0.0
    %v840 = vmax.f32 %v808, 0.0
    %v841 = vmax.f32 %v809, 0.0
    %v842 = vmax.f32 %v810, 0.0
    %v843 = vmax.f32 %v811, 0.0
    %v844 = vmax.f32 %v812, 0.0
    %v845 = vmax.f32 %v813, 0.0
    %v846 = vmax.f32 %v814, 0.0
    %v847 = vmax.f32 %v815, 0.0
    %v848 = vmax.f32 %v816, 0.0
    %v849 = vmax.f32 %v817, 0.0
    %v850 = vmax.f32 %v818, 0.0
    %v851 = vmax.f32 %v819, 0.0
    %v852 = vmax.f32 %v820, 0.0
    %v853 = vmax.f32 %v821, 0.0
    %v854 = vmax.f32 %v822, 0.0
    %v855 = vmax.f32 %v823, 0.0
    %v856 = vmax.f32 %v824, 0.0
    %v857 = vmax.f32 %v825, 0.0
    %v858 = vmax.f32 %v826, 0.0
    %v859 = vmax.f32 %v827, 0.0
    %v860 = vmax.f32 %v828, 0.0
    %v861 = vmax.f32 %v829, 0.0
    %v862 = vmax.f32 %v830, 0.0
    %v863 = vmax.f32 %v831, 0.0
    %v864 = vmax.f32 %v832, 0.0
    %v865 = vmax.f32 %v833, 0.0
    %v866 = vmax.f32 %v834, 0.0
    %v867 = vmax.f32 %v835, 0.0
    %v868 = vpack.c.bf16 %v840, %v836
    %v869 = vpack.c.bf16 %v841, %v837
    %v870 = vpack.c.bf16 %v842, %v838
    %v871 = vpack.c.bf16 %v843, %v839
    %v872 = vpack.c.bf16 %v848, %v844
    %v873 = vpack.c.bf16 %v849, %v845
    %v874 = vpack.c.bf16 %v850, %v846
    %v875 = vpack.c.bf16 %v851, %v847
    %v876 = vpack.c.bf16 %v856, %v852
    %v877 = vpack.c.bf16 %v857, %v853
    %v878 = vpack.c.bf16 %v858, %v854
    %v879 = vpack.c.bf16 %v859, %v855
    %v880 = vpack.c.bf16 %v864, %v860
    %v881 = vpack.c.bf16 %v865, %v861
    %v882 = vpack.c.bf16 %v866, %v862
    %v883 = vpack.c.bf16 %v867, %v863
    %v884 = vld [vmem:[#allocation10] sm:$0xff]
    %v885 = vld [vmem:[#allocation10 + $0x8] sm:$0xff]
    %v886 = vld [vmem:[#allocation10 + $0x10] sm:$0xff]
    %v887 = vld [vmem:[#allocation10 + $0x18] sm:$0xff]
    %v888 = vld [vmem:[#allocation10 + $0x20] sm:$0xff]
    %v889 = vld [vmem:[#allocation10 + $0x28] sm:$0xff]
    %v890 = vld [vmem:[#allocation10 + $0x30] sm:$0xff]
    %v891 = vld [vmem:[#allocation10 + $0x38] sm:$0xff]
    %v892 = vld [vmem:[#allocation10 + $0x40] sm:$0xff]
    %v893 = vld [vmem:[#allocation10 + $0x48] sm:$0xff]
    %v894 = vld [vmem:[#allocation10 + $0x50] sm:$0xff]
    %v895 = vld [vmem:[#allocation10 + $0x58] sm:$0xff]
    %v896 = vld [vmem:[#allocation10 + $0x60] sm:$0xff]
    %v897 = vld [vmem:[#allocation10 + $0x68] sm:$0xff]
    %v898 = vld [vmem:[#allocation10 + $0x70] sm:$0xff]
    %v899 = vld [vmem:[#allocation10 + $0x78] sm:$0xff]
    %v900 = vld [vmem:[#allocation10 + $0x80] sm:$0xff]
    %v901 = vld [vmem:[#allocation10 + $0x88] sm:$0xff]
    %v902 = vld [vmem:[#allocation10 + $0x90] sm:$0xff]
    %v903 = vld [vmem:[#allocation10 + $0x98] sm:$0xff]
    %v904 = vld [vmem:[#allocation10 + $0xa0] sm:$0xff]
    %v905 = vld [vmem:[#allocation10 + $0xa8] sm:$0xff]
    %v906 = vld [vmem:[#allocation10 + $0xb0] sm:$0xff]
    %v907 = vld [vmem:[#allocation10 + $0xb8] sm:$0xff]
    %v908 = vld [vmem:[#allocation10 + $0xc0] sm:$0xff]
    %v909 = vld [vmem:[#allocation10 + $0xc8] sm:$0xff]
    %v910 = vld [vmem:[#allocation10 + $0xd0] sm:$0xff]
    %v911 = vld [vmem:[#allocation10 + $0xd8] sm:$0xff]
    %v912 = vld [vmem:[#allocation10 + $0xe0] sm:$0xff]
    %v913 = vld [vmem:[#allocation10 + $0xe8] sm:$0xff]
    %v914 = vld [vmem:[#allocation10 + $0xf0] sm:$0xff]
    %v915 = vld [vmem:[#allocation10 + $0xf8] sm:$0xff]
    %v916 = vld [vmem:[#allocation10 + $0x100] sm:$0xff]
    %v917 = vld [vmem:[#allocation10 + $0x108] sm:$0xff]
    %v918 = vld [vmem:[#allocation10 + $0x110] sm:$0xff]
    %v919 = vld [vmem:[#allocation10 + $0x118] sm:$0xff]
    %v920 = vld [vmem:[#allocation10 + $0x120] sm:$0xff]
    %v921 = vld [vmem:[#allocation10 + $0x128] sm:$0xff]
    %v922 = vld [vmem:[#allocation10 + $0x130] sm:$0xff]
    %v923 = vld [vmem:[#allocation10 + $0x138] sm:$0xff]
    %v924 = vld [vmem:[#allocation10 + $0x140] sm:$0xff]
    %v925 = vld [vmem:[#allocation10 + $0x148] sm:$0xff]
    %v926 = vld [vmem:[#allocation10 + $0x150] sm:$0xff]
    %v927 = vld [vmem:[#allocation10 + $0x158] sm:$0xff]
    %v928 = vld [vmem:[#allocation10 + $0x160] sm:$0xff]
    %v929 = vld [vmem:[#allocation10 + $0x168] sm:$0xff]
    %v930 = vld [vmem:[#allocation10 + $0x170] sm:$0xff]
    %v931 = vld [vmem:[#allocation10 + $0x178] sm:$0xff]
    %v932 = vld [vmem:[#allocation10 + $0x180] sm:$0xff]
    %v933 = vld [vmem:[#allocation10 + $0x188] sm:$0xff]
    %v934 = vld [vmem:[#allocation10 + $0x190] sm:$0xff]
    %v935 = vld [vmem:[#allocation10 + $0x198] sm:$0xff]
    %v936 = vld [vmem:[#allocation10 + $0x1a0] sm:$0xff]
    %v937 = vld [vmem:[#allocation10 + $0x1a8] sm:$0xff]
    %v938 = vld [vmem:[#allocation10 + $0x1b0] sm:$0xff]
    %v939 = vld [vmem:[#allocation10 + $0x1b8] sm:$0xff]
    %v940 = vld [vmem:[#allocation10 + $0x1c0] sm:$0xff]
    %v941 = vld [vmem:[#allocation10 + $0x1c8] sm:$0xff]
    %v942 = vld [vmem:[#allocation10 + $0x1d0] sm:$0xff]
    %v943 = vld [vmem:[#allocation10 + $0x1d8] sm:$0xff]
    %v944 = vld [vmem:[#allocation10 + $0x1e0] sm:$0xff]
    %v945 = vld [vmem:[#allocation10 + $0x1e8] sm:$0xff]
    %v946 = vld [vmem:[#allocation10 + $0x1f0] sm:$0xff]
    %v947 = vld [vmem:[#allocation10 + $0x1f8] sm:$0xff]
    %v948 = vld [vmem:[#allocation10 + $0x200] sm:$0xff]
    %v949 = vld [vmem:[#allocation10 + $0x208] sm:$0xff]
    %v950 = vld [vmem:[#allocation10 + $0x210] sm:$0xff]
    %v951 = vld [vmem:[#allocation10 + $0x218] sm:$0xff]
    %v952 = vld [vmem:[#allocation10 + $0x220] sm:$0xff]
    %v953 = vld [vmem:[#allocation10 + $0x228] sm:$0xff]
    %v954 = vld [vmem:[#allocation10 + $0x230] sm:$0xff]
    %v955 = vld [vmem:[#allocation10 + $0x238] sm:$0xff]
    %v956 = vld [vmem:[#allocation10 + $0x240] sm:$0xff]
    %v957 = vld [vmem:[#allocation10 + $0x248] sm:$0xff]
    %v958 = vld [vmem:[#allocation10 + $0x250] sm:$0xff]
    %v959 = vld [vmem:[#allocation10 + $0x258] sm:$0xff]
    %v960 = vld [vmem:[#allocation10 + $0x260] sm:$0xff]
    %v961 = vld [vmem:[#allocation10 + $0x268] sm:$0xff]
    %v962 = vld [vmem:[#allocation10 + $0x270] sm:$0xff]
    %v963 = vld [vmem:[#allocation10 + $0x278] sm:$0xff]
    %v964 = vld [vmem:[#allocation10 + $0x280] sm:$0xff]
    %v965 = vld [vmem:[#allocation10 + $0x288] sm:$0xff]
    %v966 = vld [vmem:[#allocation10 + $0x290] sm:$0xff]
    %v967 = vld [vmem:[#allocation10 + $0x298] sm:$0xff]
    %v968 = vld [vmem:[#allocation10 + $0x2a0] sm:$0xff]
    %v969 = vld [vmem:[#allocation10 + $0x2a8] sm:$0xff]
    %v970 = vld [vmem:[#allocation10 + $0x2b0] sm:$0xff]
    %v971 = vld [vmem:[#allocation10 + $0x2b8] sm:$0xff]
    %v972 = vld [vmem:[#allocation10 + $0x2c0] sm:$0xff]
    %v973 = vld [vmem:[#allocation10 + $0x2c8] sm:$0xff]
    %v974 = vld [vmem:[#allocation10 + $0x2d0] sm:$0xff]
    %v975 = vld [vmem:[#allocation10 + $0x2d8] sm:$0xff]
    %v976 = vld [vmem:[#allocation10 + $0x2e0] sm:$0xff]
    %v977 = vld [vmem:[#allocation10 + $0x2e8] sm:$0xff]
    %v978 = vld [vmem:[#allocation10 + $0x2f0] sm:$0xff]
    %v979 = vld [vmem:[#allocation10 + $0x2f8] sm:$0xff]
    %v980 = vld [vmem:[#allocation10 + $0x300] sm:$0xff]
    %v981 = vld [vmem:[#allocation10 + $0x308] sm:$0xff]
    %v982 = vld [vmem:[#allocation10 + $0x310] sm:$0xff]
    %v983 = vld [vmem:[#allocation10 + $0x318] sm:$0xff]
    %v984 = vld [vmem:[#allocation10 + $0x320] sm:$0xff]
    %v985 = vld [vmem:[#allocation10 + $0x328] sm:$0xff]
    %v986 = vld [vmem:[#allocation10 + $0x330] sm:$0xff]
    %v987 = vld [vmem:[#allocation10 + $0x338] sm:$0xff]
    %v988 = vld [vmem:[#allocation10 + $0x340] sm:$0xff]
    %v989 = vld [vmem:[#allocation10 + $0x348] sm:$0xff]
    %v990 = vld [vmem:[#allocation10 + $0x350] sm:$0xff]
    %v991 = vld [vmem:[#allocation10 + $0x358] sm:$0xff]
    %v992 = vld [vmem:[#allocation10 + $0x360] sm:$0xff]
    %v993 = vld [vmem:[#allocation10 + $0x368] sm:$0xff]
    %v994 = vld [vmem:[#allocation10 + $0x370] sm:$0xff]
    %v995 = vld [vmem:[#allocation10 + $0x378] sm:$0xff]
    %v996 = vld [vmem:[#allocation10 + $0x380] sm:$0xff]
    %v997 = vld [vmem:[#allocation10 + $0x388] sm:$0xff]
    %v998 = vld [vmem:[#allocation10 + $0x390] sm:$0xff]
    %v999 = vld [vmem:[#allocation10 + $0x398] sm:$0xff]
    %v1000 = vld [vmem:[#allocation10 + $0x3a0] sm:$0xff]
    %v1001 = vld [vmem:[#allocation10 + $0x3a8] sm:$0xff]
    %v1002 = vld [vmem:[#allocation10 + $0x3b0] sm:$0xff]
    %v1003 = vld [vmem:[#allocation10 + $0x3b8] sm:$0xff]
    %v1004 = vld [vmem:[#allocation10 + $0x3c0] sm:$0xff]
    %v1005 = vld [vmem:[#allocation10 + $0x3c8] sm:$0xff]
    %v1006 = vld [vmem:[#allocation10 + $0x3d0] sm:$0xff]
    %v1007 = vld [vmem:[#allocation10 + $0x3d8] sm:$0xff]
    %v1008 = vld [vmem:[#allocation10 + $0x3e0] sm:$0xff]
    %v1009 = vld [vmem:[#allocation10 + $0x3e8] sm:$0xff]
    %v1010 = vld [vmem:[#allocation10 + $0x3f0] sm:$0xff]
    %v1011 = vld [vmem:[#allocation10 + $0x3f8] sm:$0xff]
    %v1140 = vunpack.c.l.b16 %v884
    %v1141 = vunpack.c.h.b16 %v884
    %v1142 = vunpack.c.l.b16 %v885
    %v1143 = vunpack.c.h.b16 %v885
    %v1144 = vunpack.c.l.b16 %v886
    %v1145 = vunpack.c.h.b16 %v886
    %v1146 = vunpack.c.l.b16 %v887
    %v1147 = vunpack.c.h.b16 %v887
    %v1148 = vunpack.c.l.b16 %v888
    %v1149 = vunpack.c.h.b16 %v888
    %v1150 = vunpack.c.l.b16 %v889
    %v1151 = vunpack.c.h.b16 %v889
    %v1152 = vunpack.c.l.b16 %v890
    %v1153 = vunpack.c.h.b16 %v890
    %v1154 = vunpack.c.l.b16 %v891
    %v1155 = vunpack.c.h.b16 %v891
    %v1156 = vunpack.c.l.b16 %v892
    %v1157 = vunpack.c.h.b16 %v892
    %v1158 = vunpack.c.l.b16 %v893
    %v1159 = vunpack.c.h.b16 %v893
    %v1160 = vunpack.c.l.b16 %v894
    %v1161 = vunpack.c.h.b16 %v894
    %v1162 = vunpack.c.l.b16 %v895
    %v1163 = vunpack.c.h.b16 %v895
    %v1164 = vunpack.c.l.b16 %v896
    %v1165 = vunpack.c.h.b16 %v896
    %v1166 = vunpack.c.l.b16 %v897
    %v1167 = vunpack.c.h.b16 %v897
    %v1168 = vunpack.c.l.b16 %v898
    %v1169 = vunpack.c.h.b16 %v898
    %v1170 = vunpack.c.l.b16 %v899
    %v1171 = vunpack.c.h.b16 %v899
    %v1172 = vunpack.c.l.b16 %v900
    %v1173 = vunpack.c.h.b16 %v900
    %v1174 = vunpack.c.l.b16 %v901
    %v1175 = vunpack.c.h.b16 %v901
    %v1176 = vunpack.c.l.b16 %v902
    %v1177 = vunpack.c.h.b16 %v902
    %v1178 = vunpack.c.l.b16 %v903
    %v1179 = vunpack.c.h.b16 %v903
    %v1180 = vunpack.c.l.b16 %v904
    %v1181 = vunpack.c.h.b16 %v904
    %v1182 = vunpack.c.l.b16 %v905
    %v1183 = vunpack.c.h.b16 %v905
    %v1184 = vunpack.c.l.b16 %v906
    %v1185 = vunpack.c.h.b16 %v906
    %v1186 = vunpack.c.l.b16 %v907
    %v1187 = vunpack.c.h.b16 %v907
    %v1188 = vunpack.c.l.b16 %v908
    %v1189 = vunpack.c.h.b16 %v908
    %v1190 = vunpack.c.l.b16 %v909
    %v1191 = vunpack.c.h.b16 %v909
    %v1192 = vunpack.c.l.b16 %v910
    %v1193 = vunpack.c.h.b16 %v910
    %v1194 = vunpack.c.l.b16 %v911
    %v1195 = vunpack.c.h.b16 %v911
    %v1196 = vunpack.c.l.b16 %v912
    %v1197 = vunpack.c.h.b16 %v912
    %v1198 = vunpack.c.l.b16 %v913
    %v1199 = vunpack.c.h.b16 %v913
    %v1200 = vunpack.c.l.b16 %v914
    %v1201 = vunpack.c.h.b16 %v914
    %v1202 = vunpack.c.l.b16 %v915
    %v1203 = vunpack.c.h.b16 %v915
    %v1204 = vunpack.c.l.b16 %v916
    %v1205 = vunpack.c.h.b16 %v916
    %v1206 = vunpack.c.l.b16 %v917
    %v1207 = vunpack.c.h.b16 %v917
    %v1208 = vunpack.c.l.b16 %v918
    %v1209 = vunpack.c.h.b16 %v918
    %v1210 = vunpack.c.l.b16 %v919
    %v1211 = vunpack.c.h.b16 %v919
    %v1212 = vunpack.c.l.b16 %v920
    %v1213 = vunpack.c.h.b16 %v920
    %v1214 = vunpack.c.l.b16 %v921
    %v1215 = vunpack.c.h.b16 %v921
    %v1216 = vunpack.c.l.b16 %v922
    %v1217 = vunpack.c.h.b16 %v922
    %v1218 = vunpack.c.l.b16 %v923
    %v1219 = vunpack.c.h.b16 %v923
    %v1220 = vunpack.c.l.b16 %v924
    %v1221 = vunpack.c.h.b16 %v924
    %v1222 = vunpack.c.l.b16 %v925
    %v1223 = vunpack.c.h.b16 %v925
    %v1224 = vunpack.c.l.b16 %v926
    %v1225 = vunpack.c.h.b16 %v926
    %v1226 = vunpack.c.l.b16 %v927
    %v1227 = vunpack.c.h.b16 %v927
    %v1228 = vunpack.c.l.b16 %v928
    %v1229 = vunpack.c.h.b16 %v928
    %v1230 = vunpack.c.l.b16 %v929
    %v1231 = vunpack.c.h.b16 %v929
    %v1232 = vunpack.c.l.b16 %v930
    %v1233 = vunpack.c.h.b16 %v930
    %v1234 = vunpack.c.l.b16 %v931
    %v1235 = vunpack.c.h.b16 %v931
    %v1236 = vunpack.c.l.b16 %v932
    %v1237 = vunpack.c.h.b16 %v932
    %v1238 = vunpack.c.l.b16 %v933
    %v1239 = vunpack.c.h.b16 %v933
    %v1240 = vunpack.c.l.b16 %v934
    %v1241 = vunpack.c.h.b16 %v934
    %v1242 = vunpack.c.l.b16 %v935
    %v1243 = vunpack.c.h.b16 %v935
    %v1244 = vunpack.c.l.b16 %v936
    %v1245 = vunpack.c.h.b16 %v936
    %v1246 = vunpack.c.l.b16 %v937
    %v1247 = vunpack.c.h.b16 %v937
    %v1248 = vunpack.c.l.b16 %v938
    %v1249 = vunpack.c.h.b16 %v938
    %v1250 = vunpack.c.l.b16 %v939
    %v1251 = vunpack.c.h.b16 %v939
    %v1252 = vunpack.c.l.b16 %v940
    %v1253 = vunpack.c.h.b16 %v940
    %v1254 = vunpack.c.l.b16 %v941
    %v1255 = vunpack.c.h.b16 %v941
    %v1256 = vunpack.c.l.b16 %v942
    %v1257 = vunpack.c.h.b16 %v942
    %v1258 = vunpack.c.l.b16 %v943
    %v1259 = vunpack.c.h.b16 %v943
    %v1260 = vunpack.c.l.b16 %v944
    %v1261 = vunpack.c.h.b16 %v944
    %v1262 = vunpack.c.l.b16 %v945
    %v1263 = vunpack.c.h.b16 %v945
    %v1264 = vunpack.c.l.b16 %v946
    %v1265 = vunpack.c.h.b16 %v946
    %v1266 = vunpack.c.l.b16 %v947
    %v1267 = vunpack.c.h.b16 %v947
    %v1268 = vunpack.c.l.b16 %v948
    %v1269 = vunpack.c.h.b16 %v948
    %v1270 = vunpack.c.l.b16 %v949
    %v1271 = vunpack.c.h.b16 %v949
    %v1272 = vunpack.c.l.b16 %v950
    %v1273 = vunpack.c.h.b16 %v950
    %v1274 = vunpack.c.l.b16 %v951
    %v1275 = vunpack.c.h.b16 %v951
    %v1276 = vunpack.c.l.b16 %v952
    %v1277 = vunpack.c.h.b16 %v952
    %v1278 = vunpack.c.l.b16 %v953
    %v1279 = vunpack.c.h.b16 %v953
    %v1280 = vunpack.c.l.b16 %v954
    %v1281 = vunpack.c.h.b16 %v954
    %v1282 = vunpack.c.l.b16 %v955
    %v1283 = vunpack.c.h.b16 %v955
    %v1284 = vunpack.c.l.b16 %v956
    %v1285 = vunpack.c.h.b16 %v956
    %v1286 = vunpack.c.l.b16 %v957
    %v1287 = vunpack.c.h.b16 %v957
    %v1288 = vunpack.c.l.b16 %v958
    %v1289 = vunpack.c.h.b16 %v958
    %v1290 = vunpack.c.l.b16 %v959
    %v1291 = vunpack.c.h.b16 %v959
    %v1292 = vunpack.c.l.b16 %v960
    %v1293 = vunpack.c.h.b16 %v960
    %v1294 = vunpack.c.l.b16 %v961
    %v1295 = vunpack.c.h.b16 %v961
    %v1296 = vunpack.c.l.b16 %v962
    %v1297 = vunpack.c.h.b16 %v962
    %v1298 = vunpack.c.l.b16 %v963
    %v1299 = vunpack.c.h.b16 %v963
    %v1300 = vunpack.c.l.b16 %v964
    %v1301 = vunpack.c.h.b16 %v964
    %v1302 = vunpack.c.l.b16 %v965
    %v1303 = vunpack.c.h.b16 %v965
    %v1304 = vunpack.c.l.b16 %v966
    %v1305 = vunpack.c.h.b16 %v966
    %v1306 = vunpack.c.l.b16 %v967
    %v1307 = vunpack.c.h.b16 %v967
    %v1308 = vunpack.c.l.b16 %v968
    %v1309 = vunpack.c.h.b16 %v968
    %v1310 = vunpack.c.l.b16 %v969
    %v1311 = vunpack.c.h.b16 %v969
    %v1312 = vunpack.c.l.b16 %v970
    %v1313 = vunpack.c.h.b16 %v970
    %v1314 = vunpack.c.l.b16 %v971
    %v1315 = vunpack.c.h.b16 %v971
    %v1316 = vunpack.c.l.b16 %v972
    %v1317 = vunpack.c.h.b16 %v972
    %v1318 = vunpack.c.l.b16 %v973
    %v1319 = vunpack.c.h.b16 %v973
    %v1320 = vunpack.c.l.b16 %v974
    %v1321 = vunpack.c.h.b16 %v974
    %v1322 = vunpack.c.l.b16 %v975
    %v1323 = vunpack.c.h.b16 %v975
    %v1324 = vunpack.c.l.b16 %v976
    %v1325 = vunpack.c.h.b16 %v976
    %v1326 = vunpack.c.l.b16 %v977
    %v1327 = vunpack.c.h.b16 %v977
    %v1328 = vunpack.c.l.b16 %v978
    %v1329 = vunpack.c.h.b16 %v978
    %v1330 = vunpack.c.l.b16 %v979
    %v1331 = vunpack.c.h.b16 %v979
    %v1332 = vunpack.c.l.b16 %v980
    %v1333 = vunpack.c.h.b16 %v980
    %v1334 = vunpack.c.l.b16 %v981
    %v1335 = vunpack.c.h.b16 %v981
    %v1336 = vunpack.c.l.b16 %v982
    %v1337 = vunpack.c.h.b16 %v982
    %v1338 = vunpack.c.l.b16 %v983
    %v1339 = vunpack.c.h.b16 %v983
    %v1340 = vunpack.c.l.b16 %v984
    %v1341 = vunpack.c.h.b16 %v984
    %v1342 = vunpack.c.l.b16 %v985
    %v1343 = vunpack.c.h.b16 %v985
    %v1344 = vunpack.c.l.b16 %v986
    %v1345 = vunpack.c.h.b16 %v986
    %v1346 = vunpack.c.l.b16 %v987
    %v1347 = vunpack.c.h.b16 %v987
    %v1348 = vunpack.c.l.b16 %v988
    %v1349 = vunpack.c.h.b16 %v988
    %v1350 = vunpack.c.l.b16 %v989
    %v1351 = vunpack.c.h.b16 %v989
    %v1352 = vunpack.c.l.b16 %v990
    %v1353 = vunpack.c.h.b16 %v990
    %v1354 = vunpack.c.l.b16 %v991
    %v1355 = vunpack.c.h.b16 %v991
    %v1356 = vunpack.c.l.b16 %v992
    %v1357 = vunpack.c.h.b16 %v992
    %v1358 = vunpack.c.l.b16 %v993
    %v1359 = vunpack.c.h.b16 %v993
    %v1360 = vunpack.c.l.b16 %v994
    %v1361 = vunpack.c.h.b16 %v994
    %v1362 = vunpack.c.l.b16 %v995
    %v1363 = vunpack.c.h.b16 %v995
    %v1364 = vunpack.c.l.b16 %v996
    %v1365 = vunpack.c.h.b16 %v996
    %v1366 = vunpack.c.l.b16 %v997
    %v1367 = vunpack.c.h.b16 %v997
    %v1368 = vunpack.c.l.b16 %v998
    %v1369 = vunpack.c.h.b16 %v998
    %v1370 = vunpack.c.l.b16 %v999
    %v1371 = vunpack.c.h.b16 %v999
    %v1372 = vunpack.c.l.b16 %v1000
    %v1373 = vunpack.c.h.b16 %v1000
    %v1374 = vunpack.c.l.b16 %v1001
    %v1375 = vunpack.c.h.b16 %v1001
    %v1376 = vunpack.c.l.b16 %v1002
    %v1377 = vunpack.c.h.b16 %v1002
    %v1378 = vunpack.c.l.b16 %v1003
    %v1379 = vunpack.c.h.b16 %v1003
    %v1380 = vunpack.c.l.b16 %v1004
    %v1381 = vunpack.c.h.b16 %v1004
    %v1382 = vunpack.c.l.b16 %v1005
    %v1383 = vunpack.c.h.b16 %v1005
    %v1384 = vunpack.c.l.b16 %v1006
    %v1385 = vunpack.c.h.b16 %v1006
    %v1386 = vunpack.c.l.b16 %v1007
    %v1387 = vunpack.c.h.b16 %v1007
    %v1388 = vunpack.c.l.b16 %v1008
    %v1389 = vunpack.c.h.b16 %v1008
    %v1390 = vunpack.c.l.b16 %v1009
    %v1391 = vunpack.c.h.b16 %v1009
    %v1392 = vunpack.c.l.b16 %v1010
    %v1393 = vunpack.c.h.b16 %v1010
    %v1394 = vunpack.c.l.b16 %v1011
    %v1395 = vunpack.c.h.b16 %v1011
    %v1396 = vpack.c.b16 %v1144, %v1140
    %v1397 = vpack.c.b16 %v1145, %v1141
    %v1398 = vpack.c.b16 %v1146, %v1142
    %v1399 = vpack.c.b16 %v1147, %v1143
    %v1400 = vpack.c.b16 %v1152, %v1148
    %v1401 = vpack.c.b16 %v1153, %v1149
    %v1402 = vpack.c.b16 %v1154, %v1150
    %v1403 = vpack.c.b16 %v1155, %v1151
    %v1404 = vpack.c.b16 %v1160, %v1156
    %v1405 = vpack.c.b16 %v1161, %v1157
    %v1406 = vpack.c.b16 %v1162, %v1158
    %v1407 = vpack.c.b16 %v1163, %v1159
    %v1408 = vpack.c.b16 %v1168, %v1164
    %v1409 = vpack.c.b16 %v1169, %v1165
    %v1410 = vpack.c.b16 %v1170, %v1166
    %v1411 = vpack.c.b16 %v1171, %v1167
    %v1412 = vpack.c.b16 %v1176, %v1172
    %v1413 = vpack.c.b16 %v1177, %v1173
    %v1414 = vpack.c.b16 %v1178, %v1174
    %v1415 = vpack.c.b16 %v1179, %v1175
    %v1416 = vpack.c.b16 %v1184, %v1180
    %v1417 = vpack.c.b16 %v1185, %v1181
    %v1418 = vpack.c.b16 %v1186, %v1182
    %v1419 = vpack.c.b16 %v1187, %v1183
    %v1420 = vpack.c.b16 %v1192, %v1188
    %v1421 = vpack.c.b16 %v1193, %v1189
    %v1422 = vpack.c.b16 %v1194, %v1190
    %v1423 = vpack.c.b16 %v1195, %v1191
    %v1424 = vpack.c.b16 %v1200, %v1196
    %v1425 = vpack.c.b16 %v1201, %v1197
    %v1426 = vpack.c.b16 %v1202, %v1198
    %v1427 = vpack.c.b16 %v1203, %v1199
    %v1428 = vpack.c.b16 %v1208, %v1204
    %v1429 = vpack.c.b16 %v1209, %v1205
    %v1430 = vpack.c.b16 %v1210, %v1206
    %v1431 = vpack.c.b16 %v1211, %v1207
    %v1432 = vpack.c.b16 %v1216, %v1212
    %v1433 = vpack.c.b16 %v1217, %v1213
    %v1434 = vpack.c.b16 %v1218, %v1214
    %v1435 = vpack.c.b16 %v1219, %v1215
    %v1436 = vpack.c.b16 %v1224, %v1220
    %v1437 = vpack.c.b16 %v1225, %v1221
    %v1438 = vpack.c.b16 %v1226, %v1222
    %v1439 = vpack.c.b16 %v1227, %v1223
    %v1440 = vpack.c.b16 %v1232, %v1228
    %v1441 = vpack.c.b16 %v1233, %v1229
    %v1442 = vpack.c.b16 %v1234, %v1230
    %v1443 = vpack.c.b16 %v1235, %v1231
    %v1444 = vpack.c.b16 %v1240, %v1236
    %v1445 = vpack.c.b16 %v1241, %v1237
    %v1446 = vpack.c.b16 %v1242, %v1238
    %v1447 = vpack.c.b16 %v1243, %v1239
    %v1448 = vpack.c.b16 %v1248, %v1244
    %v1449 = vpack.c.b16 %v1249, %v1245
    %v1450 = vpack.c.b16 %v1250, %v1246
    %v1451 = vpack.c.b16 %v1251, %v1247
    %v1452 = vpack.c.b16 %v1256, %v1252
    %v1453 = vpack.c.b16 %v1257, %v1253
    %v1454 = vpack.c.b16 %v1258, %v1254
    %v1455 = vpack.c.b16 %v1259, %v1255
    %v1456 = vpack.c.b16 %v1264, %v1260
    %v1457 = vpack.c.b16 %v1265, %v1261
    %v1458 = vpack.c.b16 %v1266, %v1262
    %v1459 = vpack.c.b16 %v1267, %v1263
    %v1460 = vpack.c.b16 %v1272, %v1268
    %v1461 = vpack.c.b16 %v1273, %v1269
    %v1462 = vpack.c.b16 %v1274, %v1270
    %v1463 = vpack.c.b16 %v1275, %v1271
    %v1464 = vpack.c.b16 %v1280, %v1276
    %v1465 = vpack.c.b16 %v1281, %v1277
    %v1466 = vpack.c.b16 %v1282, %v1278
    %v1467 = vpack.c.b16 %v1283, %v1279
    %v1468 = vpack.c.b16 %v1288, %v1284
    %v1469 = vpack.c.b16 %v1289, %v1285
    %v1470 = vpack.c.b16 %v1290, %v1286
    %v1471 = vpack.c.b16 %v1291, %v1287
    %v1472 = vpack.c.b16 %v1296, %v1292
    %v1473 = vpack.c.b16 %v1297, %v1293
    %v1474 = vpack.c.b16 %v1298, %v1294
    %v1475 = vpack.c.b16 %v1299, %v1295
    %v1476 = vpack.c.b16 %v1304, %v1300
    %v1477 = vpack.c.b16 %v1305, %v1301
    %v1478 = vpack.c.b16 %v1306, %v1302
    %v1479 = vpack.c.b16 %v1307, %v1303
    %v1480 = vpack.c.b16 %v1312, %v1308
    %v1481 = vpack.c.b16 %v1313, %v1309
    %v1482 = vpack.c.b16 %v1314, %v1310
    %v1483 = vpack.c.b16 %v1315, %v1311
    %v1484 = vpack.c.b16 %v1320, %v1316
    %v1485 = vpack.c.b16 %v1321, %v1317
    %v1486 = vpack.c.b16 %v1322, %v1318
    %v1487 = vpack.c.b16 %v1323, %v1319
    %v1488 = vpack.c.b16 %v1328, %v1324
    %v1489 = vpack.c.b16 %v1329, %v1325
    %v1490 = vpack.c.b16 %v1330, %v1326
    %v1491 = vpack.c.b16 %v1331, %v1327
    %v1492 = vpack.c.b16 %v1336, %v1332
    %v1493 = vpack.c.b16 %v1337, %v1333
    %v1494 = vpack.c.b16 %v1338, %v1334
    %v1495 = vpack.c.b16 %v1339, %v1335
    %v1496 = vpack.c.b16 %v1344, %v1340
    %v1497 = vpack.c.b16 %v1345, %v1341
    %v1498 = vpack.c.b16 %v1346, %v1342
    %v1499 = vpack.c.b16 %v1347, %v1343
    %v1500 = vpack.c.b16 %v1352, %v1348
    %v1501 = vpack.c.b16 %v1353, %v1349
    %v1502 = vpack.c.b16 %v1354, %v1350
    %v1503 = vpack.c.b16 %v1355, %v1351
    %v1504 = vpack.c.b16 %v1360, %v1356
    %v1505 = vpack.c.b16 %v1361, %v1357
    %v1506 = vpack.c.b16 %v1362, %v1358
    %v1507 = vpack.c.b16 %v1363, %v1359
    %v1508 = vpack.c.b16 %v1368, %v1364
    %v1509 = vpack.c.b16 %v1369, %v1365
    %v1510 = vpack.c.b16 %v1370, %v1366
    %v1511 = vpack.c.b16 %v1371, %v1367
    %v1512 = vpack.c.b16 %v1376, %v1372
    %v1513 = vpack.c.b16 %v1377, %v1373
    %v1514 = vpack.c.b16 %v1378, %v1374
    %v1515 = vpack.c.b16 %v1379, %v1375
    %v1516 = vpack.c.b16 %v1384, %v1380
    %v1517 = vpack.c.b16 %v1385, %v1381
    %v1518 = vpack.c.b16 %v1386, %v1382
    %v1519 = vpack.c.b16 %v1387, %v1383
    %v1520 = vpack.c.b16 %v1392, %v1388
    %v1521 = vpack.c.b16 %v1393, %v1389
    %v1522 = vpack.c.b16 %v1394, %v1390
    %v1523 = vpack.c.b16 %v1395, %v1391
    %1652 = vmatpush.bf16.msra.mxu0 %v1424
    %1653 = vmatpush.bf16.msra.mxu0 %v1420
    %1654 = vmatpush.bf16.msra.mxu0 %v1416
    %1655 = vmatpush.bf16.msra.mxu0 %v1412
    %1656 = vmatpush.bf16.msra.mxu0 %v1408
    %1657 = vmatpush.bf16.msra.mxu0 %v1404
    %1658 = vmatpush.bf16.msra.mxu0 %v1400
    %1659 = vmatpush.bf16.msra.mxu0 %v1396
    %1660 = vmatmul.bf16.gmra.mxu0 %v868
    %v1661 = vpop.f32.mrf.mxu0
    %v1662 = vadd.f32 0.0, %v1661
    %v1663 = vpop.f32.mrf.mxu0
    %v1664 = vadd.f32 0.0, %v1663
    %1665 = vmatmul.bf16.gmra.mxu0 %v872
    %v1666 = vpop.f32.mrf.mxu0
    %v1667 = vadd.f32 0.0, %v1666
    %v1668 = vpop.f32.mrf.mxu0
    %v1669 = vadd.f32 0.0, %v1668
    %1670 = vmatmul.bf16.gmra.mxu0 %v876
    %v1671 = vpop.f32.mrf.mxu0
    %v1672 = vadd.f32 0.0, %v1671
    %v1673 = vpop.f32.mrf.mxu0
    %v1674 = vadd.f32 0.0, %v1673
    %1675 = vmatmul.bf16.gmra.mxu0 %v880
    %v1676 = vpop.f32.mrf.mxu0
    %v1677 = vadd.f32 0.0, %v1676
    %v1678 = vpop.f32.mrf.mxu0
    %v1679 = vadd.f32 0.0, %v1678
    %1680 = vdwg.mxu0
    %1681 = vmatpush.bf16.msra.mxu0 %v1456
    %1682 = vmatpush.bf16.msra.mxu0 %v1452
    %1683 = vmatpush.bf16.msra.mxu0 %v1448
    %1684 = vmatpush.bf16.msra.mxu0 %v1444
    %1685 = vmatpush.bf16.msra.mxu0 %v1440
    %1686 = vmatpush.bf16.msra.mxu0 %v1436
    %1687 = vmatpush.bf16.msra.mxu0 %v1432
    %1688 = vmatpush.bf16.msra.mxu0 %v1428
    %1689 = vmatmul.bf16.gmra.mxu0 %v869
    %v1690 = vpop.f32.mrf.mxu0
    %v1691 = vadd.f32 %v1662, %v1690
    %v1692 = vpop.f32.mrf.mxu0
    %v1693 = vadd.f32 %v1664, %v1692
    %1694 = vmatmul.bf16.gmra.mxu0 %v873
    %v1695 = vpop.f32.mrf.mxu0
    %v1696 = vadd.f32 %v1667, %v1695
    %v1697 = vpop.f32.mrf.mxu0
    %v1698 = vadd.f32 %v1669, %v1697
    %1699 = vmatmul.bf16.gmra.mxu0 %v877
    %v1700 = vpop.f32.mrf.mxu0
    %v1701 = vadd.f32 %v1672, %v1700
    %v1702 = vpop.f32.mrf.mxu0
    %v1703 = vadd.f32 %v1674, %v1702
    %1704 = vmatmul.bf16.gmra.mxu0 %v881
    %v1705 = vpop.f32.mrf.mxu0
    %v1706 = vadd.f32 %v1677, %v1705
    %v1707 = vpop.f32.mrf.mxu0
    %v1708 = vadd.f32 %v1679, %v1707
    %1709 = vdwg.mxu0
    %1710 = vmatpush.bf16.msra.mxu0 %v1488
    %1711 = vmatpush.bf16.msra.mxu0 %v1484
    %1712 = vmatpush.bf16.msra.mxu0 %v1480
    %1713 = vmatpush.bf16.msra.mxu0 %v1476
    %1714 = vmatpush.bf16.msra.mxu0 %v1472
    %1715 = vmatpush.bf16.msra.mxu0 %v1468
    %1716 = vmatpush.bf16.msra.mxu0 %v1464
    %1717 = vmatpush.bf16.msra.mxu0 %v1460
    %1718 = vmatmul.bf16.gmra.mxu0 %v870
    %v1719 = vpop.f32.mrf.mxu0
    %v1720 = vadd.f32 %v1691, %v1719
    %v1721 = vpop.f32.mrf.mxu0
    %v1722 = vadd.f32 %v1693, %v1721
    %1723 = vmatmul.bf16.gmra.mxu0 %v874
    %v1724 = vpop.f32.mrf.mxu0
    %v1725 = vadd.f32 %v1696, %v1724
    %v1726 = vpop.f32.mrf.mxu0
    %v1727 = vadd.f32 %v1698, %v1726
    %1728 = vmatmul.bf16.gmra.mxu0 %v878
    %v1729 = vpop.f32.mrf.mxu0
    %v1730 = vadd.f32 %v1701, %v1729
    %v1731 = vpop.f32.mrf.mxu0
    %v1732 = vadd.f32 %v1703, %v1731
    %1733 = vmatmul.bf16.gmra.mxu0 %v882
    %v1734 = vpop.f32.mrf.mxu0
    %v1735 = vadd.f32 %v1706, %v1734
    %v1736 = vpop.f32.mrf.mxu0
    %v1737 = vadd.f32 %v1708, %v1736
    %1738 = vdwg.mxu0
    %1739 = vmatpush.bf16.msra.mxu0 %v1520
    %1740 = vmatpush.bf16.msra.mxu0 %v1516
    %1741 = vmatpush.bf16.msra.mxu0 %v1512
    %1742 = vmatpush.bf16.msra.mxu0 %v1508
    %1743 = vmatpush.bf16.msra.mxu0 %v1504
    %1744 = vmatpush.bf16.msra.mxu0 %v1500
    %1745 = vmatpush.bf16.msra.mxu0 %v1496
    %1746 = vmatpush.bf16.msra.mxu0 %v1492
    %1747 = vmatmul.bf16.gmra.mxu0 %v871
    %v1748 = vpop.f32.mrf.mxu0
    %v1749 = vadd.f32 %v1720, %v1748
    %v1750 = vpop.f32.mrf.mxu0
    %v1751 = vadd.f32 %v1722, %v1750
    %1752 = vmatmul.bf16.gmra.mxu0 %v875
    %v1753 = vpop.f32.mrf.mxu0
    %v1754 = vadd.f32 %v1725, %v1753
    %v1755 = vpop.f32.mrf.mxu0
    %v1756 = vadd.f32 %v1727, %v1755
    %1757 = vmatmul.bf16.gmra.mxu0 %v879
    %v1758 = vpop.f32.mrf.mxu0
    %v1759 = vadd.f32 %v1730, %v1758
    %v1760 = vpop.f32.mrf.mxu0
    %v1761 = vadd.f32 %v1732, %v1760
    %1762 = vmatmul.bf16.gmra.mxu0 %v883
    %v1763 = vpop.f32.mrf.mxu0
    %v1764 = vadd.f32 %v1735, %v1763
    %v1765 = vpop.f32.mrf.mxu0
    %v1766 = vadd.f32 %v1737, %v1765
    %1767 = vdwg.mxu0
    %1768 = vmatpush.bf16.msra.mxu0 %v1425
    %1769 = vmatpush.bf16.msra.mxu0 %v1421
    %1770 = vmatpush.bf16.msra.mxu0 %v1417
    %1771 = vmatpush.bf16.msra.mxu0 %v1413
    %1772 = vmatpush.bf16.msra.mxu0 %v1409
    %1773 = vmatpush.bf16.msra.mxu0 %v1405
    %1774 = vmatpush.bf16.msra.mxu0 %v1401
    %1775 = vmatpush.bf16.msra.mxu0 %v1397
    %1776 = vmatmul.bf16.gmra.mxu0 %v868
    %v1777 = vpop.f32.mrf.mxu0
    %v1778 = vadd.f32 0.0, %v1777
    %v1779 = vpop.f32.mrf.mxu0
    %v1780 = vadd.f32 0.0, %v1779
    %1781 = vmatmul.bf16.gmra.mxu0 %v872
    %v1782 = vpop.f32.mrf.mxu0
    %v1783 = vadd.f32 0.0, %v1782
    %v1784 = vpop.f32.mrf.mxu0
    %v1785 = vadd.f32 0.0, %v1784
    %1786 = vmatmul.bf16.gmra.mxu0 %v876
    %v1787 = vpop.f32.mrf.mxu0
    %v1788 = vadd.f32 0.0, %v1787
    %v1789 = vpop.f32.mrf.mxu0
    %v1790 = vadd.f32 0.0, %v1789
    %1791 = vmatmul.bf16.gmra.mxu0 %v880
    %v1792 = vpop.f32.mrf.mxu0
    %v1793 = vadd.f32 0.0, %v1792
    %v1794 = vpop.f32.mrf.mxu0
    %v1795 = vadd.f32 0.0, %v1794
    %1796 = vdwg.mxu0
    %1797 = vmatpush.bf16.msra.mxu0 %v1457
    %1798 = vmatpush.bf16.msra.mxu0 %v1453
    %1799 = vmatpush.bf16.msra.mxu0 %v1449
    %1800 = vmatpush.bf16.msra.mxu0 %v1445
    %1801 = vmatpush.bf16.msra.mxu0 %v1441
    %1802 = vmatpush.bf16.msra.mxu0 %v1437
    %1803 = vmatpush.bf16.msra.mxu0 %v1433
    %1804 = vmatpush.bf16.msra.mxu0 %v1429
    %1805 = vmatmul.bf16.gmra.mxu0 %v869
    %v1806 = vpop.f32.mrf.mxu0
    %v1807 = vadd.f32 %v1778, %v1806
    %v1808 = vpop.f32.mrf.mxu0
    %v1809 = vadd.f32 %v1780, %v1808
    %1810 = vmatmul.bf16.gmra.mxu0 %v873
    %v1811 = vpop.f32.mrf.mxu0
    %v1812 = vadd.f32 %v1783, %v1811
    %v1813 = vpop.f32.mrf.mxu0
    %v1814 = vadd.f32 %v1785, %v1813
    %1815 = vmatmul.bf16.gmra.mxu0 %v877
    %v1816 = vpop.f32.mrf.mxu0
    %v1817 = vadd.f32 %v1788, %v1816
    %v1818 = vpop.f32.mrf.mxu0
    %v1819 = vadd.f32 %v1790, %v1818
    %1820 = vmatmul.bf16.gmra.mxu0 %v881
    %v1821 = vpop.f32.mrf.mxu0
    %v1822 = vadd.f32 %v1793, %v1821
    %v1823 = vpop.f32.mrf.mxu0
    %v1824 = vadd.f32 %v1795, %v1823
    %1825 = vdwg.mxu0
    %1826 = vmatpush.bf16.msra.mxu0 %v1489
    %1827 = vmatpush.bf16.msra.mxu0 %v1485
    %1828 = vmatpush.bf16.msra.mxu0 %v1481
    %1829 = vmatpush.bf16.msra.mxu0 %v1477
    %1830 = vmatpush.bf16.msra.mxu0 %v1473
    %1831 = vmatpush.bf16.msra.mxu0 %v1469
    %1832 = vmatpush.bf16.msra.mxu0 %v1465
    %1833 = vmatpush.bf16.msra.mxu0 %v1461
    %1834 = vmatmul.bf16.gmra.mxu0 %v870
    %v1835 = vpop.f32.mrf.mxu0
    %v1836 = vadd.f32 %v1807, %v1835
    %v1837 = vpop.f32.mrf.mxu0
    %v1838 = vadd.f32 %v1809, %v1837
    %1839 = vmatmul.bf16.gmra.mxu0 %v874
    %v1840 = vpop.f32.mrf.mxu0
    %v1841 = vadd.f32 %v1812, %v1840
    %v1842 = vpop.f32.mrf.mxu0
    %v1843 = vadd.f32 %v1814, %v1842
    %1844 = vmatmul.bf16.gmra.mxu0 %v878
    %v1845 = vpop.f32.mrf.mxu0
    %v1846 = vadd.f32 %v1817, %v1845
    %v1847 = vpop.f32.mrf.mxu0
    %v1848 = vadd.f32 %v1819, %v1847
    %1849 = vmatmul.bf16.gmra.mxu0 %v882
    %v1850 = vpop.f32.mrf.mxu0
    %v1851 = vadd.f32 %v1822, %v1850
    %v1852 = vpop.f32.mrf.mxu0
    %v1853 = vadd.f32 %v1824, %v1852
    %1854 = vdwg.mxu0
    %1855 = vmatpush.bf16.msra.mxu0 %v1521
    %1856 = vmatpush.bf16.msra.mxu0 %v1517
    %1857 = vmatpush.bf16.msra.mxu0 %v1513
    %1858 = vmatpush.bf16.msra.mxu0 %v1509
    %1859 = vmatpush.bf16.msra.mxu0 %v1505
    %1860 = vmatpush.bf16.msra.mxu0 %v1501
    %1861 = vmatpush.bf16.msra.mxu0 %v1497
    %1862 = vmatpush.bf16.msra.mxu0 %v1493
    %1863 = vmatmul.bf16.gmra.mxu0 %v871
    %v1864 = vpop.f32.mrf.mxu0
    %v1865 = vadd.f32 %v1836, %v1864
    %v1866 = vpop.f32.mrf.mxu0
    %v1867 = vadd.f32 %v1838, %v1866
    %1868 = vmatmul.bf16.gmra.mxu0 %v875
    %v1869 = vpop.f32.mrf.mxu0
    %v1870 = vadd.f32 %v1841, %v1869
    %v1871 = vpop.f32.mrf.mxu0
    %v1872 = vadd.f32 %v1843, %v1871
    %1873 = vmatmul.bf16.gmra.mxu0 %v879
    %v1874 = vpop.f32.mrf.mxu0
    %v1875 = vadd.f32 %v1846, %v1874
    %v1876 = vpop.f32.mrf.mxu0
    %v1877 = vadd.f32 %v1848, %v1876
    %1878 = vmatmul.bf16.gmra.mxu0 %v883
    %v1879 = vpop.f32.mrf.mxu0
    %v1880 = vadd.f32 %v1851, %v1879
    %v1881 = vpop.f32.mrf.mxu0
    %v1882 = vadd.f32 %v1853, %v1881
    %1883 = vdwg.mxu0
    %1884 = vmatpush.bf16.msra.mxu0 %v1426
    %1885 = vmatpush.bf16.msra.mxu0 %v1422
    %1886 = vmatpush.bf16.msra.mxu0 %v1418
    %1887 = vmatpush.bf16.msra.mxu0 %v1414
    %1888 = vmatpush.bf16.msra.mxu0 %v1410
    %1889 = vmatpush.bf16.msra.mxu0 %v1406
    %1890 = vmatpush.bf16.msra.mxu0 %v1402
    %1891 = vmatpush.bf16.msra.mxu0 %v1398
    %1892 = vmatmul.bf16.gmra.mxu0 %v868
    %v1893 = vpop.f32.mrf.mxu0
    %v1894 = vadd.f32 0.0, %v1893
    %v1895 = vpop.f32.mrf.mxu0
    %v1896 = vadd.f32 0.0, %v1895
    %1897 = vmatmul.bf16.gmra.mxu0 %v872
    %v1898 = vpop.f32.mrf.mxu0
    %v1899 = vadd.f32 0.0, %v1898
    %v1900 = vpop.f32.mrf.mxu0
    %v1901 = vadd.f32 0.0, %v1900
    %1902 = vmatmul.bf16.gmra.mxu0 %v876
    %v1903 = vpop.f32.mrf.mxu0
    %v1904 = vadd.f32 0.0, %v1903
    %v1905 = vpop.f32.mrf.mxu0
    %v1906 = vadd.f32 0.0, %v1905
    %1907 = vmatmul.bf16.gmra.mxu0 %v880
    %v1908 = vpop.f32.mrf.mxu0
    %v1909 = vadd.f32 0.0, %v1908
    %v1910 = vpop.f32.mrf.mxu0
    %v1911 = vadd.f32 0.0, %v1910
    %1912 = vdwg.mxu0
    %1913 = vmatpush.bf16.msra.mxu0 %v1458
    %1914 = vmatpush.bf16.msra.mxu0 %v1454
    %1915 = vmatpush.bf16.msra.mxu0 %v1450
    %1916 = vmatpush.bf16.msra.mxu0 %v1446
    %1917 = vmatpush.bf16.msra.mxu0 %v1442
    %1918 = vmatpush.bf16.msra.mxu0 %v1438
    %1919 = vmatpush.bf16.msra.mxu0 %v1434
    %1920 = vmatpush.bf16.msra.mxu0 %v1430
    %1921 = vmatmul.bf16.gmra.mxu0 %v869
    %v1922 = vpop.f32.mrf.mxu0
    %v1923 = vadd.f32 %v1894, %v1922
    %v1924 = vpop.f32.mrf.mxu0
    %v1925 = vadd.f32 %v1896, %v1924
    %1926 = vmatmul.bf16.gmra.mxu0 %v873
    %v1927 = vpop.f32.mrf.mxu0
    %v1928 = vadd.f32 %v1899, %v1927
    %v1929 = vpop.f32.mrf.mxu0
    %v1930 = vadd.f32 %v1901, %v1929
    %1931 = vmatmul.bf16.gmra.mxu0 %v877
    %v1932 = vpop.f32.mrf.mxu0
    %v1933 = vadd.f32 %v1904, %v1932
    %v1934 = vpop.f32.mrf.mxu0
    %v1935 = vadd.f32 %v1906, %v1934
    %1936 = vmatmul.bf16.gmra.mxu0 %v881
    %v1937 = vpop.f32.mrf.mxu0
    %v1938 = vadd.f32 %v1909, %v1937
    %v1939 = vpop.f32.mrf.mxu0
    %v1940 = vadd.f32 %v1911, %v1939
    %1941 = vdwg.mxu0
    %1942 = vmatpush.bf16.msra.mxu0 %v1490
    %1943 = vmatpush.bf16.msra.mxu0 %v1486
    %1944 = vmatpush.bf16.msra.mxu0 %v1482
    %1945 = vmatpush.bf16.msra.mxu0 %v1478
    %1946 = vmatpush.bf16.msra.mxu0 %v1474
    %1947 = vmatpush.bf16.msra.mxu0 %v1470
    %1948 = vmatpush.bf16.msra.mxu0 %v1466
    %1949 = vmatpush.bf16.msra.mxu0 %v1462
    %1950 = vmatmul.bf16.gmra.mxu0 %v870
    %v1951 = vpop.f32.mrf.mxu0
    %v1952 = vadd.f32 %v1923, %v1951
    %v1953 = vpop.f32.mrf.mxu0
    %v1954 = vadd.f32 %v1925, %v1953
    %1955 = vmatmul.bf16.gmra.mxu0 %v874
    %v1956 = vpop.f32.mrf.mxu0
    %v1957 = vadd.f32 %v1928, %v1956
    %v1958 = vpop.f32.mrf.mxu0
    %v1959 = vadd.f32 %v1930, %v1958
    %1960 = vmatmul.bf16.gmra.mxu0 %v878
    %v1961 = vpop.f32.mrf.mxu0
    %v1962 = vadd.f32 %v1933, %v1961
    %v1963 = vpop.f32.mrf.mxu0
    %v1964 = vadd.f32 %v1935, %v1963
    %1965 = vmatmul.bf16.gmra.mxu0 %v882
    %v1966 = vpop.f32.mrf.mxu0
    %v1967 = vadd.f32 %v1938, %v1966
    %v1968 = vpop.f32.mrf.mxu0
    %v1969 = vadd.f32 %v1940, %v1968
    %1970 = vdwg.mxu0
    %1971 = vmatpush.bf16.msra.mxu0 %v1522
    %1972 = vmatpush.bf16.msra.mxu0 %v1518
    %1973 = vmatpush.bf16.msra.mxu0 %v1514
    %1974 = vmatpush.bf16.msra.mxu0 %v1510
    %1975 = vmatpush.bf16.msra.mxu0 %v1506
    %1976 = vmatpush.bf16.msra.mxu0 %v1502
    %1977 = vmatpush.bf16.msra.mxu0 %v1498
    %1978 = vmatpush.bf16.msra.mxu0 %v1494
    %1979 = vmatmul.bf16.gmra.mxu0 %v871
    %v1980 = vpop.f32.mrf.mxu0
    %v1981 = vadd.f32 %v1952, %v1980
    %v1982 = vpop.f32.mrf.mxu0
    %v1983 = vadd.f32 %v1954, %v1982
    %1984 = vmatmul.bf16.gmra.mxu0 %v875
    %v1985 = vpop.f32.mrf.mxu0
    %v1986 = vadd.f32 %v1957, %v1985
    %v1987 = vpop.f32.mrf.mxu0
    %v1988 = vadd.f32 %v1959, %v1987
    %1989 = vmatmul.bf16.gmra.mxu0 %v879
    %v1990 = vpop.f32.mrf.mxu0
    %v1991 = vadd.f32 %v1962, %v1990
    %v1992 = vpop.f32.mrf.mxu0
    %v1993 = vadd.f32 %v1964, %v1992
    %1994 = vmatmul.bf16.gmra.mxu0 %v883
    %v1995 = vpop.f32.mrf.mxu0
    %v1996 = vadd.f32 %v1967, %v1995
    %v1997 = vpop.f32.mrf.mxu0
    %v1998 = vadd.f32 %v1969, %v1997
    %1999 = vdwg.mxu0
    %2000 = vmatpush.bf16.msra.mxu0 %v1427
    %2001 = vmatpush.bf16.msra.mxu0 %v1423
    %2002 = vmatpush.bf16.msra.mxu0 %v1419
    %2003 = vmatpush.bf16.msra.mxu0 %v1415
    %2004 = vmatpush.bf16.msra.mxu0 %v1411
    %2005 = vmatpush.bf16.msra.mxu0 %v1407
    %2006 = vmatpush.bf16.msra.mxu0 %v1403
    %2007 = vmatpush.bf16.msra.mxu0 %v1399
    %2008 = vmatmul.bf16.gmra.mxu0 %v868
    %v2009 = vpop.f32.mrf.mxu0
    %v2010 = vadd.f32 0.0, %v2009
    %v2011 = vpop.f32.mrf.mxu0
    %v2012 = vadd.f32 0.0, %v2011
    %2013 = vmatmul.bf16.gmra.mxu0 %v872
    %v2014 = vpop.f32.mrf.mxu0
    %v2015 = vadd.f32 0.0, %v2014
    %v2016 = vpop.f32.mrf.mxu0
    %v2017 = vadd.f32 0.0, %v2016
    %2018 = vmatmul.bf16.gmra.mxu0 %v876
    %v2019 = vpop.f32.mrf.mxu0
    %v2020 = vadd.f32 0.0, %v2019
    %v2021 = vpop.f32.mrf.mxu0
    %v2022 = vadd.f32 0.0, %v2021
    %2023 = vmatmul.bf16.gmra.mxu0 %v880
    %v2024 = vpop.f32.mrf.mxu0
    %v2025 = vadd.f32 0.0, %v2024
    %v2026 = vpop.f32.mrf.mxu0
    %v2027 = vadd.f32 0.0, %v2026
    %2028 = vdwg.mxu0
    %2029 = vmatpush.bf16.msra.mxu0 %v1459
    %2030 = vmatpush.bf16.msra.mxu0 %v1455
    %2031 = vmatpush.bf16.msra.mxu0 %v1451
    %2032 = vmatpush.bf16.msra.mxu0 %v1447
    %2033 = vmatpush.bf16.msra.mxu0 %v1443
    %2034 = vmatpush.bf16.msra.mxu0 %v1439
    %2035 = vmatpush.bf16.msra.mxu0 %v1435
    %2036 = vmatpush.bf16.msra.mxu0 %v1431
    %2037 = vmatmul.bf16.gmra.mxu0 %v869
    %v2038 = vpop.f32.mrf.mxu0
    %v2039 = vadd.f32 %v2010, %v2038
    %v2040 = vpop.f32.mrf.mxu0
    %v2041 = vadd.f32 %v2012, %v2040
    %2042 = vmatmul.bf16.gmra.mxu0 %v873
    %v2043 = vpop.f32.mrf.mxu0
    %v2044 = vadd.f32 %v2015, %v2043
    %v2045 = vpop.f32.mrf.mxu0
    %v2046 = vadd.f32 %v2017, %v2045
    %2047 = vmatmul.bf16.gmra.mxu0 %v877
    %v2048 = vpop.f32.mrf.mxu0
    %v2049 = vadd.f32 %v2020, %v2048
    %v2050 = vpop.f32.mrf.mxu0
    %v2051 = vadd.f32 %v2022, %v2050
    %2052 = vmatmul.bf16.gmra.mxu0 %v881
    %v2053 = vpop.f32.mrf.mxu0
    %v2054 = vadd.f32 %v2025, %v2053
    %v2055 = vpop.f32.mrf.mxu0
    %v2056 = vadd.f32 %v2027, %v2055
    %2057 = vdwg.mxu0
    %2058 = vmatpush.bf16.msra.mxu0 %v1491
    %2059 = vmatpush.bf16.msra.mxu0 %v1487
    %2060 = vmatpush.bf16.msra.mxu0 %v1483
    %2061 = vmatpush.bf16.msra.mxu0 %v1479
    %2062 = vmatpush.bf16.msra.mxu0 %v1475
    %2063 = vmatpush.bf16.msra.mxu0 %v1471
    %2064 = vmatpush.bf16.msra.mxu0 %v1467
    %2065 = vmatpush.bf16.msra.mxu0 %v1463
    %2066 = vmatmul.bf16.gmra.mxu0 %v870
    %v2067 = vpop.f32.mrf.mxu0
    %v2068 = vadd.f32 %v2039, %v2067
    %v2069 = vpop.f32.mrf.mxu0
    %v2070 = vadd.f32 %v2041, %v2069
    %2071 = vmatmul.bf16.gmra.mxu0 %v874
    %v2072 = vpop.f32.mrf.mxu0
    %v2073 = vadd.f32 %v2044, %v2072
    %v2074 = vpop.f32.mrf.mxu0
    %v2075 = vadd.f32 %v2046, %v2074
    %2076 = vmatmul.bf16.gmra.mxu0 %v878
    %v2077 = vpop.f32.mrf.mxu0
    %v2078 = vadd.f32 %v2049, %v2077
    %v2079 = vpop.f32.mrf.mxu0
    %v2080 = vadd.f32 %v2051, %v2079
    %2081 = vmatmul.bf16.gmra.mxu0 %v882
    %v2082 = vpop.f32.mrf.mxu0
    %v2083 = vadd.f32 %v2054, %v2082
    %v2084 = vpop.f32.mrf.mxu0
    %v2085 = vadd.f32 %v2056, %v2084
    %2086 = vdwg.mxu0
    %2087 = vmatpush.bf16.msra.mxu0 %v1523
    %2088 = vmatpush.bf16.msra.mxu0 %v1519
    %2089 = vmatpush.bf16.msra.mxu0 %v1515
    %2090 = vmatpush.bf16.msra.mxu0 %v1511
    %2091 = vmatpush.bf16.msra.mxu0 %v1507
    %2092 = vmatpush.bf16.msra.mxu0 %v1503
    %2093 = vmatpush.bf16.msra.mxu0 %v1499
    %2094 = vmatpush.bf16.msra.mxu0 %v1495
    %2095 = vmatmul.bf16.gmra.mxu0 %v871
    %v2096 = vpop.f32.mrf.mxu0
    %v2097 = vadd.f32 %v2068, %v2096
    %v2098 = vpop.f32.mrf.mxu0
    %v2099 = vadd.f32 %v2070, %v2098
    %2100 = vmatmul.bf16.gmra.mxu0 %v875
    %v2101 = vpop.f32.mrf.mxu0
    %v2102 = vadd.f32 %v2073, %v2101
    %v2103 = vpop.f32.mrf.mxu0
    %v2104 = vadd.f32 %v2075, %v2103
    %2105 = vmatmul.bf16.gmra.mxu0 %v879
    %v2106 = vpop.f32.mrf.mxu0
    %v2107 = vadd.f32 %v2078, %v2106
    %v2108 = vpop.f32.mrf.mxu0
    %v2109 = vadd.f32 %v2080, %v2108
    %2110 = vmatmul.bf16.gmra.mxu0 %v883
    %v2111 = vpop.f32.mrf.mxu0
    %v2112 = vadd.f32 %v2083, %v2111
    %v2113 = vpop.f32.mrf.mxu0
    %v2114 = vadd.f32 %v2085, %v2113
    %2115 = vdwg.mxu0
    %v2116 = vld [vmem:[%s5] sm:$0xf]
    %v2117 = vld [vmem:[#allocation11] sm:$0xf]
    %v2118 = vadd.f32 %v1749, %v1751
    %v2119 = vadd.f32 %v2118, %v1754
    %v2120 = vadd.f32 %v2119, %v1756
    %v2121 = vadd.f32 %v2120, %v1759
    %v2122 = vadd.f32 %v2121, %v1761
    %v2123 = vadd.f32 %v2122, %v1764
    %v2124 = vadd.f32 %v2123, %v1766
    %v2125 = vrot.slane %v2124, 4
    %v2126 = vadd.f32 %v2124, %v2125
    %v2127 = vrot.slane %v2126, 2
    %v2128 = vadd.f32 %v2126, %v2127
    %v2129 = vrot.slane %v2128, 1
    %v2130 = vadd.f32 %v2128, %v2129
    %v2131 = vadd.f32 %v1865, %v1867
    %v2132 = vadd.f32 %v2131, %v1870
    %v2133 = vadd.f32 %v2132, %v1872
    %v2134 = vadd.f32 %v2133, %v1875
    %v2135 = vadd.f32 %v2134, %v1877
    %v2136 = vadd.f32 %v2135, %v1880
    %v2137 = vadd.f32 %v2136, %v1882
    %v2138 = vrot.slane %v2137, 4
    %v2139 = vadd.f32 %v2137, %v2138
    %v2140 = vrot.slane %v2139, 2
    %v2141 = vadd.f32 %v2139, %v2140
    %v2142 = vrot.slane %v2141, 1
    %v2143 = vadd.f32 %v2141, %v2142
    %v2144 = vadd.f32 %v1981, %v1983
    %v2145 = vadd.f32 %v2144, %v1986
    %v2146 = vadd.f32 %v2145, %v1988
    %v2147 = vadd.f32 %v2146, %v1991
    %v2148 = vadd.f32 %v2147, %v1993
    %v2149 = vadd.f32 %v2148, %v1996
    %v2150 = vadd.f32 %v2149, %v1998
    %v2151 = vrot.slane %v2150, 4
    %v2152 = vadd.f32 %v2150, %v2151
    %v2153 = vrot.slane %v2152, 2
    %v2154 = vadd.f32 %v2152, %v2153
    %v2155 = vrot.slane %v2154, 1
    %v2156 = vadd.f32 %v2154, %v2155
    %v2157 = vadd.f32 %v2097, %v2099
    %v2158 = vadd.f32 %v2157, %v2102
    %v2159 = vadd.f32 %v2158, %v2104
    %v2160 = vadd.f32 %v2159, %v2107
    %v2161 = vadd.f32 %v2160, %v2109
    %v2162 = vadd.f32 %v2161, %v2112
    %v2163 = vadd.f32 %v2162, %v2114
    %v2164 = vrot.slane %v2163, 4
    %v2165 = vadd.f32 %v2163, %v2164
    %v2166 = vrot.slane %v2165, 2
    %v2167 = vadd.f32 %v2165, %v2166
    %v2168 = vrot.slane %v2167, 1
    %v2169 = vadd.f32 %v2167, %v2168
    %v2170 = vmul.f32 %v2130, %v553
    %v2171 = vmul.f32 %v2143, %v553
    %v2172 = vmul.f32 %v2156, %v553
    %v2173 = vmul.f32 %v2169, %v553
    %v2174 = vsub.f32 %v1749, %v2170
    %v2175 = vsub.f32 %v1865, %v2171
    %v2176 = vsub.f32 %v1981, %v2172
    %v2177 = vsub.f32 %v2097, %v2173
    %v2178 = vsub.f32 %v1751, %v2170
    %v2179 = vsub.f32 %v1867, %v2171
    %v2180 = vsub.f32 %v1983, %v2172
    %v2181 = vsub.f32 %v2099, %v2173
    %v2182 = vsub.f32 %v1754, %v2170
    %v2183 = vsub.f32 %v1870, %v2171
    %v2184 = vsub.f32 %v1986, %v2172
    %v2185 = vsub.f32 %v2102, %v2173
    %v2186 = vsub.f32 %v1756, %v2170
    %v2187 = vsub.f32 %v1872, %v2171
    %v2188 = vsub.f32 %v1988, %v2172
    %v2189 = vsub.f32 %v2104, %v2173
    %v2190 = vsub.f32 %v1759, %v2170
    %v2191 = vsub.f32 %v1875, %v2171
    %v2192 = vsub.f32 %v1991, %v2172
    %v2193 = vsub.f32 %v2107, %v2173
    %v2194 = vsub.f32 %v1761, %v2170
    %v2195 = vsub.f32 %v1877, %v2171
    %v2196 = vsub.f32 %v1993, %v2172
    %v2197 = vsub.f32 %v2109, %v2173
    %v2198 = vsub.f32 %v1764, %v2170
    %v2199 = vsub.f32 %v1880, %v2171
    %v2200 = vsub.f32 %v1996, %v2172
    %v2201 = vsub.f32 %v2112, %v2173
    %v2202 = vsub.f32 %v1766, %v2170
    %v2203 = vsub.f32 %v1882, %v2171
    %v2204 = vsub.f32 %v1998, %v2172
    %v2205 = vsub.f32 %v2114, %v2173
    %v2206 = vmul.f32 %v2174, %v2174
    %v2207 = vmul.f32 %v2175, %v2175
    %v2208 = vmul.f32 %v2176, %v2176
    %v2209 = vmul.f32 %v2177, %v2177
    %v2210 = vmul.f32 %v2178, %v2178
    %v2211 = vmul.f32 %v2179, %v2179
    %v2212 = vmul.f32 %v2180, %v2180
    %v2213 = vmul.f32 %v2181, %v2181
    %v2214 = vmul.f32 %v2182, %v2182
    %v2215 = vmul.f32 %v2183, %v2183
    %v2216 = vmul.f32 %v2184, %v2184
    %v2217 = vmul.f32 %v2185, %v2185
    %v2218 = vmul.f32 %v2186, %v2186
    %v2219 = vmul.f32 %v2187, %v2187
    %v2220 = vmul.f32 %v2188, %v2188
    %v2221 = vmul.f32 %v2189, %v2189
    %v2222 = vmul.f32 %v2190, %v2190
    %v2223 = vmul.f32 %v2191, %v2191
    %v2224 = vmul.f32 %v2192, %v2192
    %v2225 = vmul.f32 %v2193, %v2193
    %v2226 = vmul.f32 %v2194, %v2194
    %v2227 = vmul.f32 %v2195, %v2195
    %v2228 = vmul.f32 %v2196, %v2196
    %v2229 = vmul.f32 %v2197, %v2197
    %v2230 = vmul.f32 %v2198, %v2198
    %v2231 = vmul.f32 %v2199, %v2199
    %v2232 = vmul.f32 %v2200, %v2200
    %v2233 = vmul.f32 %v2201, %v2201
    %v2234 = vmul.f32 %v2202, %v2202
    %v2235 = vmul.f32 %v2203, %v2203
    %v2236 = vmul.f32 %v2204, %v2204
    %v2237 = vmul.f32 %v2205, %v2205
    %v2238 = vadd.f32 %v2206, %v2210
    %v2239 = vadd.f32 %v2238, %v2214
    %v2240 = vadd.f32 %v2239, %v2218
    %v2241 = vadd.f32 %v2240, %v2222
    %v2242 = vadd.f32 %v2241, %v2226
    %v2243 = vadd.f32 %v2242, %v2230
    %v2244 = vadd.f32 %v2243, %v2234
    %v2245 = vrot.slane %v2244, 4
    %v2246 = vadd.f32 %v2244, %v2245
    %v2247 = vrot.slane %v2246, 2
    %v2248 = vadd.f32 %v2246, %v2247
    %v2249 = vrot.slane %v2248, 1
    %v2250 = vadd.f32 %v2248, %v2249
    %v2251 = vadd.f32 %v2207, %v2211
    %v2252 = vadd.f32 %v2251, %v2215
    %v2253 = vadd.f32 %v2252, %v2219
    %v2254 = vadd.f32 %v2253, %v2223
    %v2255 = vadd.f32 %v2254, %v2227
    %v2256 = vadd.f32 %v2255, %v2231
    %v2257 = vadd.f32 %v2256, %v2235
    %v2258 = vrot.slane %v2257, 4
    %v2259 = vadd.f32 %v2257, %v2258
    %v2260 = vrot.slane %v2259, 2
    %v2261 = vadd.f32 %v2259, %v2260
    %v2262 = vrot.slane %v2261, 1
    %v2263 = vadd.f32 %v2261, %v2262
    %v2264 = vadd.f32 %v2208, %v2212
    %v2265 = vadd.f32 %v2264, %v2216
    %v2266 = vadd.f32 %v2265, %v2220
    %v2267 = vadd.f32 %v2266, %v2224
    %v2268 = vadd.f32 %v2267, %v2228
    %v2269 = vadd.f32 %v2268, %v2232
    %v2270 = vadd.f32 %v2269, %v2236
    %v2271 = vrot.slane %v2270, 4
    %v2272 = vadd.f32 %v2270, %v2271
    %v2273 = vrot.slane %v2272, 2
    %v2274 = vadd.f32 %v2272, %v2273
    %v2275 = vrot.slane %v2274, 1
    %v2276 = vadd.f32 %v2274, %v2275
    %v2277 = vadd.f32 %v2209, %v2213
    %v2278 = vadd.f32 %v2277, %v2217
    %v2279 = vadd.f32 %v2278, %v2221
    %v2280 = vadd.f32 %v2279, %v2225
    %v2281 = vadd.f32 %v2280, %v2229
    %v2282 = vadd.f32 %v2281, %v2233
    %v2283 = vadd.f32 %v2282, %v2237
    %v2284 = vrot.slane %v2283, 4
    %v2285 = vadd.f32 %v2283, %v2284
    %v2286 = vrot.slane %v2285, 2
    %v2287 = vadd.f32 %v2285, %v2286
    %v2288 = vrot.slane %v2287, 1
    %v2289 = vadd.f32 %v2287, %v2288
    %v2290 = vmul.f32 %v2250, %v553
    %v2291 = vmul.f32 %v2263, %v553
    %v2292 = vmul.f32 %v2276, %v553
    %v2293 = vmul.f32 %v2289, %v553
    %v2294 = vadd.f32 %v2290, 1e-05
    %v2295 = vadd.f32 %v2291, 1e-05
    %v2296 = vadd.f32 %v2292, 1e-05
    %v2297 = vadd.f32 %v2293, 1e-05
    %v2298 = vrsqrt.pop %v2294
    %v2299 = vmul.f32 %v2298, %v2294
    %v2300 = vmul.f32 %v2299, %v2298
    %v2301 = vmul.f32 0.5, %v2300
    %v2302 = vsub.f32 1.5, %v2301
    %v2303 = vmul.f32 %v2298, %v2302
    %vm2304 = vweird.f32 %v2294
    %vm2305 = vweird.f32 %v2298
    %vm2306 = vmor %vm2304, %vm2305
    %v2307 = vsel %vm2306, %v2298, %v2303
    %v2308 = vrsqrt.pop %v2295
    %v2309 = vmul.f32 %v2308, %v2295
    %v2310 = vmul.f32 %v2309, %v2308
    %v2311 = vmul.f32 0.5, %v2310
    %v2312 = vsub.f32 1.5, %v2311
    %v2313 = vmul.f32 %v2308, %v2312
    %vm2314 = vweird.f32 %v2295
    %vm2315 = vweird.f32 %v2308
    %vm2316 = vmor %vm2314, %vm2315
    %v2317 = vsel %vm2316, %v2308, %v2313
    %v2318 = vrsqrt.pop %v2296
    %v2319 = vmul.f32 %v2318, %v2296
    %v2320 = vmul.f32 %v2319, %v2318
    %v2321 = vmul.f32 0.5, %v2320
    %v2322 = vsub.f32 1.5, %v2321
    %v2323 = vmul.f32 %v2318, %v2322
    %vm2324 = vweird.f32 %v2296
    %vm2325 = vweird.f32 %v2318
    %vm2326 = vmor %vm2324, %vm2325
    %v2327 = vsel %vm2326, %v2318, %v2323
    %v2328 = vrsqrt.pop %v2297
    %v2329 = vmul.f32 %v2328, %v2297
    %v2330 = vmul.f32 %v2329, %v2328
    %v2331 = vmul.f32 0.5, %v2330
    %v2332 = vsub.f32 1.5, %v2331
    %v2333 = vmul.f32 %v2328, %v2332
    %vm2334 = vweird.f32 %v2297
    %vm2335 = vweird.f32 %v2328
    %vm2336 = vmor %vm2334, %vm2335
    %v2337 = vsel %vm2336, %v2328, %v2333
    %v2338 = vmul.f32 %v2174, %v2307
    %v2339 = vmul.f32 %v2175, %v2317
    %v2340 = vmul.f32 %v2176, %v2327
    %v2341 = vmul.f32 %v2177, %v2337
    %v2342 = vmul.f32 %v2178, %v2307
    %v2343 = vmul.f32 %v2179, %v2317
    %v2344 = vmul.f32 %v2180, %v2327
    %v2345 = vmul.f32 %v2181, %v2337
    %v2346 = vmul.f32 %v2182, %v2307
    %v2347 = vmul.f32 %v2183, %v2317
    %v2348 = vmul.f32 %v2184, %v2327
    %v2349 = vmul.f32 %v2185, %v2337
    %v2350 = vmul.f32 %v2186, %v2307
    %v2351 = vmul.f32 %v2187, %v2317
    %v2352 = vmul.f32 %v2188, %v2327
    %v2353 = vmul.f32 %v2189, %v2337
    %v2354 = vmul.f32 %v2190, %v2307
    %v2355 = vmul.f32 %v2191, %v2317
    %v2356 = vmul.f32 %v2192, %v2327
    %v2357 = vmul.f32 %v2193, %v2337
    %v2358 = vmul.f32 %v2194, %v2307
    %v2359 = vmul.f32 %v2195, %v2317
    %v2360 = vmul.f32 %v2196, %v2327
    %v2361 = vmul.f32 %v2197, %v2337
    %v2362 = vmul.f32 %v2198, %v2307
    %v2363 = vmul.f32 %v2199, %v2317
    %v2364 = vmul.f32 %v2200, %v2327
    %v2365 = vmul.f32 %v2201, %v2337
    %v2366 = vmul.f32 %v2202, %v2307
    %v2367 = vmul.f32 %v2203, %v2317
    %v2368 = vmul.f32 %v2204, %v2327
    %v2369 = vmul.f32 %v2205, %v2337
    %v2371 = vperm.slane %v2116, 0
    %v2372 = vperm.slane %v2116, 1
    %v2373 = vperm.slane %v2116, 2
    %v2374 = vperm.slane %v2116, 3
    %v2379 = vmul.f32 %v2338, %v2371
    %v2380 = vmul.f32 %v2339, %v2372
    %v2381 = vmul.f32 %v2340, %v2373
    %v2382 = vmul.f32 %v2341, %v2374
    %v2383 = vmul.f32 %v2342, %v2371
    %v2384 = vmul.f32 %v2343, %v2372
    %v2385 = vmul.f32 %v2344, %v2373
    %v2386 = vmul.f32 %v2345, %v2374
    %v2387 = vmul.f32 %v2346, %v2371
    %v2388 = vmul.f32 %v2347, %v2372
    %v2389 = vmul.f32 %v2348, %v2373
    %v2390 = vmul.f32 %v2349, %v2374
    %v2391 = vmul.f32 %v2350, %v2371
    %v2392 = vmul.f32 %v2351, %v2372
    %v2393 = vmul.f32 %v2352, %v2373
    %v2394 = vmul.f32 %v2353, %v2374
    %v2395 = vmul.f32 %v2354, %v2371
    %v2396 = vmul.f32 %v2355, %v2372
    %v2397 = vmul.f32 %v2356, %v2373
    %v2398 = vmul.f32 %v2357, %v2374
    %v2399 = vmul.f32 %v2358, %v2371
    %v2400 = vmul.f32 %v2359, %v2372
    %v2401 = vmul.f32 %v2360, %v2373
    %v2402 = vmul.f32 %v2361, %v2374
    %v2403 = vmul.f32 %v2362, %v2371
    %v2404 = vmul.f32 %v2363, %v2372
    %v2405 = vmul.f32 %v2364, %v2373
    %v2406 = vmul.f32 %v2365, %v2374
    %v2407 = vmul.f32 %v2366, %v2371
    %v2408 = vmul.f32 %v2367, %v2372
    %v2409 = vmul.f32 %v2368, %v2373
    %v2410 = vmul.f32 %v2369, %v2374
    %v2412 = vperm.slane %v2117, 0
    %v2413 = vperm.slane %v2117, 1
    %v2414 = vperm.slane %v2117, 2
    %v2415 = vperm.slane %v2117, 3
    %v2420 = vadd.f32 %v2379, %v2412
    %v2421 = vadd.f32 %v2380, %v2413
    %v2422 = vadd.f32 %v2381, %v2414
    %v2423 = vadd.f32 %v2382, %v2415
    %v2424 = vadd.f32 %v2383, %v2412
    %v2425 = vadd.f32 %v2384, %v2413
    %v2426 = vadd.f32 %v2385, %v2414
    %v2427 = vadd.f32 %v2386, %v2415
    %v2428 = vadd.f32 %v2387, %v2412
    %v2429 = vadd.f32 %v2388, %v2413
    %v2430 = vadd.f32 %v2389, %v2414
    %v2431 = vadd.f32 %v2390, %v2415
    %v2432 = vadd.f32 %v2391, %v2412
    %v2433 = vadd.f32 %v2392, %v2413
    %v2434 = vadd.f32 %v2393, %v2414
    %v2435 = vadd.f32 %v2394, %v2415
    %v2436 = vadd.f32 %v2395, %v2412
    %v2437 = vadd.f32 %v2396, %v2413
    %v2438 = vadd.f32 %v2397, %v2414
    %v2439 = vadd.f32 %v2398, %v2415
    %v2440 = vadd.f32 %v2399, %v2412
    %v2441 = vadd.f32 %v2400, %v2413
    %v2442 = vadd.f32 %v2401, %v2414
    %v2443 = vadd.f32 %v2402, %v2415
    %v2444 = vadd.f32 %v2403, %v2412
    %v2445 = vadd.f32 %v2404, %v2413
    %v2446 = vadd.f32 %v2405, %v2414
    %v2447 = vadd.f32 %v2406, %v2415
    %v2448 = vadd.f32 %v2407, %v2412
    %v2449 = vadd.f32 %v2408, %v2413
    %v2450 = vadd.f32 %v2409, %v2414
    %v2451 = vadd.f32 %v2410, %v2415
    %v2452 = vmax.f32 %v2420, 0.0
    %v2453 = vmax.f32 %v2421, 0.0
    %v2454 = vmax.f32 %v2422, 0.0
    %v2455 = vmax.f32 %v2423, 0.0
    %v2456 = vmax.f32 %v2424, 0.0
    %v2457 = vmax.f32 %v2425, 0.0
    %v2458 = vmax.f32 %v2426, 0.0
    %v2459 = vmax.f32 %v2427, 0.0
    %v2460 = vmax.f32 %v2428, 0.0
    %v2461 = vmax.f32 %v2429, 0.0
    %v2462 = vmax.f32 %v2430, 0.0
    %v2463 = vmax.f32 %v2431, 0.0
    %v2464 = vmax.f32 %v2432, 0.0
    %v2465 = vmax.f32 %v2433, 0.0
    %v2466 = vmax.f32 %v2434, 0.0
    %v2467 = vmax.f32 %v2435, 0.0
    %v2468 = vmax.f32 %v2436, 0.0
    %v2469 = vmax.f32 %v2437, 0.0
    %v2470 = vmax.f32 %v2438, 0.0
    %v2471 = vmax.f32 %v2439, 0.0
    %v2472 = vmax.f32 %v2440, 0.0
    %v2473 = vmax.f32 %v2441, 0.0
    %v2474 = vmax.f32 %v2442, 0.0
    %v2475 = vmax.f32 %v2443, 0.0
    %v2476 = vmax.f32 %v2444, 0.0
    %v2477 = vmax.f32 %v2445, 0.0
    %v2478 = vmax.f32 %v2446, 0.0
    %v2479 = vmax.f32 %v2447, 0.0
    %v2480 = vmax.f32 %v2448, 0.0
    %v2481 = vmax.f32 %v2449, 0.0
    %v2482 = vmax.f32 %v2450, 0.0
    %v2483 = vmax.f32 %v2451, 0.0
    %v2484 = vpack.c.bf16 %v2456, %v2452
    %v2485 = vpack.c.bf16 %v2457, %v2453
    %v2486 = vpack.c.bf16 %v2458, %v2454
    %v2487 = vpack.c.bf16 %v2459, %v2455
    %v2488 = vpack.c.bf16 %v2464, %v2460
    %v2489 = vpack.c.bf16 %v2465, %v2461
    %v2490 = vpack.c.bf16 %v2466, %v2462
    %v2491 = vpack.c.bf16 %v2467, %v2463
    %v2492 = vpack.c.bf16 %v2472, %v2468
    %v2493 = vpack.c.bf16 %v2473, %v2469
    %v2494 = vpack.c.bf16 %v2474, %v2470
    %v2495 = vpack.c.bf16 %v2475, %v2471
    %v2496 = vpack.c.bf16 %v2480, %v2476
    %v2497 = vpack.c.bf16 %v2481, %v2477
    %v2498 = vpack.c.bf16 %v2482, %v2478
    %v2499 = vpack.c.bf16 %v2483, %v2479
    %v2500 = vld [vmem:[#allocation13] sm:$0xff]
    %v2501 = vld [vmem:[#allocation13 + $0x8] sm:$0xff]
    %v2502 = vld [vmem:[#allocation13 + $0x10] sm:$0xff]
    %v2503 = vld [vmem:[#allocation13 + $0x18] sm:$0xff]
    %v2504 = vld [vmem:[#allocation13 + $0x20] sm:$0xff]
    %v2505 = vld [vmem:[#allocation13 + $0x28] sm:$0xff]
    %v2506 = vld [vmem:[#allocation13 + $0x30] sm:$0xff]
    %v2507 = vld [vmem:[#allocation13 + $0x38] sm:$0xff]
    %v2508 = vld [vmem:[#allocation13 + $0x40] sm:$0xff]
    %v2509 = vld [vmem:[#allocation13 + $0x48] sm:$0xff]
    %v2510 = vld [vmem:[#allocation13 + $0x50] sm:$0xff]
    %v2511 = vld [vmem:[#allocation13 + $0x58] sm:$0xff]
    %v2512 = vld [vmem:[#allocation13 + $0x60] sm:$0xff]
    %v2513 = vld [vmem:[#allocation13 + $0x68] sm:$0xff]
    %v2514 = vld [vmem:[#allocation13 + $0x70] sm:$0xff]
    %v2515 = vld [vmem:[#allocation13 + $0x78] sm:$0xff]
    %v2516 = vld [vmem:[#allocation13 + $0x80] sm:$0xff]
    %v2517 = vld [vmem:[#allocation13 + $0x88] sm:$0xff]
    %v2518 = vld [vmem:[#allocation13 + $0x90] sm:$0xff]
    %v2519 = vld [vmem:[#allocation13 + $0x98] sm:$0xff]
    %v2520 = vld [vmem:[#allocation13 + $0xa0] sm:$0xff]
    %v2521 = vld [vmem:[#allocation13 + $0xa8] sm:$0xff]
    %v2522 = vld [vmem:[#allocation13 + $0xb0] sm:$0xff]
    %v2523 = vld [vmem:[#allocation13 + $0xb8] sm:$0xff]
    %v2524 = vld [vmem:[#allocation13 + $0xc0] sm:$0xff]
    %v2525 = vld [vmem:[#allocation13 + $0xc8] sm:$0xff]
    %v2526 = vld [vmem:[#allocation13 + $0xd0] sm:$0xff]
    %v2527 = vld [vmem:[#allocation13 + $0xd8] sm:$0xff]
    %v2528 = vld [vmem:[#allocation13 + $0xe0] sm:$0xff]
    %v2529 = vld [vmem:[#allocation13 + $0xe8] sm:$0xff]
    %v2530 = vld [vmem:[#allocation13 + $0xf0] sm:$0xff]
    %v2531 = vld [vmem:[#allocation13 + $0xf8] sm:$0xff]
    %v2532 = vld [vmem:[#allocation13 + $0x100] sm:$0xff]
    %v2533 = vld [vmem:[#allocation13 + $0x108] sm:$0xff]
    %v2534 = vld [vmem:[#allocation13 + $0x110] sm:$0xff]
    %v2535 = vld [vmem:[#allocation13 + $0x118] sm:$0xff]
    %v2536 = vld [vmem:[#allocation13 + $0x120] sm:$0xff]
    %v2537 = vld [vmem:[#allocation13 + $0x128] sm:$0xff]
    %v2538 = vld [vmem:[#allocation13 + $0x130] sm:$0xff]
    %v2539 = vld [vmem:[#allocation13 + $0x138] sm:$0xff]
    %v2540 = vld [vmem:[#allocation13 + $0x140] sm:$0xff]
    %v2541 = vld [vmem:[#allocation13 + $0x148] sm:$0xff]
    %v2542 = vld [vmem:[#allocation13 + $0x150] sm:$0xff]
    %v2543 = vld [vmem:[#allocation13 + $0x158] sm:$0xff]
    %v2544 = vld [vmem:[#allocation13 + $0x160] sm:$0xff]
    %v2545 = vld [vmem:[#allocation13 + $0x168] sm:$0xff]
    %v2546 = vld [vmem:[#allocation13 + $0x170] sm:$0xff]
    %v2547 = vld [vmem:[#allocation13 + $0x178] sm:$0xff]
    %v2548 = vld [vmem:[#allocation13 + $0x180] sm:$0xff]
    %v2549 = vld [vmem:[#allocation13 + $0x188] sm:$0xff]
    %v2550 = vld [vmem:[#allocation13 + $0x190] sm:$0xff]
    %v2551 = vld [vmem:[#allocation13 + $0x198] sm:$0xff]
    %v2552 = vld [vmem:[#allocation13 + $0x1a0] sm:$0xff]
    %v2553 = vld [vmem:[#allocation13 + $0x1a8] sm:$0xff]
    %v2554 = vld [vmem:[#allocation13 + $0x1b0] sm:$0xff]
    %v2555 = vld [vmem:[#allocation13 + $0x1b8] sm:$0xff]
    %v2556 = vld [vmem:[#allocation13 + $0x1c0] sm:$0xff]
    %v2557 = vld [vmem:[#allocation13 + $0x1c8] sm:$0xff]
    %v2558 = vld [vmem:[#allocation13 + $0x1d0] sm:$0xff]
    %v2559 = vld [vmem:[#allocation13 + $0x1d8] sm:$0xff]
    %v2560 = vld [vmem:[#allocation13 + $0x1e0] sm:$0xff]
    %v2561 = vld [vmem:[#allocation13 + $0x1e8] sm:$0xff]
    %v2562 = vld [vmem:[#allocation13 + $0x1f0] sm:$0xff]
    %v2563 = vld [vmem:[#allocation13 + $0x1f8] sm:$0xff]
    %v2564 = vld [vmem:[#allocation13 + $0x200] sm:$0xff]
    %v2565 = vld [vmem:[#allocation13 + $0x208] sm:$0xff]
    %v2566 = vld [vmem:[#allocation13 + $0x210] sm:$0xff]
    %v2567 = vld [vmem:[#allocation13 + $0x218] sm:$0xff]
    %v2568 = vld [vmem:[#allocation13 + $0x220] sm:$0xff]
    %v2569 = vld [vmem:[#allocation13 + $0x228] sm:$0xff]
    %v2570 = vld [vmem:[#allocation13 + $0x230] sm:$0xff]
    %v2571 = vld [vmem:[#allocation13 + $0x238] sm:$0xff]
    %v2572 = vld [vmem:[#allocation13 + $0x240] sm:$0xff]
    %v2573 = vld [vmem:[#allocation13 + $0x248] sm:$0xff]
    %v2574 = vld [vmem:[#allocation13 + $0x250] sm:$0xff]
    %v2575 = vld [vmem:[#allocation13 + $0x258] sm:$0xff]
    %v2576 = vld [vmem:[#allocation13 + $0x260] sm:$0xff]
    %v2577 = vld [vmem:[#allocation13 + $0x268] sm:$0xff]
    %v2578 = vld [vmem:[#allocation13 + $0x270] sm:$0xff]
    %v2579 = vld [vmem:[#allocation13 + $0x278] sm:$0xff]
    %v2580 = vld [vmem:[#allocation13 + $0x280] sm:$0xff]
    %v2581 = vld [vmem:[#allocation13 + $0x288] sm:$0xff]
    %v2582 = vld [vmem:[#allocation13 + $0x290] sm:$0xff]
    %v2583 = vld [vmem:[#allocation13 + $0x298] sm:$0xff]
    %v2584 = vld [vmem:[#allocation13 + $0x2a0] sm:$0xff]
    %v2585 = vld [vmem:[#allocation13 + $0x2a8] sm:$0xff]
    %v2586 = vld [vmem:[#allocation13 + $0x2b0] sm:$0xff]
    %v2587 = vld [vmem:[#allocation13 + $0x2b8] sm:$0xff]
    %v2588 = vld [vmem:[#allocation13 + $0x2c0] sm:$0xff]
    %v2589 = vld [vmem:[#allocation13 + $0x2c8] sm:$0xff]
    %v2590 = vld [vmem:[#allocation13 + $0x2d0] sm:$0xff]
    %v2591 = vld [vmem:[#allocation13 + $0x2d8] sm:$0xff]
    %v2592 = vld [vmem:[#allocation13 + $0x2e0] sm:$0xff]
    %v2593 = vld [vmem:[#allocation13 + $0x2e8] sm:$0xff]
    %v2594 = vld [vmem:[#allocation13 + $0x2f0] sm:$0xff]
    %v2595 = vld [vmem:[#allocation13 + $0x2f8] sm:$0xff]
    %v2596 = vld [vmem:[#allocation13 + $0x300] sm:$0xff]
    %v2597 = vld [vmem:[#allocation13 + $0x308] sm:$0xff]
    %v2598 = vld [vmem:[#allocation13 + $0x310] sm:$0xff]
    %v2599 = vld [vmem:[#allocation13 + $0x318] sm:$0xff]
    %v2600 = vld [vmem:[#allocation13 + $0x320] sm:$0xff]
    %v2601 = vld [vmem:[#allocation13 + $0x328] sm:$0xff]
    %v2602 = vld [vmem:[#allocation13 + $0x330] sm:$0xff]
    %v2603 = vld [vmem:[#allocation13 + $0x338] sm:$0xff]
    %v2604 = vld [vmem:[#allocation13 + $0x340] sm:$0xff]
    %v2605 = vld [vmem:[#allocation13 + $0x348] sm:$0xff]
    %v2606 = vld [vmem:[#allocation13 + $0x350] sm:$0xff]
    %v2607 = vld [vmem:[#allocation13 + $0x358] sm:$0xff]
    %v2608 = vld [vmem:[#allocation13 + $0x360] sm:$0xff]
    %v2609 = vld [vmem:[#allocation13 + $0x368] sm:$0xff]
    %v2610 = vld [vmem:[#allocation13 + $0x370] sm:$0xff]
    %v2611 = vld [vmem:[#allocation13 + $0x378] sm:$0xff]
    %v2612 = vld [vmem:[#allocation13 + $0x380] sm:$0xff]
    %v2613 = vld [vmem:[#allocation13 + $0x388] sm:$0xff]
    %v2614 = vld [vmem:[#allocation13 + $0x390] sm:$0xff]
    %v2615 = vld [vmem:[#allocation13 + $0x398] sm:$0xff]
    %v2616 = vld [vmem:[#allocation13 + $0x3a0] sm:$0xff]
    %v2617 = vld [vmem:[#allocation13 + $0x3a8] sm:$0xff]
    %v2618 = vld [vmem:[#allocation13 + $0x3b0] sm:$0xff]
    %v2619 = vld [vmem:[#allocation13 + $0x3b8] sm:$0xff]
    %v2620 = vld [vmem:[#allocation13 + $0x3c0] sm:$0xff]
    %v2621 = vld [vmem:[#allocation13 + $0x3c8] sm:$0xff]
    %v2622 = vld [vmem:[#allocation13 + $0x3d0] sm:$0xff]
    %v2623 = vld [vmem:[#allocation13 + $0x3d8] sm:$0xff]
    %v2624 = vld [vmem:[#allocation13 + $0x3e0] sm:$0xff]
    %v2625 = vld [vmem:[#allocation13 + $0x3e8] sm:$0xff]
    %v2626 = vld [vmem:[#allocation13 + $0x3f0] sm:$0xff]
    %v2627 = vld [vmem:[#allocation13 + $0x3f8] sm:$0xff]
    %v2756 = vunpack.c.l.b16 %v2500
    %v2757 = vunpack.c.h.b16 %v2500
    %v2758 = vunpack.c.l.b16 %v2501
    %v2759 = vunpack.c.h.b16 %v2501
    %v2760 = vunpack.c.l.b16 %v2502
    %v2761 = vunpack.c.h.b16 %v2502
    %v2762 = vunpack.c.l.b16 %v2503
    %v2763 = vunpack.c.h.b16 %v2503
    %v2764 = vunpack.c.l.b16 %v2504
    %v2765 = vunpack.c.h.b16 %v2504
    %v2766 = vunpack.c.l.b16 %v2505
    %v2767 = vunpack.c.h.b16 %v2505
    %v2768 = vunpack.c.l.b16 %v2506
    %v2769 = vunpack.c.h.b16 %v2506
    %v2770 = vunpack.c.l.b16 %v2507
    %v2771 = vunpack.c.h.b16 %v2507
    %v2772 = vunpack.c.l.b16 %v2508
    %v2773 = vunpack.c.h.b16 %v2508
    %v2774 = vunpack.c.l.b16 %v2509
    %v2775 = vunpack.c.h.b16 %v2509
    %v2776 = vunpack.c.l.b16 %v2510
    %v2777 = vunpack.c.h.b16 %v2510
    %v2778 = vunpack.c.l.b16 %v2511
    %v2779 = vunpack.c.h.b16 %v2511
    %v2780 = vunpack.c.l.b16 %v2512
    %v2781 = vunpack.c.h.b16 %v2512
    %v2782 = vunpack.c.l.b16 %v2513
    %v2783 = vunpack.c.h.b16 %v2513
    %v2784 = vunpack.c.l.b16 %v2514
    %v2785 = vunpack.c.h.b16 %v2514
    %v2786 = vunpack.c.l.b16 %v2515
    %v2787 = vunpack.c.h.b16 %v2515
    %v2788 = vunpack.c.l.b16 %v2516
    %v2789 = vunpack.c.h.b16 %v2516
    %v2790 = vunpack.c.l.b16 %v2517
    %v2791 = vunpack.c.h.b16 %v2517
    %v2792 = vunpack.c.l.b16 %v2518
    %v2793 = vunpack.c.h.b16 %v2518
    %v2794 = vunpack.c.l.b16 %v2519
    %v2795 = vunpack.c.h.b16 %v2519
    %v2796 = vunpack.c.l.b16 %v2520
    %v2797 = vunpack.c.h.b16 %v2520
    %v2798 = vunpack.c.l.b16 %v2521
    %v2799 = vunpack.c.h.b16 %v2521
    %v2800 = vunpack.c.l.b16 %v2522
    %v2801 = vunpack.c.h.b16 %v2522
    %v2802 = vunpack.c.l.b16 %v2523
    %v2803 = vunpack.c.h.b16 %v2523
    %v2804 = vunpack.c.l.b16 %v2524
    %v2805 = vunpack.c.h.b16 %v2524
    %v2806 = vunpack.c.l.b16 %v2525
    %v2807 = vunpack.c.h.b16 %v2525
    %v2808 = vunpack.c.l.b16 %v2526
    %v2809 = vunpack.c.h.b16 %v2526
    %v2810 = vunpack.c.l.b16 %v2527
    %v2811 = vunpack.c.h.b16 %v2527
    %v2812 = vunpack.c.l.b16 %v2528
    %v2813 = vunpack.c.h.b16 %v2528
    %v2814 = vunpack.c.l.b16 %v2529
    %v2815 = vunpack.c.h.b16 %v2529
    %v2816 = vunpack.c.l.b16 %v2530
    %v2817 = vunpack.c.h.b16 %v2530
    %v2818 = vunpack.c.l.b16 %v2531
    %v2819 = vunpack.c.h.b16 %v2531
    %v2820 = vunpack.c.l.b16 %v2532
    %v2821 = vunpack.c.h.b16 %v2532
    %v2822 = vunpack.c.l.b16 %v2533
    %v2823 = vunpack.c.h.b16 %v2533
    %v2824 = vunpack.c.l.b16 %v2534
    %v2825 = vunpack.c.h.b16 %v2534
    %v2826 = vunpack.c.l.b16 %v2535
    %v2827 = vunpack.c.h.b16 %v2535
    %v2828 = vunpack.c.l.b16 %v2536
    %v2829 = vunpack.c.h.b16 %v2536
    %v2830 = vunpack.c.l.b16 %v2537
    %v2831 = vunpack.c.h.b16 %v2537
    %v2832 = vunpack.c.l.b16 %v2538
    %v2833 = vunpack.c.h.b16 %v2538
    %v2834 = vunpack.c.l.b16 %v2539
    %v2835 = vunpack.c.h.b16 %v2539
    %v2836 = vunpack.c.l.b16 %v2540
    %v2837 = vunpack.c.h.b16 %v2540
    %v2838 = vunpack.c.l.b16 %v2541
    %v2839 = vunpack.c.h.b16 %v2541
    %v2840 = vunpack.c.l.b16 %v2542
    %v2841 = vunpack.c.h.b16 %v2542
    %v2842 = vunpack.c.l.b16 %v2543
    %v2843 = vunpack.c.h.b16 %v2543
    %v2844 = vunpack.c.l.b16 %v2544
    %v2845 = vunpack.c.h.b16 %v2544
    %v2846 = vunpack.c.l.b16 %v2545
    %v2847 = vunpack.c.h.b16 %v2545
    %v2848 = vunpack.c.l.b16 %v2546
    %v2849 = vunpack.c.h.b16 %v2546
    %v2850 = vunpack.c.l.b16 %v2547
    %v2851 = vunpack.c.h.b16 %v2547
    %v2852 = vunpack.c.l.b16 %v2548
    %v2853 = vunpack.c.h.b16 %v2548
    %v2854 = vunpack.c.l.b16 %v2549
    %v2855 = vunpack.c.h.b16 %v2549
    %v2856 = vunpack.c.l.b16 %v2550
    %v2857 = vunpack.c.h.b16 %v2550
    %v2858 = vunpack.c.l.b16 %v2551
    %v2859 = vunpack.c.h.b16 %v2551
    %v2860 = vunpack.c.l.b16 %v2552
    %v2861 = vunpack.c.h.b16 %v2552
    %v2862 = vunpack.c.l.b16 %v2553
    %v2863 = vunpack.c.h.b16 %v2553
    %v2864 = vunpack.c.l.b16 %v2554
    %v2865 = vunpack.c.h.b16 %v2554
    %v2866 = vunpack.c.l.b16 %v2555
    %v2867 = vunpack.c.h.b16 %v2555
    %v2868 = vunpack.c.l.b16 %v2556
    %v2869 = vunpack.c.h.b16 %v2556
    %v2870 = vunpack.c.l.b16 %v2557
    %v2871 = vunpack.c.h.b16 %v2557
    %v2872 = vunpack.c.l.b16 %v2558
    %v2873 = vunpack.c.h.b16 %v2558
    %v2874 = vunpack.c.l.b16 %v2559
    %v2875 = vunpack.c.h.b16 %v2559
    %v2876 = vunpack.c.l.b16 %v2560
    %v2877 = vunpack.c.h.b16 %v2560
    %v2878 = vunpack.c.l.b16 %v2561
    %v2879 = vunpack.c.h.b16 %v2561
    %v2880 = vunpack.c.l.b16 %v2562
    %v2881 = vunpack.c.h.b16 %v2562
    %v2882 = vunpack.c.l.b16 %v2563
    %v2883 = vunpack.c.h.b16 %v2563
    %v2884 = vunpack.c.l.b16 %v2564
    %v2885 = vunpack.c.h.b16 %v2564
    %v2886 = vunpack.c.l.b16 %v2565
    %v2887 = vunpack.c.h.b16 %v2565
    %v2888 = vunpack.c.l.b16 %v2566
    %v2889 = vunpack.c.h.b16 %v2566
    %v2890 = vunpack.c.l.b16 %v2567
    %v2891 = vunpack.c.h.b16 %v2567
    %v2892 = vunpack.c.l.b16 %v2568
    %v2893 = vunpack.c.h.b16 %v2568
    %v2894 = vunpack.c.l.b16 %v2569
    %v2895 = vunpack.c.h.b16 %v2569
    %v2896 = vunpack.c.l.b16 %v2570
    %v2897 = vunpack.c.h.b16 %v2570
    %v2898 = vunpack.c.l.b16 %v2571
    %v2899 = vunpack.c.h.b16 %v2571
    %v2900 = vunpack.c.l.b16 %v2572
    %v2901 = vunpack.c.h.b16 %v2572
    %v2902 = vunpack.c.l.b16 %v2573
    %v2903 = vunpack.c.h.b16 %v2573
    %v2904 = vunpack.c.l.b16 %v2574
    %v2905 = vunpack.c.h.b16 %v2574
    %v2906 = vunpack.c.l.b16 %v2575
    %v2907 = vunpack.c.h.b16 %v2575
    %v2908 = vunpack.c.l.b16 %v2576
    %v2909 = vunpack.c.h.b16 %v2576
    %v2910 = vunpack.c.l.b16 %v2577
    %v2911 = vunpack.c.h.b16 %v2577
    %v2912 = vunpack.c.l.b16 %v2578
    %v2913 = vunpack.c.h.b16 %v2578
    %v2914 = vunpack.c.l.b16 %v2579
    %v2915 = vunpack.c.h.b16 %v2579
    %v2916 = vunpack.c.l.b16 %v2580
    %v2917 = vunpack.c.h.b16 %v2580
    %v2918 = vunpack.c.l.b16 %v2581
    %v2919 = vunpack.c.h.b16 %v2581
    %v2920 = vunpack.c.l.b16 %v2582
    %v2921 = vunpack.c.h.b16 %v2582
    %v2922 = vunpack.c.l.b16 %v2583
    %v2923 = vunpack.c.h.b16 %v2583
    %v2924 = vunpack.c.l.b16 %v2584
    %v2925 = vunpack.c.h.b16 %v2584
    %v2926 = vunpack.c.l.b16 %v2585
    %v2927 = vunpack.c.h.b16 %v2585
    %v2928 = vunpack.c.l.b16 %v2586
    %v2929 = vunpack.c.h.b16 %v2586
    %v2930 = vunpack.c.l.b16 %v2587
    %v2931 = vunpack.c.h.b16 %v2587
    %v2932 = vunpack.c.l.b16 %v2588
    %v2933 = vunpack.c.h.b16 %v2588
    %v2934 = vunpack.c.l.b16 %v2589
    %v2935 = vunpack.c.h.b16 %v2589
    %v2936 = vunpack.c.l.b16 %v2590
    %v2937 = vunpack.c.h.b16 %v2590
    %v2938 = vunpack.c.l.b16 %v2591
    %v2939 = vunpack.c.h.b16 %v2591
    %v2940 = vunpack.c.l.b16 %v2592
    %v2941 = vunpack.c.h.b16 %v2592
    %v2942 = vunpack.c.l.b16 %v2593
    %v2943 = vunpack.c.h.b16 %v2593
    %v2944 = vunpack.c.l.b16 %v2594
    %v2945 = vunpack.c.h.b16 %v2594
    %v2946 = vunpack.c.l.b16 %v2595
    %v2947 = vunpack.c.h.b16 %v2595
    %v2948 = vunpack.c.l.b16 %v2596
    %v2949 = vunpack.c.h.b16 %v2596
    %v2950 = vunpack.c.l.b16 %v2597
    %v2951 = vunpack.c.h.b16 %v2597
    %v2952 = vunpack.c.l.b16 %v2598
    %v2953 = vunpack.c.h.b16 %v2598
    %v2954 = vunpack.c.l.b16 %v2599
    %v2955 = vunpack.c.h.b16 %v2599
    %v2956 = vunpack.c.l.b16 %v2600
    %v2957 = vunpack.c.h.b16 %v2600
    %v2958 = vunpack.c.l.b16 %v2601
    %v2959 = vunpack.c.h.b16 %v2601
    %v2960 = vunpack.c.l.b16 %v2602
    %v2961 = vunpack.c.h.b16 %v2602
    %v2962 = vunpack.c.l.b16 %v2603
    %v2963 = vunpack.c.h.b16 %v2603
    %v2964 = vunpack.c.l.b16 %v2604
    %v2965 = vunpack.c.h.b16 %v2604
    %v2966 = vunpack.c.l.b16 %v2605
    %v2967 = vunpack.c.h.b16 %v2605
    %v2968 = vunpack.c.l.b16 %v2606
    %v2969 = vunpack.c.h.b16 %v2606
    %v2970 = vunpack.c.l.b16 %v2607
    %v2971 = vunpack.c.h.b16 %v2607
    %v2972 = vunpack.c.l.b16 %v2608
    %v2973 = vunpack.c.h.b16 %v2608
    %v2974 = vunpack.c.l.b16 %v2609
    %v2975 = vunpack.c.h.b16 %v2609
    %v2976 = vunpack.c.l.b16 %v2610
    %v2977 = vunpack.c.h.b16 %v2610
    %v2978 = vunpack.c.l.b16 %v2611
    %v2979 = vunpack.c.h.b16 %v2611
    %v2980 = vunpack.c.l.b16 %v2612
    %v2981 = vunpack.c.h.b16 %v2612
    %v2982 = vunpack.c.l.b16 %v2613
    %v2983 = vunpack.c.h.b16 %v2613
    %v2984 = vunpack.c.l.b16 %v2614
    %v2985 = vunpack.c.h.b16 %v2614
    %v2986 = vunpack.c.l.b16 %v2615
    %v2987 = vunpack.c.h.b16 %v2615
    %v2988 = vunpack.c.l.b16 %v2616
    %v2989 = vunpack.c.h.b16 %v2616
    %v2990 = vunpack.c.l.b16 %v2617
    %v2991 = vunpack.c.h.b16 %v2617
    %v2992 = vunpack.c.l.b16 %v2618
    %v2993 = vunpack.c.h.b16 %v2618
    %v2994 = vunpack.c.l.b16 %v2619
    %v2995 = vunpack.c.h.b16 %v2619
    %v2996 = vunpack.c.l.b16 %v2620
    %v2997 = vunpack.c.h.b16 %v2620
    %v2998 = vunpack.c.l.b16 %v2621
    %v2999 = vunpack.c.h.b16 %v2621
    %v3000 = vunpack.c.l.b16 %v2622
    %v3001 = vunpack.c.h.b16 %v2622
    %v3002 = vunpack.c.l.b16 %v2623
    %v3003 = vunpack.c.h.b16 %v2623
    %v3004 = vunpack.c.l.b16 %v2624
    %v3005 = vunpack.c.h.b16 %v2624
    %v3006 = vunpack.c.l.b16 %v2625
    %v3007 = vunpack.c.h.b16 %v2625
    %v3008 = vunpack.c.l.b16 %v2626
    %v3009 = vunpack.c.h.b16 %v2626
    %v3010 = vunpack.c.l.b16 %v2627
    %v3011 = vunpack.c.h.b16 %v2627
    %v3012 = vpack.c.b16 %v2760, %v2756
    %v3013 = vpack.c.b16 %v2761, %v2757
    %v3014 = vpack.c.b16 %v2762, %v2758
    %v3015 = vpack.c.b16 %v2763, %v2759
    %v3016 = vpack.c.b16 %v2768, %v2764
    %v3017 = vpack.c.b16 %v2769, %v2765
    %v3018 = vpack.c.b16 %v2770, %v2766
    %v3019 = vpack.c.b16 %v2771, %v2767
    %v3020 = vpack.c.b16 %v2776, %v2772
    %v3021 = vpack.c.b16 %v2777, %v2773
    %v3022 = vpack.c.b16 %v2778, %v2774
    %v3023 = vpack.c.b16 %v2779, %v2775
    %v3024 = vpack.c.b16 %v2784, %v2780
    %v3025 = vpack.c.b16 %v2785, %v2781
    %v3026 = vpack.c.b16 %v2786, %v2782
    %v3027 = vpack.c.b16 %v2787, %v2783
    %v3028 = vpack.c.b16 %v2792, %v2788
    %v3029 = vpack.c.b16 %v2793, %v2789
    %v3030 = vpack.c.b16 %v2794, %v2790
    %v3031 = vpack.c.b16 %v2795, %v2791
    %v3032 = vpack.c.b16 %v2800, %v2796
    %v3033 = vpack.c.b16 %v2801, %v2797
    %v3034 = vpack.c.b16 %v2802, %v2798
    %v3035 = vpack.c.b16 %v2803, %v2799
    %v3036 = vpack.c.b16 %v2808, %v2804
    %v3037 = vpack.c.b16 %v2809, %v2805
    %v3038 = vpack.c.b16 %v2810, %v2806
    %v3039 = vpack.c.b16 %v2811, %v2807
    %v3040 = vpack.c.b16 %v2816, %v2812
    %v3041 = vpack.c.b16 %v2817, %v2813
    %v3042 = vpack.c.b16 %v2818, %v2814
    %v3043 = vpack.c.b16 %v2819, %v2815
    %v3044 = vpack.c.b16 %v2824, %v2820
    %v3045 = vpack.c.b16 %v2825, %v2821
    %v3046 = vpack.c.b16 %v2826, %v2822
    %v3047 = vpack.c.b16 %v2827, %v2823
    %v3048 = vpack.c.b16 %v2832, %v2828
    %v3049 = vpack.c.b16 %v2833, %v2829
    %v3050 = vpack.c.b16 %v2834, %v2830
    %v3051 = vpack.c.b16 %v2835, %v2831
    %v3052 = vpack.c.b16 %v2840, %v2836
    %v3053 = vpack.c.b16 %v2841, %v2837
    %v3054 = vpack.c.b16 %v2842, %v2838
    %v3055 = vpack.c.b16 %v2843, %v2839
    %v3056 = vpack.c.b16 %v2848, %v2844
    %v3057 = vpack.c.b16 %v2849, %v2845
    %v3058 = vpack.c.b16 %v2850, %v2846
    %v3059 = vpack.c.b16 %v2851, %v2847
    %v3060 = vpack.c.b16 %v2856, %v2852
    %v3061 = vpack.c.b16 %v2857, %v2853
    %v3062 = vpack.c.b16 %v2858, %v2854
    %v3063 = vpack.c.b16 %v2859, %v2855
    %v3064 = vpack.c.b16 %v2864, %v2860
    %v3065 = vpack.c.b16 %v2865, %v2861
    %v3066 = vpack.c.b16 %v2866, %v2862
    %v3067 = vpack.c.b16 %v2867, %v2863
    %v3068 = vpack.c.b16 %v2872, %v2868
    %v3069 = vpack.c.b16 %v2873, %v2869
    %v3070 = vpack.c.b16 %v2874, %v2870
    %v3071 = vpack.c.b16 %v2875, %v2871
    %v3072 = vpack.c.b16 %v2880, %v2876
    %v3073 = vpack.c.b16 %v2881, %v2877
    %v3074 = vpack.c.b16 %v2882, %v2878
    %v3075 = vpack.c.b16 %v2883, %v2879
    %v3076 = vpack.c.b16 %v2888, %v2884
    %v3077 = vpack.c.b16 %v2889, %v2885
    %v3078 = vpack.c.b16 %v2890, %v2886
    %v3079 = vpack.c.b16 %v2891, %v2887
    %v3080 = vpack.c.b16 %v2896, %v2892
    %v3081 = vpack.c.b16 %v2897, %v2893
    %v3082 = vpack.c.b16 %v2898, %v2894
    %v3083 = vpack.c.b16 %v2899, %v2895
    %v3084 = vpack.c.b16 %v2904, %v2900
    %v3085 = vpack.c.b16 %v2905, %v2901
    %v3086 = vpack.c.b16 %v2906, %v2902
    %v3087 = vpack.c.b16 %v2907, %v2903
    %v3088 = vpack.c.b16 %v2912, %v2908
    %v3089 = vpack.c.b16 %v2913, %v2909
    %v3090 = vpack.c.b16 %v2914, %v2910
    %v3091 = vpack.c.b16 %v2915, %v2911
    %v3092 = vpack.c.b16 %v2920, %v2916
    %v3093 = vpack.c.b16 %v2921, %v2917
    %v3094 = vpack.c.b16 %v2922, %v2918
    %v3095 = vpack.c.b16 %v2923, %v2919
    %v3096 = vpack.c.b16 %v2928, %v2924
    %v3097 = vpack.c.b16 %v2929, %v2925
    %v3098 = vpack.c.b16 %v2930, %v2926
    %v3099 = vpack.c.b16 %v2931, %v2927
    %v3100 = vpack.c.b16 %v2936, %v2932
    %v3101 = vpack.c.b16 %v2937, %v2933
    %v3102 = vpack.c.b16 %v2938, %v2934
    %v3103 = vpack.c.b16 %v2939, %v2935
    %v3104 = vpack.c.b16 %v2944, %v2940
    %v3105 = vpack.c.b16 %v2945, %v2941
    %v3106 = vpack.c.b16 %v2946, %v2942
    %v3107 = vpack.c.b16 %v2947, %v2943
    %v3108 = vpack.c.b16 %v2952, %v2948
    %v3109 = vpack.c.b16 %v2953, %v2949
    %v3110 = vpack.c.b16 %v2954, %v2950
    %v3111 = vpack.c.b16 %v2955, %v2951
    %v3112 = vpack.c.b16 %v2960, %v2956
    %v3113 = vpack.c.b16 %v2961, %v2957
    %v3114 = vpack.c.b16 %v2962, %v2958
    %v3115 = vpack.c.b16 %v2963, %v2959
    %v3116 = vpack.c.b16 %v2968, %v2964
    %v3117 = vpack.c.b16 %v2969, %v2965
    %v3118 = vpack.c.b16 %v2970, %v2966
    %v3119 = vpack.c.b16 %v2971, %v2967
    %v3120 = vpack.c.b16 %v2976, %v2972
    %v3121 = vpack.c.b16 %v2977, %v2973
    %v3122 = vpack.c.b16 %v2978, %v2974
    %v3123 = vpack.c.b16 %v2979, %v2975
    %v3124 = vpack.c.b16 %v2984, %v2980
    %v3125 = vpack.c.b16 %v2985, %v2981
    %v3126 = vpack.c.b16 %v2986, %v2982
    %v3127 = vpack.c.b16 %v2987, %v2983
    %v3128 = vpack.c.b16 %v2992, %v2988
    %v3129 = vpack.c.b16 %v2993, %v2989
    %v3130 = vpack.c.b16 %v2994, %v2990
    %v3131 = vpack.c.b16 %v2995, %v2991
    %v3132 = vpack.c.b16 %v3000, %v2996
    %v3133 = vpack.c.b16 %v3001, %v2997
    %v3134 = vpack.c.b16 %v3002, %v2998
    %v3135 = vpack.c.b16 %v3003, %v2999
    %v3136 = vpack.c.b16 %v3008, %v3004
    %v3137 = vpack.c.b16 %v3009, %v3005
    %v3138 = vpack.c.b16 %v3010, %v3006
    %v3139 = vpack.c.b16 %v3011, %v3007
    %3268 = vmatpush.bf16.msra.mxu0 %v3040
    %3269 = vmatpush.bf16.msra.mxu0 %v3036
    %3270 = vmatpush.bf16.msra.mxu0 %v3032
    %3271 = vmatpush.bf16.msra.mxu0 %v3028
    %3272 = vmatpush.bf16.msra.mxu0 %v3024
    %3273 = vmatpush.bf16.msra.mxu0 %v3020
    %3274 = vmatpush.bf16.msra.mxu0 %v3016
    %3275 = vmatpush.bf16.msra.mxu0 %v3012
    %3276 = vmatmul.bf16.gmra.mxu0 %v2484
    %v3277 = vpop.f32.mrf.mxu0
    %v3278 = vadd.f32 0.0, %v3277
    %v3279 = vpop.f32.mrf.mxu0
    %v3280 = vadd.f32 0.0, %v3279
    %3281 = vmatmul.bf16.gmra.mxu0 %v2488
    %v3282 = vpop.f32.mrf.mxu0
    %v3283 = vadd.f32 0.0, %v3282
    %v3284 = vpop.f32.mrf.mxu0
    %v3285 = vadd.f32 0.0, %v3284
    %3286 = vmatmul.bf16.gmra.mxu0 %v2492
    %v3287 = vpop.f32.mrf.mxu0
    %v3288 = vadd.f32 0.0, %v3287
    %v3289 = vpop.f32.mrf.mxu0
    %v3290 = vadd.f32 0.0, %v3289
    %3291 = vmatmul.bf16.gmra.mxu0 %v2496
    %v3292 = vpop.f32.mrf.mxu0
    %v3293 = vadd.f32 0.0, %v3292
    %v3294 = vpop.f32.mrf.mxu0
    %v3295 = vadd.f32 0.0, %v3294
    %3296 = vdwg.mxu0
    %3297 = vmatpush.bf16.msra.mxu0 %v3072
    %3298 = vmatpush.bf16.msra.mxu0 %v3068
    %3299 = vmatpush.bf16.msra.mxu0 %v3064
    %3300 = vmatpush.bf16.msra.mxu0 %v3060
    %3301 = vmatpush.bf16.msra.mxu0 %v3056
    %3302 = vmatpush.bf16.msra.mxu0 %v3052
    %3303 = vmatpush.bf16.msra.mxu0 %v3048
    %3304 = vmatpush.bf16.msra.mxu0 %v3044
    %3305 = vmatmul.bf16.gmra.mxu0 %v2485
    %v3306 = vpop.f32.mrf.mxu0
    %v3307 = vadd.f32 %v3278, %v3306
    %v3308 = vpop.f32.mrf.mxu0
    %v3309 = vadd.f32 %v3280, %v3308
    %3310 = vmatmul.bf16.gmra.mxu0 %v2489
    %v3311 = vpop.f32.mrf.mxu0
    %v3312 = vadd.f32 %v3283, %v3311
    %v3313 = vpop.f32.mrf.mxu0
    %v3314 = vadd.f32 %v3285, %v3313
    %3315 = vmatmul.bf16.gmra.mxu0 %v2493
    %v3316 = vpop.f32.mrf.mxu0
    %v3317 = vadd.f32 %v3288, %v3316
    %v3318 = vpop.f32.mrf.mxu0
    %v3319 = vadd.f32 %v3290, %v3318
    %3320 = vmatmul.bf16.gmra.mxu0 %v2497
    %v3321 = vpop.f32.mrf.mxu0
    %v3322 = vadd.f32 %v3293, %v3321
    %v3323 = vpop.f32.mrf.mxu0
    %v3324 = vadd.f32 %v3295, %v3323
    %3325 = vdwg.mxu0
    %3326 = vmatpush.bf16.msra.mxu0 %v3104
    %3327 = vmatpush.bf16.msra.mxu0 %v3100
    %3328 = vmatpush.bf16.msra.mxu0 %v3096
    %3329 = vmatpush.bf16.msra.mxu0 %v3092
    %3330 = vmatpush.bf16.msra.mxu0 %v3088
    %3331 = vmatpush.bf16.msra.mxu0 %v3084
    %3332 = vmatpush.bf16.msra.mxu0 %v3080
    %3333 = vmatpush.bf16.msra.mxu0 %v3076
    %3334 = vmatmul.bf16.gmra.mxu0 %v2486
    %v3335 = vpop.f32.mrf.mxu0
    %v3336 = vadd.f32 %v3307, %v3335
    %v3337 = vpop.f32.mrf.mxu0
    %v3338 = vadd.f32 %v3309, %v3337
    %3339 = vmatmul.bf16.gmra.mxu0 %v2490
    %v3340 = vpop.f32.mrf.mxu0
    %v3341 = vadd.f32 %v3312, %v3340
    %v3342 = vpop.f32.mrf.mxu0
    %v3343 = vadd.f32 %v3314, %v3342
    %3344 = vmatmul.bf16.gmra.mxu0 %v2494
    %v3345 = vpop.f32.mrf.mxu0
    %v3346 = vadd.f32 %v3317, %v3345
    %v3347 = vpop.f32.mrf.mxu0
    %v3348 = vadd.f32 %v3319, %v3347
    %3349 = vmatmul.bf16.gmra.mxu0 %v2498
    %v3350 = vpop.f32.mrf.mxu0
    %v3351 = vadd.f32 %v3322, %v3350
    %v3352 = vpop.f32.mrf.mxu0
    %v3353 = vadd.f32 %v3324, %v3352
    %3354 = vdwg.mxu0
    %3355 = vmatpush.bf16.msra.mxu0 %v3136
    %3356 = vmatpush.bf16.msra.mxu0 %v3132
    %3357 = vmatpush.bf16.msra.mxu0 %v3128
    %3358 = vmatpush.bf16.msra.mxu0 %v3124
    %3359 = vmatpush.bf16.msra.mxu0 %v3120
    %3360 = vmatpush.bf16.msra.mxu0 %v3116
    %3361 = vmatpush.bf16.msra.mxu0 %v3112
    %3362 = vmatpush.bf16.msra.mxu0 %v3108
    %3363 = vmatmul.bf16.gmra.mxu0 %v2487
    %v3364 = vpop.f32.mrf.mxu0
    %v3365 = vadd.f32 %v3336, %v3364
    %v3366 = vpop.f32.mrf.mxu0
    %v3367 = vadd.f32 %v3338, %v3366
    %3368 = vmatmul.bf16.gmra.mxu0 %v2491
    %v3369 = vpop.f32.mrf.mxu0
    %v3370 = vadd.f32 %v3341, %v3369
    %v3371 = vpop.f32.mrf.mxu0
    %v3372 = vadd.f32 %v3343, %v3371
    %3373 = vmatmul.bf16.gmra.mxu0 %v2495
    %v3374 = vpop.f32.mrf.mxu0
    %v3375 = vadd.f32 %v3346, %v3374
    %v3376 = vpop.f32.mrf.mxu0
    %v3377 = vadd.f32 %v3348, %v3376
    %3378 = vmatmul.bf16.gmra.mxu0 %v2499
    %v3379 = vpop.f32.mrf.mxu0
    %v3380 = vadd.f32 %v3351, %v3379
    %v3381 = vpop.f32.mrf.mxu0
    %v3382 = vadd.f32 %v3353, %v3381
    %3383 = vdwg.mxu0
    %3384 = vmatpush.bf16.msra.mxu0 %v3041
    %3385 = vmatpush.bf16.msra.mxu0 %v3037
    %3386 = vmatpush.bf16.msra.mxu0 %v3033
    %3387 = vmatpush.bf16.msra.mxu0 %v3029
    %3388 = vmatpush.bf16.msra.mxu0 %v3025
    %3389 = vmatpush.bf16.msra.mxu0 %v3021
    %3390 = vmatpush.bf16.msra.mxu0 %v3017
    %3391 = vmatpush.bf16.msra.mxu0 %v3013
    %3392 = vmatmul.bf16.gmra.mxu0 %v2484
    %v3393 = vpop.f32.mrf.mxu0
    %v3394 = vadd.f32 0.0, %v3393
    %v3395 = vpop.f32.mrf.mxu0
    %v3396 = vadd.f32 0.0, %v3395
    %3397 = vmatmul.bf16.gmra.mxu0 %v2488
    %v3398 = vpop.f32.mrf.mxu0
    %v3399 = vadd.f32 0.0, %v3398
    %v3400 = vpop.f32.mrf.mxu0
    %v3401 = vadd.f32 0.0, %v3400
    %3402 = vmatmul.bf16.gmra.mxu0 %v2492
    %v3403 = vpop.f32.mrf.mxu0
    %v3404 = vadd.f32 0.0, %v3403
    %v3405 = vpop.f32.mrf.mxu0
    %v3406 = vadd.f32 0.0, %v3405
    %3407 = vmatmul.bf16.gmra.mxu0 %v2496
    %v3408 = vpop.f32.mrf.mxu0
    %v3409 = vadd.f32 0.0, %v3408
    %v3410 = vpop.f32.mrf.mxu0
    %v3411 = vadd.f32 0.0, %v3410
    %3412 = vdwg.mxu0
    %3413 = vmatpush.bf16.msra.mxu0 %v3073
    %3414 = vmatpush.bf16.msra.mxu0 %v3069
    %3415 = vmatpush.bf16.msra.mxu0 %v3065
    %3416 = vmatpush.bf16.msra.mxu0 %v3061
    %3417 = vmatpush.bf16.msra.mxu0 %v3057
    %3418 = vmatpush.bf16.msra.mxu0 %v3053
    %3419 = vmatpush.bf16.msra.mxu0 %v3049
    %3420 = vmatpush.bf16.msra.mxu0 %v3045
    %3421 = vmatmul.bf16.gmra.mxu0 %v2485
    %v3422 = vpop.f32.mrf.mxu0
    %v3423 = vadd.f32 %v3394, %v3422
    %v3424 = vpop.f32.mrf.mxu0
    %v3425 = vadd.f32 %v3396, %v3424
    %3426 = vmatmul.bf16.gmra.mxu0 %v2489
    %v3427 = vpop.f32.mrf.mxu0
    %v3428 = vadd.f32 %v3399, %v3427
    %v3429 = vpop.f32.mrf.mxu0
    %v3430 = vadd.f32 %v3401, %v3429
    %3431 = vmatmul.bf16.gmra.mxu0 %v2493
    %v3432 = vpop.f32.mrf.mxu0
    %v3433 = vadd.f32 %v3404, %v3432
    %v3434 = vpop.f32.mrf.mxu0
    %v3435 = vadd.f32 %v3406, %v3434
    %3436 = vmatmul.bf16.gmra.mxu0 %v2497
    %v3437 = vpop.f32.mrf.mxu0
    %v3438 = vadd.f32 %v3409, %v3437
    %v3439 = vpop.f32.mrf.mxu0
    %v3440 = vadd.f32 %v3411, %v3439
    %3441 = vdwg.mxu0
    %3442 = vmatpush.bf16.msra.mxu0 %v3105
    %3443 = vmatpush.bf16.msra.mxu0 %v3101
    %3444 = vmatpush.bf16.msra.mxu0 %v3097
    %3445 = vmatpush.bf16.msra.mxu0 %v3093
    %3446 = vmatpush.bf16.msra.mxu0 %v3089
    %3447 = vmatpush.bf16.msra.mxu0 %v3085
    %3448 = vmatpush.bf16.msra.mxu0 %v3081
    %3449 = vmatpush.bf16.msra.mxu0 %v3077
    %3450 = vmatmul.bf16.gmra.mxu0 %v2486
    %v3451 = vpop.f32.mrf.mxu0
    %v3452 = vadd.f32 %v3423, %v3451
    %v3453 = vpop.f32.mrf.mxu0
    %v3454 = vadd.f32 %v3425, %v3453
    %3455 = vmatmul.bf16.gmra.mxu0 %v2490
    %v3456 = vpop.f32.mrf.mxu0
    %v3457 = vadd.f32 %v3428, %v3456
    %v3458 = vpop.f32.mrf.mxu0
    %v3459 = vadd.f32 %v3430, %v3458
    %3460 = vmatmul.bf16.gmra.mxu0 %v2494
    %v3461 = vpop.f32.mrf.mxu0
    %v3462 = vadd.f32 %v3433, %v3461
    %v3463 = vpop.f32.mrf.mxu0
    %v3464 = vadd.f32 %v3435, %v3463
    %3465 = vmatmul.bf16.gmra.mxu0 %v2498
    %v3466 = vpop.f32.mrf.mxu0
    %v3467 = vadd.f32 %v3438, %v3466
    %v3468 = vpop.f32.mrf.mxu0
    %v3469 = vadd.f32 %v3440, %v3468
    %3470 = vdwg.mxu0
    %3471 = vmatpush.bf16.msra.mxu0 %v3137
    %3472 = vmatpush.bf16.msra.mxu0 %v3133
    %3473 = vmatpush.bf16.msra.mxu0 %v3129
    %3474 = vmatpush.bf16.msra.mxu0 %v3125
    %3475 = vmatpush.bf16.msra.mxu0 %v3121
    %3476 = vmatpush.bf16.msra.mxu0 %v3117
    %3477 = vmatpush.bf16.msra.mxu0 %v3113
    %3478 = vmatpush.bf16.msra.mxu0 %v3109
    %3479 = vmatmul.bf16.gmra.mxu0 %v2487
    %v3480 = vpop.f32.mrf.mxu0
    %v3481 = vadd.f32 %v3452, %v3480
    %v3482 = vpop.f32.mrf.mxu0
    %v3483 = vadd.f32 %v3454, %v3482
    %3484 = vmatmul.bf16.gmra.mxu0 %v2491
    %v3485 = vpop.f32.mrf.mxu0
    %v3486 = vadd.f32 %v3457, %v3485
    %v3487 = vpop.f32.mrf.mxu0
    %v3488 = vadd.f32 %v3459, %v3487
    %3489 = vmatmul.bf16.gmra.mxu0 %v2495
    %v3490 = vpop.f32.mrf.mxu0
    %v3491 = vadd.f32 %v3462, %v3490
    %v3492 = vpop.f32.mrf.mxu0
    %v3493 = vadd.f32 %v3464, %v3492
    %3494 = vmatmul.bf16.gmra.mxu0 %v2499
    %v3495 = vpop.f32.mrf.mxu0
    %v3496 = vadd.f32 %v3467, %v3495
    %v3497 = vpop.f32.mrf.mxu0
    %v3498 = vadd.f32 %v3469, %v3497
    %3499 = vdwg.mxu0
    %3500 = vmatpush.bf16.msra.mxu0 %v3042
    %3501 = vmatpush.bf16.msra.mxu0 %v3038
    %3502 = vmatpush.bf16.msra.mxu0 %v3034
    %3503 = vmatpush.bf16.msra.mxu0 %v3030
    %3504 = vmatpush.bf16.msra.mxu0 %v3026
    %3505 = vmatpush.bf16.msra.mxu0 %v3022
    %3506 = vmatpush.bf16.msra.mxu0 %v3018
    %3507 = vmatpush.bf16.msra.mxu0 %v3014
    %3508 = vmatmul.bf16.gmra.mxu0 %v2484
    %v3509 = vpop.f32.mrf.mxu0
    %v3510 = vadd.f32 0.0, %v3509
    %v3511 = vpop.f32.mrf.mxu0
    %v3512 = vadd.f32 0.0, %v3511
    %3513 = vmatmul.bf16.gmra.mxu0 %v2488
    %v3514 = vpop.f32.mrf.mxu0
    %v3515 = vadd.f32 0.0, %v3514
    %v3516 = vpop.f32.mrf.mxu0
    %v3517 = vadd.f32 0.0, %v3516
    %3518 = vmatmul.bf16.gmra.mxu0 %v2492
    %v3519 = vpop.f32.mrf.mxu0
    %v3520 = vadd.f32 0.0, %v3519
    %v3521 = vpop.f32.mrf.mxu0
    %v3522 = vadd.f32 0.0, %v3521
    %3523 = vmatmul.bf16.gmra.mxu0 %v2496
    %v3524 = vpop.f32.mrf.mxu0
    %v3525 = vadd.f32 0.0, %v3524
    %v3526 = vpop.f32.mrf.mxu0
    %v3527 = vadd.f32 0.0, %v3526
    %3528 = vdwg.mxu0
    %3529 = vmatpush.bf16.msra.mxu0 %v3074
    %3530 = vmatpush.bf16.msra.mxu0 %v3070
    %3531 = vmatpush.bf16.msra.mxu0 %v3066
    %3532 = vmatpush.bf16.msra.mxu0 %v3062
    %3533 = vmatpush.bf16.msra.mxu0 %v3058
    %3534 = vmatpush.bf16.msra.mxu0 %v3054
    %3535 = vmatpush.bf16.msra.mxu0 %v3050
    %3536 = vmatpush.bf16.msra.mxu0 %v3046
    %3537 = vmatmul.bf16.gmra.mxu0 %v2485
    %v3538 = vpop.f32.mrf.mxu0
    %v3539 = vadd.f32 %v3510, %v3538
    %v3540 = vpop.f32.mrf.mxu0
    %v3541 = vadd.f32 %v3512, %v3540
    %3542 = vmatmul.bf16.gmra.mxu0 %v2489
    %v3543 = vpop.f32.mrf.mxu0
    %v3544 = vadd.f32 %v3515, %v3543
    %v3545 = vpop.f32.mrf.mxu0
    %v3546 = vadd.f32 %v3517, %v3545
    %3547 = vmatmul.bf16.gmra.mxu0 %v2493
    %v3548 = vpop.f32.mrf.mxu0
    %v3549 = vadd.f32 %v3520, %v3548
    %v3550 = vpop.f32.mrf.mxu0
    %v3551 = vadd.f32 %v3522, %v3550
    %3552 = vmatmul.bf16.gmra.mxu0 %v2497
    %v3553 = vpop.f32.mrf.mxu0
    %v3554 = vadd.f32 %v3525, %v3553
    %v3555 = vpop.f32.mrf.mxu0
    %v3556 = vadd.f32 %v3527, %v3555
    %3557 = vdwg.mxu0
    %3558 = vmatpush.bf16.msra.mxu0 %v3106
    %3559 = vmatpush.bf16.msra.mxu0 %v3102
    %3560 = vmatpush.bf16.msra.mxu0 %v3098
    %3561 = vmatpush.bf16.msra.mxu0 %v3094
    %3562 = vmatpush.bf16.msra.mxu0 %v3090
    %3563 = vmatpush.bf16.msra.mxu0 %v3086
    %3564 = vmatpush.bf16.msra.mxu0 %v3082
    %3565 = vmatpush.bf16.msra.mxu0 %v3078
    %3566 = vmatmul.bf16.gmra.mxu0 %v2486
    %v3567 = vpop.f32.mrf.mxu0
    %v3568 = vadd.f32 %v3539, %v3567
    %v3569 = vpop.f32.mrf.mxu0
    %v3570 = vadd.f32 %v3541, %v3569
    %3571 = vmatmul.bf16.gmra.mxu0 %v2490
    %v3572 = vpop.f32.mrf.mxu0
    %v3573 = vadd.f32 %v3544, %v3572
    %v3574 = vpop.f32.mrf.mxu0
    %v3575 = vadd.f32 %v3546, %v3574
    %3576 = vmatmul.bf16.gmra.mxu0 %v2494
    %v3577 = vpop.f32.mrf.mxu0
    %v3578 = vadd.f32 %v3549, %v3577
    %v3579 = vpop.f32.mrf.mxu0
    %v3580 = vadd.f32 %v3551, %v3579
    %3581 = vmatmul.bf16.gmra.mxu0 %v2498
    %v3582 = vpop.f32.mrf.mxu0
    %v3583 = vadd.f32 %v3554, %v3582
    %v3584 = vpop.f32.mrf.mxu0
    %v3585 = vadd.f32 %v3556, %v3584
    %3586 = vdwg.mxu0
    %3587 = vmatpush.bf16.msra.mxu0 %v3138
    %3588 = vmatpush.bf16.msra.mxu0 %v3134
    %3589 = vmatpush.bf16.msra.mxu0 %v3130
    %3590 = vmatpush.bf16.msra.mxu0 %v3126
    %3591 = vmatpush.bf16.msra.mxu0 %v3122
    %3592 = vmatpush.bf16.msra.mxu0 %v3118
    %3593 = vmatpush.bf16.msra.mxu0 %v3114
    %3594 = vmatpush.bf16.msra.mxu0 %v3110
    %3595 = vmatmul.bf16.gmra.mxu0 %v2487
    %v3596 = vpop.f32.mrf.mxu0
    %v3597 = vadd.f32 %v3568, %v3596
    %v3598 = vpop.f32.mrf.mxu0
    %v3599 = vadd.f32 %v3570, %v3598
    %3600 = vmatmul.bf16.gmra.mxu0 %v2491
    %v3601 = vpop.f32.mrf.mxu0
    %v3602 = vadd.f32 %v3573, %v3601
    %v3603 = vpop.f32.mrf.mxu0
    %v3604 = vadd.f32 %v3575, %v3603
    %3605 = vmatmul.bf16.gmra.mxu0 %v2495
    %v3606 = vpop.f32.mrf.mxu0
    %v3607 = vadd.f32 %v3578, %v3606
    %v3608 = vpop.f32.mrf.mxu0
    %v3609 = vadd.f32 %v3580, %v3608
    %3610 = vmatmul.bf16.gmra.mxu0 %v2499
    %v3611 = vpop.f32.mrf.mxu0
    %v3612 = vadd.f32 %v3583, %v3611
    %v3613 = vpop.f32.mrf.mxu0
    %v3614 = vadd.f32 %v3585, %v3613
    %3615 = vdwg.mxu0
    %3616 = vmatpush.bf16.msra.mxu0 %v3043
    %3617 = vmatpush.bf16.msra.mxu0 %v3039
    %3618 = vmatpush.bf16.msra.mxu0 %v3035
    %3619 = vmatpush.bf16.msra.mxu0 %v3031
    %3620 = vmatpush.bf16.msra.mxu0 %v3027
    %3621 = vmatpush.bf16.msra.mxu0 %v3023
    %3622 = vmatpush.bf16.msra.mxu0 %v3019
    %3623 = vmatpush.bf16.msra.mxu0 %v3015
    %3624 = vmatmul.bf16.gmra.mxu0 %v2484
    %v3625 = vpop.f32.mrf.mxu0
    %v3626 = vadd.f32 0.0, %v3625
    %v3627 = vpop.f32.mrf.mxu0
    %v3628 = vadd.f32 0.0, %v3627
    %3629 = vmatmul.bf16.gmra.mxu0 %v2488
    %v3630 = vpop.f32.mrf.mxu0
    %v3631 = vadd.f32 0.0, %v3630
    %v3632 = vpop.f32.mrf.mxu0
    %v3633 = vadd.f32 0.0, %v3632
    %3634 = vmatmul.bf16.gmra.mxu0 %v2492
    %v3635 = vpop.f32.mrf.mxu0
    %v3636 = vadd.f32 0.0, %v3635
    %v3637 = vpop.f32.mrf.mxu0
    %v3638 = vadd.f32 0.0, %v3637
    %3639 = vmatmul.bf16.gmra.mxu0 %v2496
    %v3640 = vpop.f32.mrf.mxu0
    %v3641 = vadd.f32 0.0, %v3640
    %v3642 = vpop.f32.mrf.mxu0
    %v3643 = vadd.f32 0.0, %v3642
    %3644 = vdwg.mxu0
    %3645 = vmatpush.bf16.msra.mxu0 %v3075
    %3646 = vmatpush.bf16.msra.mxu0 %v3071
    %3647 = vmatpush.bf16.msra.mxu0 %v3067
    %3648 = vmatpush.bf16.msra.mxu0 %v3063
    %3649 = vmatpush.bf16.msra.mxu0 %v3059
    %3650 = vmatpush.bf16.msra.mxu0 %v3055
    %3651 = vmatpush.bf16.msra.mxu0 %v3051
    %3652 = vmatpush.bf16.msra.mxu0 %v3047
    %3653 = vmatmul.bf16.gmra.mxu0 %v2485
    %v3654 = vpop.f32.mrf.mxu0
    %v3655 = vadd.f32 %v3626, %v3654
    %v3656 = vpop.f32.mrf.mxu0
    %v3657 = vadd.f32 %v3628, %v3656
    %3658 = vmatmul.bf16.gmra.mxu0 %v2489
    %v3659 = vpop.f32.mrf.mxu0
    %v3660 = vadd.f32 %v3631, %v3659
    %v3661 = vpop.f32.mrf.mxu0
    %v3662 = vadd.f32 %v3633, %v3661
    %3663 = vmatmul.bf16.gmra.mxu0 %v2493
    %v3664 = vpop.f32.mrf.mxu0
    %v3665 = vadd.f32 %v3636, %v3664
    %v3666 = vpop.f32.mrf.mxu0
    %v3667 = vadd.f32 %v3638, %v3666
    %3668 = vmatmul.bf16.gmra.mxu0 %v2497
    %v3669 = vpop.f32.mrf.mxu0
    %v3670 = vadd.f32 %v3641, %v3669
    %v3671 = vpop.f32.mrf.mxu0
    %v3672 = vadd.f32 %v3643, %v3671
    %3673 = vdwg.mxu0
    %3674 = vmatpush.bf16.msra.mxu0 %v3107
    %3675 = vmatpush.bf16.msra.mxu0 %v3103
    %3676 = vmatpush.bf16.msra.mxu0 %v3099
    %3677 = vmatpush.bf16.msra.mxu0 %v3095
    %3678 = vmatpush.bf16.msra.mxu0 %v3091
    %3679 = vmatpush.bf16.msra.mxu0 %v3087
    %3680 = vmatpush.bf16.msra.mxu0 %v3083
    %3681 = vmatpush.bf16.msra.mxu0 %v3079
    %3682 = vmatmul.bf16.gmra.mxu0 %v2486
    %v3683 = vpop.f32.mrf.mxu0
    %v3684 = vadd.f32 %v3655, %v3683
    %v3685 = vpop.f32.mrf.mxu0
    %v3686 = vadd.f32 %v3657, %v3685
    %3687 = vmatmul.bf16.gmra.mxu0 %v2490
    %v3688 = vpop.f32.mrf.mxu0
    %v3689 = vadd.f32 %v3660, %v3688
    %v3690 = vpop.f32.mrf.mxu0
    %v3691 = vadd.f32 %v3662, %v3690
    %3692 = vmatmul.bf16.gmra.mxu0 %v2494
    %v3693 = vpop.f32.mrf.mxu0
    %v3694 = vadd.f32 %v3665, %v3693
    %v3695 = vpop.f32.mrf.mxu0
    %v3696 = vadd.f32 %v3667, %v3695
    %3697 = vmatmul.bf16.gmra.mxu0 %v2498
    %v3698 = vpop.f32.mrf.mxu0
    %v3699 = vadd.f32 %v3670, %v3698
    %v3700 = vpop.f32.mrf.mxu0
    %v3701 = vadd.f32 %v3672, %v3700
    %3702 = vdwg.mxu0
    %3703 = vmatpush.bf16.msra.mxu0 %v3139
    %3704 = vmatpush.bf16.msra.mxu0 %v3135
    %3705 = vmatpush.bf16.msra.mxu0 %v3131
    %3706 = vmatpush.bf16.msra.mxu0 %v3127
    %3707 = vmatpush.bf16.msra.mxu0 %v3123
    %3708 = vmatpush.bf16.msra.mxu0 %v3119
    %3709 = vmatpush.bf16.msra.mxu0 %v3115
    %3710 = vmatpush.bf16.msra.mxu0 %v3111
    %3711 = vmatmul.bf16.gmra.mxu0 %v2487
    %v3712 = vpop.f32.mrf.mxu0
    %v3713 = vadd.f32 %v3684, %v3712
    %v3714 = vpop.f32.mrf.mxu0
    %v3715 = vadd.f32 %v3686, %v3714
    %3716 = vmatmul.bf16.gmra.mxu0 %v2491
    %v3717 = vpop.f32.mrf.mxu0
    %v3718 = vadd.f32 %v3689, %v3717
    %v3719 = vpop.f32.mrf.mxu0
    %v3720 = vadd.f32 %v3691, %v3719
    %3721 = vmatmul.bf16.gmra.mxu0 %v2495
    %v3722 = vpop.f32.mrf.mxu0
    %v3723 = vadd.f32 %v3694, %v3722
    %v3724 = vpop.f32.mrf.mxu0
    %v3725 = vadd.f32 %v3696, %v3724
    %3726 = vmatmul.bf16.gmra.mxu0 %v2499
    %v3727 = vpop.f32.mrf.mxu0
    %v3728 = vadd.f32 %v3699, %v3727
    %v3729 = vpop.f32.mrf.mxu0
    %v3730 = vadd.f32 %v3701, %v3729
    %3731 = vdwg.mxu0
    %v3732 = vld [vmem:[#allocation14] sm:$0xf]
    %v3733 = vld [vmem:[%s9] sm:$0xf]
    %v3734 = vadd.f32 %v3365, %v3367
    %v3735 = vadd.f32 %v3734, %v3370
    %v3736 = vadd.f32 %v3735, %v3372
    %v3737 = vadd.f32 %v3736, %v3375
    %v3738 = vadd.f32 %v3737, %v3377
    %v3739 = vadd.f32 %v3738, %v3380
    %v3740 = vadd.f32 %v3739, %v3382
    %v3741 = vrot.slane %v3740, 4
    %v3742 = vadd.f32 %v3740, %v3741
    %v3743 = vrot.slane %v3742, 2
    %v3744 = vadd.f32 %v3742, %v3743
    %v3745 = vrot.slane %v3744, 1
    %v3746 = vadd.f32 %v3744, %v3745
    %v3747 = vadd.f32 %v3481, %v3483
    %v3748 = vadd.f32 %v3747, %v3486
    %v3749 = vadd.f32 %v3748, %v3488
    %v3750 = vadd.f32 %v3749, %v3491
    %v3751 = vadd.f32 %v3750, %v3493
    %v3752 = vadd.f32 %v3751, %v3496
    %v3753 = vadd.f32 %v3752, %v3498
    %v3754 = vrot.slane %v3753, 4
    %v3755 = vadd.f32 %v3753, %v3754
    %v3756 = vrot.slane %v3755, 2
    %v3757 = vadd.f32 %v3755, %v3756
    %v3758 = vrot.slane %v3757, 1
    %v3759 = vadd.f32 %v3757, %v3758
    %v3760 = vadd.f32 %v3597, %v3599
    %v3761 = vadd.f32 %v3760, %v3602
    %v3762 = vadd.f32 %v3761, %v3604
    %v3763 = vadd.f32 %v3762, %v3607
    %v3764 = vadd.f32 %v3763, %v3609
    %v3765 = vadd.f32 %v3764, %v3612
    %v3766 = vadd.f32 %v3765, %v3614
    %v3767 = vrot.slane %v3766, 4
    %v3768 = vadd.f32 %v3766, %v3767
    %v3769 = vrot.slane %v3768, 2
    %v3770 = vadd.f32 %v3768, %v3769
    %v3771 = vrot.slane %v3770, 1
    %v3772 = vadd.f32 %v3770, %v3771
    %v3773 = vadd.f32 %v3713, %v3715
    %v3774 = vadd.f32 %v3773, %v3718
    %v3775 = vadd.f32 %v3774, %v3720
    %v3776 = vadd.f32 %v3775, %v3723
    %v3777 = vadd.f32 %v3776, %v3725
    %v3778 = vadd.f32 %v3777, %v3728
    %v3779 = vadd.f32 %v3778, %v3730
    %v3780 = vrot.slane %v3779, 4
    %v3781 = vadd.f32 %v3779, %v3780
    %v3782 = vrot.slane %v3781, 2
    %v3783 = vadd.f32 %v3781, %v3782
    %v3784 = vrot.slane %v3783, 1
    %v3785 = vadd.f32 %v3783, %v3784
    %v3786 = vmul.f32 %v3746, %v553
    %v3787 = vmul.f32 %v3759, %v553
    %v3788 = vmul.f32 %v3772, %v553
    %v3789 = vmul.f32 %v3785, %v553
    %v3790 = vsub.f32 %v3365, %v3786
    %v3791 = vsub.f32 %v3481, %v3787
    %v3792 = vsub.f32 %v3597, %v3788
    %v3793 = vsub.f32 %v3713, %v3789
    %v3794 = vsub.f32 %v3367, %v3786
    %v3795 = vsub.f32 %v3483, %v3787
    %v3796 = vsub.f32 %v3599, %v3788
    %v3797 = vsub.f32 %v3715, %v3789
    %v3798 = vsub.f32 %v3370, %v3786
    %v3799 = vsub.f32 %v3486, %v3787
    %v3800 = vsub.f32 %v3602, %v3788
    %v3801 = vsub.f32 %v3718, %v3789
    %v3802 = vsub.f32 %v3372, %v3786
    %v3803 = vsub.f32 %v3488, %v3787
    %v3804 = vsub.f32 %v3604, %v3788
    %v3805 = vsub.f32 %v3720, %v3789
    %v3806 = vsub.f32 %v3375, %v3786
    %v3807 = vsub.f32 %v3491, %v3787
    %v3808 = vsub.f32 %v3607, %v3788
    %v3809 = vsub.f32 %v3723, %v3789
    %v3810 = vsub.f32 %v3377, %v3786
    %v3811 = vsub.f32 %v3493, %v3787
    %v3812 = vsub.f32 %v3609, %v3788
    %v3813 = vsub.f32 %v3725, %v3789
    %v3814 = vsub.f32 %v3380, %v3786
    %v3815 = vsub.f32 %v3496, %v3787
    %v3816 = vsub.f32 %v3612, %v3788
    %v3817 = vsub.f32 %v3728, %v3789
    %v3818 = vsub.f32 %v3382, %v3786
    %v3819 = vsub.f32 %v3498, %v3787
    %v3820 = vsub.f32 %v3614, %v3788
    %v3821 = vsub.f32 %v3730, %v3789
    %v3822 = vmul.f32 %v3790, %v3790
    %v3823 = vmul.f32 %v3791, %v3791
    %v3824 = vmul.f32 %v3792, %v3792
    %v3825 = vmul.f32 %v3793, %v3793
    %v3826 = vmul.f32 %v3794, %v3794
    %v3827 = vmul.f32 %v3795, %v3795
    %v3828 = vmul.f32 %v3796, %v3796
    %v3829 = vmul.f32 %v3797, %v3797
    %v3830 = vmul.f32 %v3798, %v3798
    %v3831 = vmul.f32 %v3799, %v3799
    %v3832 = vmul.f32 %v3800, %v3800
    %v3833 = vmul.f32 %v3801, %v3801
    %v3834 = vmul.f32 %v3802, %v3802
    %v3835 = vmul.f32 %v3803, %v3803
    %v3836 = vmul.f32 %v3804, %v3804
    %v3837 = vmul.f32 %v3805, %v3805
    %v3838 = vmul.f32 %v3806, %v3806
    %v3839 = vmul.f32 %v3807, %v3807
    %v3840 = vmul.f32 %v3808, %v3808
    %v3841 = vmul.f32 %v3809, %v3809
    %v3842 = vmul.f32 %v3810, %v3810
    %v3843 = vmul.f32 %v3811, %v3811
    %v3844 = vmul.f32 %v3812, %v3812
    %v3845 = vmul.f32 %v3813, %v3813
    %v3846 = vmul.f32 %v3814, %v3814
    %v3847 = vmul.f32 %v3815, %v3815
    %v3848 = vmul.f32 %v3816, %v3816
    %v3849 = vmul.f32 %v3817, %v3817
    %v3850 = vmul.f32 %v3818, %v3818
    %v3851 = vmul.f32 %v3819, %v3819
    %v3852 = vmul.f32 %v3820, %v3820
    %v3853 = vmul.f32 %v3821, %v3821
    %v3854 = vadd.f32 %v3822, %v3826
    %v3855 = vadd.f32 %v3854, %v3830
    %v3856 = vadd.f32 %v3855, %v3834
    %v3857 = vadd.f32 %v3856, %v3838
    %v3858 = vadd.f32 %v3857, %v3842
    %v3859 = vadd.f32 %v3858, %v3846
    %v3860 = vadd.f32 %v3859, %v3850
    %v3861 = vrot.slane %v3860, 4
    %v3862 = vadd.f32 %v3860, %v3861
    %v3863 = vrot.slane %v3862, 2
    %v3864 = vadd.f32 %v3862, %v3863
    %v3865 = vrot.slane %v3864, 1
    %v3866 = vadd.f32 %v3864, %v3865
    %v3867 = vadd.f32 %v3823, %v3827
    %v3868 = vadd.f32 %v3867, %v3831
    %v3869 = vadd.f32 %v3868, %v3835
    %v3870 = vadd.f32 %v3869, %v3839
    %v3871 = vadd.f32 %v3870, %v3843
    %v3872 = vadd.f32 %v3871, %v3847
    %v3873 = vadd.f32 %v3872, %v3851
    %v3874 = vrot.slane %v3873, 4
    %v3875 = vadd.f32 %v3873, %v3874
    %v3876 = vrot.slane %v3875, 2
    %v3877 = vadd.f32 %v3875, %v3876
    %v3878 = vrot.slane %v3877, 1
    %v3879 = vadd.f32 %v3877, %v3878
    %v3880 = vadd.f32 %v3824, %v3828
    %v3881 = vadd.f32 %v3880, %v3832
    %v3882 = vadd.f32 %v3881, %v3836
    %v3883 = vadd.f32 %v3882, %v3840
    %v3884 = vadd.f32 %v3883, %v3844
    %v3885 = vadd.f32 %v3884, %v3848
    %v3886 = vadd.f32 %v3885, %v3852
    %v3887 = vrot.slane %v3886, 4
    %v3888 = vadd.f32 %v3886, %v3887
    %v3889 = vrot.slane %v3888, 2
    %v3890 = vadd.f32 %v3888, %v3889
    %v3891 = vrot.slane %v3890, 1
    %v3892 = vadd.f32 %v3890, %v3891
    %v3893 = vadd.f32 %v3825, %v3829
    %v3894 = vadd.f32 %v3893, %v3833
    %v3895 = vadd.f32 %v3894, %v3837
    %v3896 = vadd.f32 %v3895, %v3841
    %v3897 = vadd.f32 %v3896, %v3845
    %v3898 = vadd.f32 %v3897, %v3849
    %v3899 = vadd.f32 %v3898, %v3853
    %v3900 = vrot.slane %v3899, 4
    %v3901 = vadd.f32 %v3899, %v3900
    %v3902 = vrot.slane %v3901, 2
    %v3903 = vadd.f32 %v3901, %v3902
    %v3904 = vrot.slane %v3903, 1
    %v3905 = vadd.f32 %v3903, %v3904
    %v3906 = vmul.f32 %v3866, %v553
    %v3907 = vmul.f32 %v3879, %v553
    %v3908 = vmul.f32 %v3892, %v553
    %v3909 = vmul.f32 %v3905, %v553
    %v3910 = vadd.f32 %v3906, 1e-05
    %v3911 = vadd.f32 %v3907, 1e-05
    %v3912 = vadd.f32 %v3908, 1e-05
    %v3913 = vadd.f32 %v3909, 1e-05
    %v3914 = vrsqrt.pop %v3910
    %v3915 = vmul.f32 %v3914, %v3910
    %v3916 = vmul.f32 %v3915, %v3914
    %v3917 = vmul.f32 0.5, %v3916
    %v3918 = vsub.f32 1.5, %v3917
    %v3919 = vmul.f32 %v3914, %v3918
    %vm3920 = vweird.f32 %v3910
    %vm3921 = vweird.f32 %v3914
    %vm3922 = vmor %vm3920, %vm3921
    %v3923 = vsel %vm3922, %v3914, %v3919
    %v3924 = vrsqrt.pop %v3911
    %v3925 = vmul.f32 %v3924, %v3911
    %v3926 = vmul.f32 %v3925, %v3924
    %v3927 = vmul.f32 0.5, %v3926
    %v3928 = vsub.f32 1.5, %v3927
    %v3929 = vmul.f32 %v3924, %v3928
    %vm3930 = vweird.f32 %v3911
    %vm3931 = vweird.f32 %v3924
    %vm3932 = vmor %vm3930, %vm3931
    %v3933 = vsel %vm3932, %v3924, %v3929
    %v3934 = vrsqrt.pop %v3912
    %v3935 = vmul.f32 %v3934, %v3912
    %v3936 = vmul.f32 %v3935, %v3934
    %v3937 = vmul.f32 0.5, %v3936
    %v3938 = vsub.f32 1.5, %v3937
    %v3939 = vmul.f32 %v3934, %v3938
    %vm3940 = vweird.f32 %v3912
    %vm3941 = vweird.f32 %v3934
    %vm3942 = vmor %vm3940, %vm3941
    %v3943 = vsel %vm3942, %v3934, %v3939
    %v3944 = vrsqrt.pop %v3913
    %v3945 = vmul.f32 %v3944, %v3913
    %v3946 = vmul.f32 %v3945, %v3944
    %v3947 = vmul.f32 0.5, %v3946
    %v3948 = vsub.f32 1.5, %v3947
    %v3949 = vmul.f32 %v3944, %v3948
    %vm3950 = vweird.f32 %v3913
    %vm3951 = vweird.f32 %v3944
    %vm3952 = vmor %vm3950, %vm3951
    %v3953 = vsel %vm3952, %v3944, %v3949
    %v3954 = vmul.f32 %v3790, %v3923
    %v3955 = vmul.f32 %v3791, %v3933
    %v3956 = vmul.f32 %v3792, %v3943
    %v3957 = vmul.f32 %v3793, %v3953
    %v3958 = vmul.f32 %v3794, %v3923
    %v3959 = vmul.f32 %v3795, %v3933
    %v3960 = vmul.f32 %v3796, %v3943
    %v3961 = vmul.f32 %v3797, %v3953
    %v3962 = vmul.f32 %v3798, %v3923
    %v3963 = vmul.f32 %v3799, %v3933
    %v3964 = vmul.f32 %v3800, %v3943
    %v3965 = vmul.f32 %v3801, %v3953
    %v3966 = vmul.f32 %v3802, %v3923
    %v3967 = vmul.f32 %v3803, %v3933
    %v3968 = vmul.f32 %v3804, %v3943
    %v3969 = vmul.f32 %v3805, %v3953
    %v3970 = vmul.f32 %v3806, %v3923
    %v3971 = vmul.f32 %v3807, %v3933
    %v3972 = vmul.f32 %v3808, %v3943
    %v3973 = vmul.f32 %v3809, %v3953
    %v3974 = vmul.f32 %v3810, %v3923
    %v3975 = vmul.f32 %v3811, %v3933
    %v3976 = vmul.f32 %v3812, %v3943
    %v3977 = vmul.f32 %v3813, %v3953
    %v3978 = vmul.f32 %v3814, %v3923
    %v3979 = vmul.f32 %v3815, %v3933
    %v3980 = vmul.f32 %v3816, %v3943
    %v3981 = vmul.f32 %v3817, %v3953
    %v3982 = vmul.f32 %v3818, %v3923
    %v3983 = vmul.f32 %v3819, %v3933
    %v3984 = vmul.f32 %v3820, %v3943
    %v3985 = vmul.f32 %v3821, %v3953
    %v3987 = vperm.slane %v3732, 0
    %v3988 = vperm.slane %v3732, 1
    %v3989 = vperm.slane %v3732, 2
    %v3990 = vperm.slane %v3732, 3
    %v3995 = vmul.f32 %v3954, %v3987
    %v3996 = vmul.f32 %v3955, %v3988
    %v3997 = vmul.f32 %v3956, %v3989
    %v3998 = vmul.f32 %v3957, %v3990
    %v3999 = vmul.f32 %v3958, %v3987
    %v4000 = vmul.f32 %v3959, %v3988
    %v4001 = vmul.f32 %v3960, %v3989
    %v4002 = vmul.f32 %v3961, %v3990
    %v4003 = vmul.f32 %v3962, %v3987
    %v4004 = vmul.f32 %v3963, %v3988
    %v4005 = vmul.f32 %v3964, %v3989
    %v4006 = vmul.f32 %v3965, %v3990
    %v4007 = vmul.f32 %v3966, %v3987
    %v4008 = vmul.f32 %v3967, %v3988
    %v4009 = vmul.f32 %v3968, %v3989
    %v4010 = vmul.f32 %v3969, %v3990
    %v4011 = vmul.f32 %v3970, %v3987
    %v4012 = vmul.f32 %v3971, %v3988
    %v4013 = vmul.f32 %v3972, %v3989
    %v4014 = vmul.f32 %v3973, %v3990
    %v4015 = vmul.f32 %v3974, %v3987
    %v4016 = vmul.f32 %v3975, %v3988
    %v4017 = vmul.f32 %v3976, %v3989
    %v4018 = vmul.f32 %v3977, %v3990
    %v4019 = vmul.f32 %v3978, %v3987
    %v4020 = vmul.f32 %v3979, %v3988
    %v4021 = vmul.f32 %v3980, %v3989
    %v4022 = vmul.f32 %v3981, %v3990
    %v4023 = vmul.f32 %v3982, %v3987
    %v4024 = vmul.f32 %v3983, %v3988
    %v4025 = vmul.f32 %v3984, %v3989
    %v4026 = vmul.f32 %v3985, %v3990
    %v4028 = vperm.slane %v3733, 0
    %v4029 = vperm.slane %v3733, 1
    %v4030 = vperm.slane %v3733, 2
    %v4031 = vperm.slane %v3733, 3
    %v4036 = vadd.f32 %v3995, %v4028
    %v4037 = vadd.f32 %v3996, %v4029
    %v4038 = vadd.f32 %v3997, %v4030
    %v4039 = vadd.f32 %v3998, %v4031
    %v4040 = vadd.f32 %v3999, %v4028
    %v4041 = vadd.f32 %v4000, %v4029
    %v4042 = vadd.f32 %v4001, %v4030
    %v4043 = vadd.f32 %v4002, %v4031
    %v4044 = vadd.f32 %v4003, %v4028
    %v4045 = vadd.f32 %v4004, %v4029
    %v4046 = vadd.f32 %v4005, %v4030
    %v4047 = vadd.f32 %v4006, %v4031
    %v4048 = vadd.f32 %v4007, %v4028
    %v4049 = vadd.f32 %v4008, %v4029
    %v4050 = vadd.f32 %v4009, %v4030
    %v4051 = vadd.f32 %v4010, %v4031
    %v4052 = vadd.f32 %v4011, %v4028
    %v4053 = vadd.f32 %v4012, %v4029
    %v4054 = vadd.f32 %v4013, %v4030
    %v4055 = vadd.f32 %v4014, %v4031
    %v4056 = vadd.f32 %v4015, %v4028
    %v4057 = vadd.f32 %v4016, %v4029
    %v4058 = vadd.f32 %v4017, %v4030
    %v4059 = vadd.f32 %v4018, %v4031
    %v4060 = vadd.f32 %v4019, %v4028
    %v4061 = vadd.f32 %v4020, %v4029
    %v4062 = vadd.f32 %v4021, %v4030
    %v4063 = vadd.f32 %v4022, %v4031
    %v4064 = vadd.f32 %v4023, %v4028
    %v4065 = vadd.f32 %v4024, %v4029
    %v4066 = vadd.f32 %v4025, %v4030
    %v4067 = vadd.f32 %v4026, %v4031
    %4068 = vst [vmem:[#allocation16] sm:$0xff] %v4036
    %4069 = vst [vmem:[#allocation16 + $0x8] sm:$0xff] %v4037
    %4070 = vst [vmem:[#allocation16 + $0x10] sm:$0xff] %v4038
    %4071 = vst [vmem:[#allocation16 + $0x18] sm:$0xff] %v4039
    %4072 = vst [vmem:[#allocation16 + $0x20] sm:$0xff] %v4040
    %4073 = vst [vmem:[#allocation16 + $0x28] sm:$0xff] %v4041
    %4074 = vst [vmem:[#allocation16 + $0x30] sm:$0xff] %v4042
    %4075 = vst [vmem:[#allocation16 + $0x38] sm:$0xff] %v4043
    %4076 = vst [vmem:[#allocation16 + $0x40] sm:$0xff] %v4044
    %4077 = vst [vmem:[#allocation16 + $0x48] sm:$0xff] %v4045
    %4078 = vst [vmem:[#allocation16 + $0x50] sm:$0xff] %v4046
    %4079 = vst [vmem:[#allocation16 + $0x58] sm:$0xff] %v4047
    %4080 = vst [vmem:[#allocation16 + $0x60] sm:$0xff] %v4048
    %4081 = vst [vmem:[#allocation16 + $0x68] sm:$0xff] %v4049
    %4082 = vst [vmem:[#allocation16 + $0x70] sm:$0xff] %v4050
    %4083 = vst [vmem:[#allocation16 + $0x78] sm:$0xff] %v4051
    %4084 = vst [vmem:[#allocation16 + $0x80] sm:$0xff] %v4052
    %4085 = vst [vmem:[#allocation16 + $0x88] sm:$0xff] %v4053
    %4086 = vst [vmem:[#allocation16 + $0x90] sm:$0xff] %v4054
    %4087 = vst [vmem:[#allocation16 + $0x98] sm:$0xff] %v4055
    %4088 = vst [vmem:[#allocation16 + $0xa0] sm:$0xff] %v4056
    %4089 = vst [vmem:[#allocation16 + $0xa8] sm:$0xff] %v4057
    %4090 = vst [vmem:[#allocation16 + $0xb0] sm:$0xff] %v4058
    %4091 = vst [vmem:[#allocation16 + $0xb8] sm:$0xff] %v4059
    %4092 = vst [vmem:[#allocation16 + $0xc0] sm:$0xff] %v4060
    %4093 = vst [vmem:[#allocation16 + $0xc8] sm:$0xff] %v4061
    %4094 = vst [vmem:[#allocation16 + $0xd0] sm:$0xff] %v4062
    %4095 = vst [vmem:[#allocation16 + $0xd8] sm:$0xff] %v4063
    %4096 = vst [vmem:[#allocation16 + $0xe0] sm:$0xff] %v4064
    %4097 = vst [vmem:[#allocation16 + $0xe8] sm:$0xff] %v4065
    %4098 = vst [vmem:[#allocation16 + $0xf0] sm:$0xff] %v4066
    %4099 = vst [vmem:[#allocation16 + $0xf8] sm:$0xff] %v4067
    // Predicated region
    $region74: #{tpu_custom_call.1} parent=1 // pred_check
      _
    $region75: #{tpu_custom_call.1} parent=1 // pred_check_branch
      %4101 = sbr.rel (0) target = $region77
    $region76: #{tpu_custom_call.1} parent=1 // pred_region
      %4103 = vsyncadd [#allocation4], 0
      %s4104 = sshll.u32 [#allocation16], 4
      %s4105 = int_to_ptr.vmem [resolvable:$true] %s4104
      %s4106 = sshll.u32 %s10, 4
      %s4107 = int_to_ptr.hbm [resolvable:$true] %s4106
      %4112 = dma.vmem_to_hbm [thread:$0]  %s4105, 4096, %s4107, [#allocation4], 512, 512, 32
    $region77: #{tpu_custom_call.1} parent=1 // pred_fallthru
      _
    // Predicated region
    $region78: #{tpu_custom_call.1} parent=1 // pred_check
      _
    $region79: #{tpu_custom_call.1} parent=1 // pred_check_branch
      %4114 = sbr.rel (0) target = $region81
    $region80: #{tpu_custom_call.1} parent=1 // pred_region
      %4116 = dma.done [#allocation4], 4096
    $region81: #{tpu_custom_call.1} parent=1 // pred_fallthru
      _
    %4117 = vsyncpa [#allocation3], 1
    %4118 = vsyncpa [#allocation6], 1
    %4119 = vsyncpa [#allocation9], 1
    %4120 = vsyncpa [#allocation12], 1
    %4121 = vsyncpa [#allocation15], 1
    %4122 = vsyncpa [#allocation4], 1

</llo_original>
